<compile_context>
chip_gen: v5e
topology: v5e:2x2
jax: 0.10.0
libtpu: 0.0.40
codegen_flags: <defaults>
</compile_context>

<pallas_src>
import functools

import jax
import jax.numpy as jnp
import numpy as np
from jax.experimental import pallas as pl
from jax.experimental.pallas import tpu as pltpu


_SQRT2_INV = 0.7071067811865476
_LN_EPS = 1e-5


def _layer_norm(x, w, b):
    mean = jnp.mean(x, axis=-1, keepdims=True)
    var = jnp.mean(jnp.square(x - mean), axis=-1, keepdims=True)
    return (x - mean) * jax.lax.rsqrt(var + _LN_EPS) * w + b


def _gelu_exact(x):
    # PyTorch nn.GELU default: 0.5 * x * (1 + erf(x / sqrt(2)))
    return 0.5 * x * (1.0 + jax.lax.erf(x * _SQRT2_INV))


def _mha(xn, wqkv, *, seq_len, num_heads, scale):
    """Multi-head self-attention core on a flat (rows, C) slab.

    rows = bb * seq_len, rows grouped per batch element.  One fused QKV
    matmul; heads are static lane slices; per-head attention runs as a single
    batched einsum over all bb batch groups.
    """
    rows, c = xn.shape
    bb = rows // seq_len
    hd = c // num_heads

    qkv = jnp.dot(xn, wqkv, preferred_element_type=jnp.float32)   # (rows, 3C)

    head_outs = []
    for h in range(num_heads):
        q = qkv[:, 0 * c + h * hd:0 * c + (h + 1) * hd].reshape(bb, seq_len, hd)
        k = qkv[:, 1 * c + h * hd:1 * c + (h + 1) * hd].reshape(bb, seq_len, hd)
        v = qkv[:, 2 * c + h * hd:2 * c + (h + 1) * hd].reshape(bb, seq_len, hd)
        s = jnp.einsum('bqd,bkd->bqk', q, k,
                       preferred_element_type=jnp.float32) * scale
        s = s - jnp.max(s, axis=-1, keepdims=True)
        e = jnp.exp(s)
        p = e / jnp.sum(e, axis=-1, keepdims=True)
        o = jnp.einsum('bqk,bkd->bqd', p, v,
                       preferred_element_type=jnp.float32)
        head_outs.append(o.reshape(rows, hd))
    return jnp.concatenate(head_outs, axis=-1)        # (rows, C), head-major


# --------------------------------------------------------------------------
# Kernel 1: x + Attention(LayerNorm(x))   (spatial attention stage)
# --------------------------------------------------------------------------
def _attn_block_kernel(x_ref, lnw_ref, lnb_ref, wqkv_ref, wp_ref, bp_ref,
                       o_ref, *, seq_len, num_heads, scale):
    x = x_ref[...].astype(jnp.float32)                 # (R, C)
    xn = _layer_norm(x, lnw_ref[...].astype(jnp.float32),
                     lnb_ref[...].astype(jnp.float32))
    attn = _mha(xn, wqkv_ref[...], seq_len=seq_len,
                num_heads=num_heads, scale=scale)
    proj = jnp.dot(attn, wp_ref[...],
                   preferred_element_type=jnp.float32) + bp_ref[...]
    o_ref[...] = (x + proj).astype(o_ref.dtype)


# --------------------------------------------------------------------------
# Kernel 2: y = x + Attention(LayerNorm(x)); out = y + Mlp(LayerNorm(y))
# (temporal attention + MLP fused; MLP is row-wise so it commutes with the
#  rearrange back to '(b f) d c')
# --------------------------------------------------------------------------
def _attn_mlp_block_kernel(x_ref, lnw_ref, lnb_ref, wqkv_ref, wp_ref, bp_ref,
                           ln2w_ref, ln2b_ref, w1_ref, b1_ref, w2_ref, b2_ref,
                           o_ref, *, seq_len, num_heads, scale):
    x = x_ref[...].astype(jnp.float32)                 # (R, C)
    xn = _layer_norm(x, lnw_ref[...].astype(jnp.float32),
                     lnb_ref[...].astype(jnp.float32))
    attn = _mha(xn, wqkv_ref[...], seq_len=seq_len,
                num_heads=num_heads, scale=scale)
    proj = jnp.dot(attn, wp_ref[...],
                   preferred_element_type=jnp.float32) + bp_ref[...]
    y = x + proj

    yn = _layer_norm(y, ln2w_ref[...].astype(jnp.float32),
                     ln2b_ref[...].astype(jnp.float32))
    h = jnp.dot(yn, w1_ref[...], preferred_element_type=jnp.float32) + b1_ref[...]
    g = _gelu_exact(h)
    z = jnp.dot(g, w2_ref[...], preferred_element_type=jnp.float32) + b2_ref[...]
    o_ref[...] = (y + z).astype(o_ref.dtype)


def _full_spec(shape):
    # Whole-array block (grid=(1,)): satisfies the (8,128) rule via the
    # full-extent exemption.
    return pl.BlockSpec(shape, lambda i: (0,) * len(shape))


def attention_residual(x, ln_w, ln_b, w_qkv, w_proj, b_proj, *, num_heads):
    """x: (Bt, N, C). Returns x + Attention(LayerNorm(x)). Weights in PyTorch (out, in) layout."""
    bt, n, c = x.shape
    hd = c // num_heads
    scale = float(hd) ** -0.5
    r = bt * n

    # nn.Linear computes x @ W^T; pre-transpose so the kernel right-multiplies.
    wqkv_t = jnp.transpose(w_qkv)                       # (C, 3C)
    wp_t = jnp.transpose(w_proj)                        # (C, C)

    x2 = x.reshape(r, c)                                # rows grouped per batch element
    kernel = functools.partial(_attn_block_kernel, seq_len=n,
                               num_heads=num_heads, scale=scale)
    out = pl.pallas_call(
        kernel,
        out_shape=jax.ShapeDtypeStruct((r, c), x.dtype),
        grid_spec=pltpu.PrefetchScalarGridSpec(
            num_scalar_prefetch=0,
            grid=(1,),                                  # whole batch in one step
            in_specs=[
                _full_spec((r, c)),
                _full_spec((1, c)),
                _full_spec((1, c)),
                _full_spec((c, 3 * c)),
                _full_spec((c, c)),
                _full_spec((1, c)),
            ],
            out_specs=_full_spec((r, c)),
        ),
        compiler_params=pltpu.CompilerParams(
            dimension_semantics=("arbitrary",)),
    )(x2, ln_w.reshape(1, c), ln_b.reshape(1, c), wqkv_t, wp_t,
      b_proj.reshape(1, c))
    return out.reshape(bt, n, c)


def attention_mlp_residual(x, ln_w, ln_b, w_qkv, w_proj, b_proj,
                           ln2_w, ln2_b, w1, b1, w2, b2, *, num_heads):
    """Fused: y = x + Attn(LN1(x)); return y + Mlp(LN2(y)). x: (Bt, N, C)."""
    bt, n, c = x.shape
    hd = c // num_heads
    scale = float(hd) ** -0.5
    r = bt * n
    hidden = w1.shape[0]

    wqkv_t = jnp.transpose(w_qkv)                       # (C, 3C)
    wp_t = jnp.transpose(w_proj)                        # (C, C)
    w1_t = jnp.transpose(w1)                            # (C, hidden)
    w2_t = jnp.transpose(w2)                            # (hidden, C)

    x2 = x.reshape(r, c)
    kernel = functools.partial(_attn_mlp_block_kernel, seq_len=n,
                               num_heads=num_heads, scale=scale)
    out = pl.pallas_call(
        kernel,
        out_shape=jax.ShapeDtypeStruct((r, c), x.dtype),
        grid_spec=pltpu.PrefetchScalarGridSpec(
            num_scalar_prefetch=0,
            grid=(1,),
            in_specs=[
                _full_spec((r, c)),
                _full_spec((1, c)),
                _full_spec((1, c)),
                _full_spec((c, 3 * c)),
                _full_spec((c, c)),
                _full_spec((1, c)),
                _full_spec((1, c)),
                _full_spec((1, c)),
                _full_spec((c, hidden)),
                _full_spec((1, hidden)),
                _full_spec((hidden, c)),
                _full_spec((1, c)),
            ],
            out_specs=_full_spec((r, c)),
        ),
        compiler_params=pltpu.CompilerParams(
            dimension_semantics=("arbitrary",)),
    )(x2, ln_w.reshape(1, c), ln_b.reshape(1, c), wqkv_t, wp_t,
      b_proj.reshape(1, c), ln2_w.reshape(1, c), ln2_b.reshape(1, c),
      w1_t, b1.reshape(1, hidden), w2_t, b2.reshape(1, c))
    return out.reshape(bt, n, c)


# --------------------------------------------------------------------------
# Full BlockTemp forward (eval path: no dropout/drop_path, no return_attn)
# --------------------------------------------------------------------------
def block_temp_forward(x, params, *, num_heads, window_size):
    bf, d, c = x.shape
    f = window_size
    b = bf // f

    # x = x + attn(norm1(x))               spatial attention over d tokens
    x = attention_residual(x, params["norm1_w"], params["norm1_b"],
                           params["attn_qkv_w"], params["attn_proj_w"],
                           params["attn_proj_b"], num_heads=num_heads)

    # rearrange '(b f) d c -> (b d) f c'   (layout plumbing, wrapper-side)
    x = x.reshape(b, f, d, c).transpose(0, 2, 1, 3).reshape(b * d, f, c)

    # x = x + attn_temp(norm_temp(x)); x = x + mlp(norm2(x))
    # The MLP residual is row-wise, so it commutes with the rearrange back to
    # '(b f) d c' and is fused into the same kernel.
    x = attention_mlp_residual(x, params["norm_temp_w"], params["norm_temp_b"],
                               params["attn_temp_qkv_w"],
                               params["attn_temp_proj_w"],
                               params["attn_temp_proj_b"],
                               params["norm2_w"], params["norm2_b"],
                               params["mlp_fc1_w"], params["mlp_fc1_b"],
                               params["mlp_fc2_w"], params["mlp_fc2_b"],
                               num_heads=num_heads)

    # rearrange '(b d) f c -> (b f) d c'
    x = x.reshape(b, d, f, c).transpose(0, 2, 1, 3).reshape(b * f, d, c)
    return x


# --------------------------------------------------------------------------
# Pure-JAX reference mirroring the PyTorch forward exactly (MLP applied AFTER
# the rearrange back, like the original module — validates the fusion).
# --------------------------------------------------------------------------
def block_temp_reference(x, params, *, num_heads, window_size):
    def layer_norm(x, w, b):
        m = jnp.mean(x, axis=-1, keepdims=True)
        v = jnp.mean(jnp.square(x - m), axis=-1, keepdims=True)
        return (x - m) / jnp.sqrt(v + _LN_EPS) * w + b

    def attention(x, wqkv, wp, bp):
        bt, n, c = x.shape
        hd = c // num_heads
        qkv = (x @ wqkv.T).reshape(bt, n, 3, num_heads, hd).transpose(2, 0, 3, 1, 4)
        q, k, v = qkv[0], qkv[1], qkv[2]                  # (bt, H, n, hd)
        a = (q @ jnp.swapaxes(k, -2, -1)) * (float(hd) ** -0.5)
        a = jax.nn.softmax(a, axis=-1)
        o = jnp.swapaxes(a @ v, 1, 2).reshape(bt, n, c)
        return o @ wp.T + bp

    def mlp(x, w1, b1, w2, b2):
        h = x @ w1.T + b1
        g = 0.5 * h * (1.0 + jax.lax.erf(h * _SQRT2_INV))
        return g @ w2.T + b2

    bf, d, c = x.shape
    f = window_size
    b = bf // f
    x = x + attention(layer_norm(x, params["norm1_w"], params["norm1_b"]),
                      params["attn_qkv_w"], params["attn_proj_w"], params["attn_proj_b"])
    x = x.reshape(b, f, d, c).transpose(0, 2, 1, 3).reshape(b * d, f, c)
    x = x + attention(layer_norm(x, params["norm_temp_w"], params["norm_temp_b"]),
                      params["attn_temp_qkv_w"], params["attn_temp_proj_w"],
                      params["attn_temp_proj_b"])
    x = x.reshape(b, d, f, c).transpose(0, 2, 1, 3).reshape(b * f, d, c)
    x = x + mlp(layer_norm(x, params["norm2_w"], params["norm2_b"]),
                params["mlp_fc1_w"], params["mlp_fc1_b"],
                params["mlp_fc2_w"], params["mlp_fc2_b"])
    return x


if __name__ == "__main__":
    # Small shapes consistent with BlockTemp: x is (batch*frames, tokens, dim).
    B, F, D, C = 2, 8, 8, 32          # batch, frames (= window_size), spatial tokens, dim
    NUM_HEADS = 4
    MLP_HIDDEN = int(C * 4.0)

    key = jax.random.PRNGKey(0)
    keys = jax.random.split(key, 17)

    def w(k, shape, s=0.05):
        return jax.random.normal(k, shape, dtype=jnp.float32) * s

    params = {
        "norm1_w": 1.0 + w(keys[0], (C,)),
        "norm1_b": w(keys[1], (C,)),
        "attn_qkv_w": w(keys[2], (3 * C, C)),          # nn.Linear stores W as (out, in)
        "attn_proj_w": w(keys[3], (C, C)),
        "attn_proj_b": w(keys[4], (C,)),
        "norm_temp_w": 1.0 + w(keys[5], (C,)),
        "norm_temp_b": w(keys[6], (C,)),
        "attn_temp_qkv_w": w(keys[7], (3 * C, C)),
        "attn_temp_proj_w": w(keys[8], (C, C)),
        "attn_temp_proj_b": w(keys[9], (C,)),
        "norm2_w": 1.0 + w(keys[10], (C,)),
        "norm2_b": w(keys[11], (C,)),
        "mlp_fc1_w": w(keys[12], (MLP_HIDDEN, C)),
        "mlp_fc1_b": w(keys[13], (MLP_HIDDEN,)),
        "mlp_fc2_w": w(keys[14], (C, MLP_HIDDEN)),
        "mlp_fc2_b": w(keys[15], (C,)),
    }

    x = jax.random.normal(keys[16], (B * F, D, C), dtype=jnp.float32)

    out = block_temp_forward(x, params, num_heads=NUM_HEADS, window_size=F)
    out = jax.block_until_ready(out)
    assert out.shape == (B * F, D, C), out.shape

    ref = jax.block_until_ready(
        block_temp_reference(x, params, num_heads=NUM_HEADS, window_size=F))
    np.testing.assert_allclose(np.asarray(out), np.asarray(ref), rtol=5e-3, atol=5e-3)

    print("KERNEL_OK")
</pallas_src>

<mosaic_0001>
module attributes {stable_mosaic.version = 11 : i64} {
  func.func @_attn_block_kernel(%arg0: i32, %arg1: memref<128x32xf32, #tpu.memory_space<vmem>>, %arg2: memref<1x32xf32, #tpu.memory_space<vmem>>, %arg3: memref<1x32xf32, #tpu.memory_space<vmem>>, %arg4: memref<32x96xf32, #tpu.memory_space<vmem>>, %arg5: memref<32x32xf32, #tpu.memory_space<vmem>>, %arg6: memref<1x32xf32, #tpu.memory_space<vmem>>, %arg7: memref<128x32xf32, #tpu.memory_space<vmem>>) attributes {dimension_semantics = [#tpu.dimension_semantics<arbitrary>], iteration_bounds = array<i64: 1>, scalar_prefetch = 0 : i64, scratch_operands = 0 : i64, tpu.core_type = #tpu.core_type<tc>, window_params = [{pipeline_mode = #tpu.pipeline_mode<synchronous>, transform_indices = @transform_0, window_bounds = array<i64: 128, 32>}, {pipeline_mode = #tpu.pipeline_mode<synchronous>, transform_indices = @transform_1, window_bounds = array<i64: 1, 32>}, {pipeline_mode = #tpu.pipeline_mode<synchronous>, transform_indices = @transform_2, window_bounds = array<i64: 1, 32>}, {pipeline_mode = #tpu.pipeline_mode<synchronous>, transform_indices = @transform_3, window_bounds = array<i64: 32, 96>}, {pipeline_mode = #tpu.pipeline_mode<synchronous>, transform_indices = @transform_4, window_bounds = array<i64: 32, 32>}, {pipeline_mode = #tpu.pipeline_mode<synchronous>, transform_indices = @transform_5, window_bounds = array<i64: 1, 32>}, {pipeline_mode = #tpu.pipeline_mode<synchronous>, transform_indices = @transform_6, window_bounds = array<i64: 128, 32>}]} {
    %c0 = arith.constant 0 : index
    %c0_0 = arith.constant 0 : index
    %0 = vector.load %arg1[%c0, %c0_0] : memref<128x32xf32, #tpu.memory_space<vmem>>, vector<128x32xf32>
    %c0_1 = arith.constant 0 : index
    %c0_2 = arith.constant 0 : index
    %1 = vector.load %arg2[%c0_1, %c0_2] : memref<1x32xf32, #tpu.memory_space<vmem>>, vector<1x32xf32>
    %c0_3 = arith.constant 0 : index
    %c0_4 = arith.constant 0 : index
    %2 = vector.load %arg3[%c0_3, %c0_4] : memref<1x32xf32, #tpu.memory_space<vmem>>, vector<1x32xf32>
    %cst = arith.constant dense<0.000000e+00> : vector<128xf32>
    %3 = vector.multi_reduction <add>, %0, %cst [1] : vector<128x32xf32> to vector<128xf32>
    %4 = vector.shape_cast %3 : vector<128xf32> to vector<128x1xf32>
    %cst_5 = arith.constant 3.200000e+01 : f32
    %5 = vector.broadcast %cst_5 : f32 to vector<128x1xf32>
    %6 = arith.divf %4, %5 : vector<128x1xf32>
    %7 = vector.broadcast %6 : vector<128x1xf32> to vector<128x32xf32>
    %8 = arith.subf %0, %7 : vector<128x32xf32>
    %9 = arith.mulf %8, %8 : vector<128x32xf32>
    %cst_6 = arith.constant dense<0.000000e+00> : vector<128xf32>
    %10 = vector.multi_reduction <add>, %9, %cst_6 [1] : vector<128x32xf32> to vector<128xf32>
    %11 = vector.shape_cast %10 : vector<128xf32> to vector<128x1xf32>
    %cst_7 = arith.constant 3.200000e+01 : f32
    %12 = vector.broadcast %cst_7 : f32 to vector<128x1xf32>
    %13 = arith.divf %11, %12 : vector<128x1xf32>
    %14 = vector.broadcast %6 : vector<128x1xf32> to vector<128x32xf32>
    %15 = arith.subf %0, %14 : vector<128x32xf32>
    %cst_8 = arith.constant 9.99999974E-6 : f32
    %16 = vector.broadcast %cst_8 : f32 to vector<128x1xf32>
    %17 = arith.addf %13, %16 : vector<128x1xf32>
    %18 = math.rsqrt %17 : vector<128x1xf32>
    %19 = vector.broadcast %18 : vector<128x1xf32> to vector<128x32xf32>
    %20 = arith.mulf %15, %19 : vector<128x32xf32>
    %21 = vector.broadcast %1 : vector<1x32xf32> to vector<128x32xf32>
    %22 = arith.mulf %20, %21 : vector<128x32xf32>
    %23 = vector.broadcast %2 : vector<1x32xf32> to vector<128x32xf32>
    %24 = arith.addf %22, %23 : vector<128x32xf32>
    %c0_9 = arith.constant 0 : index
    %c0_10 = arith.constant 0 : index
    %25 = vector.load %arg4[%c0_9, %c0_10] : memref<32x96xf32, #tpu.memory_space<vmem>>, vector<32x96xf32>
    %cst_11 = arith.constant dense<0.000000e+00> : vector<128x96xf32>
    %26 = tpu.matmul %24, %25, %cst_11 {dimension_numbers = #tpu.dot_dimension_numbers<[1], [0], [0], [1], [0, 0, 1, 1], [], []>} : vector<128x32xf32>, vector<32x96xf32>, vector<128x96xf32> -> vector<128x96xf32>
    %27 = vector.extract_strided_slice %26 {offsets = [0, 0], sizes = [128, 8], strides = [1, 1]} : vector<128x96xf32> to vector<128x8xf32>
    %28 = vector.shape_cast %27 : vector<128x8xf32> to vector<16x8x8xf32>
    %29 = vector.extract_strided_slice %26 {offsets = [0, 32], sizes = [128, 8], strides = [1, 1]} : vector<128x96xf32> to vector<128x8xf32>
    %30 = vector.shape_cast %29 : vector<128x8xf32> to vector<16x8x8xf32>
    %31 = vector.extract_strided_slice %26 {offsets = [0, 64], sizes = [128, 8], strides = [1, 1]} : vector<128x96xf32> to vector<128x8xf32>
    %32 = vector.shape_cast %31 : vector<128x8xf32> to vector<16x8x8xf32>
    "tpu.trace_start"() <{level = 10 : i32, message = "bqd,bkd->bqk"}> : () -> ()
    %cst_12 = arith.constant dense<0.000000e+00> : vector<16x8x8xf32>
    %33 = tpu.matmul %28, %30, %cst_12 {dimension_numbers = #tpu.dot_dimension_numbers<[2], [2], [1], [1], [0, 0, 0, 1, 1, 1], [0], [0]>} : vector<16x8x8xf32>, vector<16x8x8xf32>, vector<16x8x8xf32> -> vector<16x8x8xf32>
    "tpu.trace_stop"() : () -> ()
    %cst_13 = arith.constant 0.353553385 : f32
    %34 = vector.broadcast %cst_13 : f32 to vector<16x8x8xf32>
    %35 = arith.mulf %33, %34 : vector<16x8x8xf32>
    %cst_14 = arith.constant dense<0xFF800000> : vector<16x8xf32>
    %36 = vector.multi_reduction <maximumf>, %35, %cst_14 [2] : vector<16x8x8xf32> to vector<16x8xf32>
    %37 = vector.shape_cast %36 : vector<16x8xf32> to vector<16x8x1xf32>
    %38 = vector.broadcast %37 : vector<16x8x1xf32> to vector<16x8x8xf32>
    %39 = arith.subf %35, %38 : vector<16x8x8xf32>
    %40 = math.exp %39 : vector<16x8x8xf32>
    %cst_15 = arith.constant dense<0.000000e+00> : vector<16x8xf32>
    %41 = vector.multi_reduction <add>, %40, %cst_15 [2] : vector<16x8x8xf32> to vector<16x8xf32>
    %42 = vector.shape_cast %41 : vector<16x8xf32> to vector<16x8x1xf32>
    %43 = vector.broadcast %42 : vector<16x8x1xf32> to vector<16x8x8xf32>
    %44 = arith.divf %40, %43 : vector<16x8x8xf32>
    "tpu.trace_start"() <{level = 10 : i32, message = "bqk,bkd->bqd"}> : () -> ()
    %cst_16 = arith.constant dense<0.000000e+00> : vector<16x8x8xf32>
    %45 = tpu.matmul %44, %32, %cst_16 {dimension_numbers = #tpu.dot_dimension_numbers<[2], [1], [1], [2], [0, 0, 0, 1, 1, 2], [0], [0]>} : vector<16x8x8xf32>, vector<16x8x8xf32>, vector<16x8x8xf32> -> vector<16x8x8xf32>
    "tpu.trace_stop"() : () -> ()
    %46 = vector.shape_cast %45 : vector<16x8x8xf32> to vector<128x8xf32>
    %47 = vector.extract_strided_slice %26 {offsets = [0, 8], sizes = [128, 8], strides = [1, 1]} : vector<128x96xf32> to vector<128x8xf32>
    %48 = vector.shape_cast %47 : vector<128x8xf32> to vector<16x8x8xf32>
    %49 = vector.extract_strided_slice %26 {offsets = [0, 40], sizes = [128, 8], strides = [1, 1]} : vector<128x96xf32> to vector<128x8xf32>
    %50 = vector.shape_cast %49 : vector<128x8xf32> to vector<16x8x8xf32>
    %51 = vector.extract_strided_slice %26 {offsets = [0, 72], sizes = [128, 8], strides = [1, 1]} : vector<128x96xf32> to vector<128x8xf32>
    %52 = vector.shape_cast %51 : vector<128x8xf32> to vector<16x8x8xf32>
    "tpu.trace_start"() <{level = 10 : i32, message = "bqd,bkd->bqk"}> : () -> ()
    %cst_17 = arith.constant dense<0.000000e+00> : vector<16x8x8xf32>
    %53 = tpu.matmul %48, %50, %cst_17 {dimension_numbers = #tpu.dot_dimension_numbers<[2], [2], [1], [1], [0, 0, 0, 1, 1, 1], [0], [0]>} : vector<16x8x8xf32>, vector<16x8x8xf32>, vector<16x8x8xf32> -> vector<16x8x8xf32>
    "tpu.trace_stop"() : () -> ()
    %cst_18 = arith.constant 0.353553385 : f32
    %54 = vector.broadcast %cst_18 : f32 to vector<16x8x8xf32>
    %55 = arith.mulf %53, %54 : vector<16x8x8xf32>
    %cst_19 = arith.constant dense<0xFF800000> : vector<16x8xf32>
    %56 = vector.multi_reduction <maximumf>, %55, %cst_19 [2] : vector<16x8x8xf32> to vector<16x8xf32>
    %57 = vector.shape_cast %56 : vector<16x8xf32> to vector<16x8x1xf32>
    %58 = vector.broadcast %57 : vector<16x8x1xf32> to vector<16x8x8xf32>
    %59 = arith.subf %55, %58 : vector<16x8x8xf32>
    %60 = math.exp %59 : vector<16x8x8xf32>
    %cst_20 = arith.constant dense<0.000000e+00> : vector<16x8xf32>
    %61 = vector.multi_reduction <add>, %60, %cst_20 [2] : vector<16x8x8xf32> to vector<16x8xf32>
    %62 = vector.shape_cast %61 : vector<16x8xf32> to vector<16x8x1xf32>
    %63 = vector.broadcast %62 : vector<16x8x1xf32> to vector<16x8x8xf32>
    %64 = arith.divf %60, %63 : vector<16x8x8xf32>
    "tpu.trace_start"() <{level = 10 : i32, message = "bqk,bkd->bqd"}> : () -> ()
    %cst_21 = arith.constant dense<0.000000e+00> : vector<16x8x8xf32>
    %65 = tpu.matmul %64, %52, %cst_21 {dimension_numbers = #tpu.dot_dimension_numbers<[2], [1], [1], [2], [0, 0, 0, 1, 1, 2], [0], [0]>} : vector<16x8x8xf32>, vector<16x8x8xf32>, vector<16x8x8xf32> -> vector<16x8x8xf32>
    "tpu.trace_stop"() : () -> ()
    %66 = vector.shape_cast %65 : vector<16x8x8xf32> to vector<128x8xf32>
    %67 = vector.extract_strided_slice %26 {offsets = [0, 16], sizes = [128, 8], strides = [1, 1]} : vector<128x96xf32> to vector<128x8xf32>
    %68 = vector.shape_cast %67 : vector<128x8xf32> to vector<16x8x8xf32>
    %69 = vector.extract_strided_slice %26 {offsets = [0, 48], sizes = [128, 8], strides = [1, 1]} : vector<128x96xf32> to vector<128x8xf32>
    %70 = vector.shape_cast %69 : vector<128x8xf32> to vector<16x8x8xf32>
    %71 = vector.extract_strided_slice %26 {offsets = [0, 80], sizes = [128, 8], strides = [1, 1]} : vector<128x96xf32> to vector<128x8xf32>
    %72 = vector.shape_cast %71 : vector<128x8xf32> to vector<16x8x8xf32>
    "tpu.trace_start"() <{level = 10 : i32, message = "bqd,bkd->bqk"}> : () -> ()
    %cst_22 = arith.constant dense<0.000000e+00> : vector<16x8x8xf32>
    %73 = tpu.matmul %68, %70, %cst_22 {dimension_numbers = #tpu.dot_dimension_numbers<[2], [2], [1], [1], [0, 0, 0, 1, 1, 1], [0], [0]>} : vector<16x8x8xf32>, vector<16x8x8xf32>, vector<16x8x8xf32> -> vector<16x8x8xf32>
    "tpu.trace_stop"() : () -> ()
    %cst_23 = arith.constant 0.353553385 : f32
    %74 = vector.broadcast %cst_23 : f32 to vector<16x8x8xf32>
    %75 = arith.mulf %73, %74 : vector<16x8x8xf32>
    %cst_24 = arith.constant dense<0xFF800000> : vector<16x8xf32>
    %76 = vector.multi_reduction <maximumf>, %75, %cst_24 [2] : vector<16x8x8xf32> to vector<16x8xf32>
    %77 = vector.shape_cast %76 : vector<16x8xf32> to vector<16x8x1xf32>
    %78 = vector.broadcast %77 : vector<16x8x1xf32> to vector<16x8x8xf32>
    %79 = arith.subf %75, %78 : vector<16x8x8xf32>
    %80 = math.exp %79 : vector<16x8x8xf32>
    %cst_25 = arith.constant dense<0.000000e+00> : vector<16x8xf32>
    %81 = vector.multi_reduction <add>, %80, %cst_25 [2] : vector<16x8x8xf32> to vector<16x8xf32>
    %82 = vector.shape_cast %81 : vector<16x8xf32> to vector<16x8x1xf32>
    %83 = vector.broadcast %82 : vector<16x8x1xf32> to vector<16x8x8xf32>
    %84 = arith.divf %80, %83 : vector<16x8x8xf32>
    "tpu.trace_start"() <{level = 10 : i32, message = "bqk,bkd->bqd"}> : () -> ()
    %cst_26 = arith.constant dense<0.000000e+00> : vector<16x8x8xf32>
    %85 = tpu.matmul %84, %72, %cst_26 {dimension_numbers = #tpu.dot_dimension_numbers<[2], [1], [1], [2], [0, 0, 0, 1, 1, 2], [0], [0]>} : vector<16x8x8xf32>, vector<16x8x8xf32>, vector<16x8x8xf32> -> vector<16x8x8xf32>
    "tpu.trace_stop"() : () -> ()
    %86 = vector.shape_cast %85 : vector<16x8x8xf32> to vector<128x8xf32>
    %87 = vector.extract_strided_slice %26 {offsets = [0, 24], sizes = [128, 8], strides = [1, 1]} : vector<128x96xf32> to vector<128x8xf32>
    %88 = vector.shape_cast %87 : vector<128x8xf32> to vector<16x8x8xf32>
    %89 = vector.extract_strided_slice %26 {offsets = [0, 56], sizes = [128, 8], strides = [1, 1]} : vector<128x96xf32> to vector<128x8xf32>
    %90 = vector.shape_cast %89 : vector<128x8xf32> to vector<16x8x8xf32>
    %91 = vector.extract_strided_slice %26 {offsets = [0, 88], sizes = [128, 8], strides = [1, 1]} : vector<128x96xf32> to vector<128x8xf32>
    %92 = vector.shape_cast %91 : vector<128x8xf32> to vector<16x8x8xf32>
    "tpu.trace_start"() <{level = 10 : i32, message = "bqd,bkd->bqk"}> : () -> ()
    %cst_27 = arith.constant dense<0.000000e+00> : vector<16x8x8xf32>
    %93 = tpu.matmul %88, %90, %cst_27 {dimension_numbers = #tpu.dot_dimension_numbers<[2], [2], [1], [1], [0, 0, 0, 1, 1, 1], [0], [0]>} : vector<16x8x8xf32>, vector<16x8x8xf32>, vector<16x8x8xf32> -> vector<16x8x8xf32>
    "tpu.trace_stop"() : () -> ()
    %cst_28 = arith.constant 0.353553385 : f32
    %94 = vector.broadcast %cst_28 : f32 to vector<16x8x8xf32>
    %95 = arith.mulf %93, %94 : vector<16x8x8xf32>
    %cst_29 = arith.constant dense<0xFF800000> : vector<16x8xf32>
    %96 = vector.multi_reduction <maximumf>, %95, %cst_29 [2] : vector<16x8x8xf32> to vector<16x8xf32>
    %97 = vector.shape_cast %96 : vector<16x8xf32> to vector<16x8x1xf32>
    %98 = vector.broadcast %97 : vector<16x8x1xf32> to vector<16x8x8xf32>
    %99 = arith.subf %95, %98 : vector<16x8x8xf32>
    %100 = math.exp %99 : vector<16x8x8xf32>
    %cst_30 = arith.constant dense<0.000000e+00> : vector<16x8xf32>
    %101 = vector.multi_reduction <add>, %100, %cst_30 [2] : vector<16x8x8xf32> to vector<16x8xf32>
    %102 = vector.shape_cast %101 : vector<16x8xf32> to vector<16x8x1xf32>
    %103 = vector.broadcast %102 : vector<16x8x1xf32> to vector<16x8x8xf32>
    %104 = arith.divf %100, %103 : vector<16x8x8xf32>
    "tpu.trace_start"() <{level = 10 : i32, message = "bqk,bkd->bqd"}> : () -> ()
    %cst_31 = arith.constant dense<0.000000e+00> : vector<16x8x8xf32>
    %105 = tpu.matmul %104, %92, %cst_31 {dimension_numbers = #tpu.dot_dimension_numbers<[2], [1], [1], [2], [0, 0, 0, 1, 1, 2], [0], [0]>} : vector<16x8x8xf32>, vector<16x8x8xf32>, vector<16x8x8xf32> -> vector<16x8x8xf32>
    "tpu.trace_stop"() : () -> ()
    %106 = vector.shape_cast %105 : vector<16x8x8xf32> to vector<128x8xf32>
    %107 = tpu.concatenate %46, %66, %86, %106 in 1 : vector<128x8xf32>, vector<128x8xf32>, vector<128x8xf32>, vector<128x8xf32> -> vector<128x32xf32>
    %c0_32 = arith.constant 0 : index
    %c0_33 = arith.constant 0 : index
    %108 = vector.load %arg5[%c0_32, %c0_33] : memref<32x32xf32, #tpu.memory_space<vmem>>, vector<32x32xf32>
    %cst_34 = arith.constant dense<0.000000e+00> : vector<128x32xf32>
    %109 = tpu.matmul %107, %108, %cst_34 {dimension_numbers = #tpu.dot_dimension_numbers<[1], [0], [0], [1], [0, 0, 1, 1], [], []>} : vector<128x32xf32>, vector<32x32xf32>, vector<128x32xf32> -> vector<128x32xf32>
    %c0_35 = arith.constant 0 : index
    %c0_36 = arith.constant 0 : index
    %110 = vector.load %arg6[%c0_35, %c0_36] : memref<1x32xf32, #tpu.memory_space<vmem>>, vector<1x32xf32>
    %111 = vector.broadcast %110 : vector<1x32xf32> to vector<128x32xf32>
    %112 = arith.addf %109, %111 : vector<128x32xf32>
    %113 = arith.addf %0, %112 : vector<128x32xf32>
    %c0_37 = arith.constant 0 : index
    %c0_38 = arith.constant 0 : index
    %114 = vector.load %arg7[%c0_37, %c0_38] : memref<128x32xf32, #tpu.memory_space<vmem>>, vector<128x32xf32>
    tpu.vector_store %arg7[%c0_37, %c0_38], %113 {strides = array<i32>} : memref<128x32xf32, #tpu.memory_space<vmem>>, vector<128x32xf32>,
    return
  }
  func.func @transform_0(%arg0: i32) -> (i32, i32) {
    %c0_i32 = arith.constant 0 : i32
    %c0_i32_0 = arith.constant 0 : i32
    %c0_i32_1 = arith.constant 0 : i32
    return %c0_i32, %c0_i32_0 : i32, i32
  }
  func.func @transform_1(%arg0: i32) -> (i32, i32) {
    %c0_i32 = arith.constant 0 : i32
    %c0_i32_0 = arith.constant 0 : i32
    %c0_i32_1 = arith.constant 0 : i32
    return %c0_i32, %c0_i32_0 : i32, i32
  }
  func.func @transform_2(%arg0: i32) -> (i32, i32) {
    %c0_i32 = arith.constant 0 : i32
    %c0_i32_0 = arith.constant 0 : i32
    %c0_i32_1 = arith.constant 0 : i32
    return %c0_i32, %c0_i32_0 : i32, i32
  }
  func.func @transform_3(%arg0: i32) -> (i32, i32) {
    %c0_i32 = arith.constant 0 : i32
    %c0_i32_0 = arith.constant 0 : i32
    %c0_i32_1 = arith.constant 0 : i32
    return %c0_i32, %c0_i32_0 : i32, i32
  }
  func.func @transform_4(%arg0: i32) -> (i32, i32) {
    %c0_i32 = arith.constant 0 : i32
    %c0_i32_0 = arith.constant 0 : i32
    %c0_i32_1 = arith.constant 0 : i32
    return %c0_i32, %c0_i32_0 : i32, i32
  }
  func.func @transform_5(%arg0: i32) -> (i32, i32) {
    %c0_i32 = arith.constant 0 : i32
    %c0_i32_0 = arith.constant 0 : i32
    %c0_i32_1 = arith.constant 0 : i32
    return %c0_i32, %c0_i32_0 : i32, i32
  }
  func.func @transform_6(%arg0: i32) -> (i32, i32) {
    %c0_i32 = arith.constant 0 : i32
    %c0_i32_0 = arith.constant 0 : i32
    %c0_i32_1 = arith.constant 0 : i32
    return %c0_i32, %c0_i32_0 : i32, i32
  }
}

</mosaic_0001>

<llo_original>
// kernel: tpu_custom_call.1
$region0: #{tpu_custom_call.1}
  #allocation0 [shape = 'u32[]', space=smem, size = 0x4, offset = 0x4, fixed_abs, tag = 'smem constant byte address 0x4 - core index']
  #allocation1 [shape = 'u32[72,128]{1,0:T(1,128)}', space=vmem, size = 0x9000, scoped, tag = 'internal scratch']
  %s0 = inlined_call_operand.vmem [shape: f32[128,32], index: 0, kind: input, shape index: {}]
  %s1 = inlined_call_operand.vmem [shape: f32[1,32], index: 1, kind: input, shape index: {}]
  %s2 = inlined_call_operand.vmem [shape: f32[1,32], index: 2, kind: input, shape index: {}]
  %s3 = inlined_call_operand.vmem [shape: f32[32,96], index: 3, kind: input, shape index: {}]
  %s4 = inlined_call_operand.vmem [shape: f32[32,32], index: 4, kind: input, shape index: {}]
  %s5 = inlined_call_operand.vmem [shape: f32[1,32], index: 5, kind: input, shape index: {}]
  %s6 = inlined_call_operand.vmem [shape: f32[128,32], index: 6, kind: output, shape index: {}]
  %s7 = sld [smem:[#allocation0]]
  $region34: #{tpu_custom_call.1} parent=0
    _
  %s9 = ssub.s32 1, %s7
  %s10 = scalar_select 0, %s9, %s7
  // Predicated region
  $region2: #{tpu_custom_call.1} parent=0 // pred_check
    _
  $region3: #{tpu_custom_call.1} parent=0 // pred_check_branch
    %12 = sbr.rel (0) target = $region5
  $region4: #{tpu_custom_call.1} parent=0 // pred_region
    _
  $region5: #{tpu_custom_call.1} parent=0 // pred_fallthru
    _
  // Predicated region
  $region6: #{tpu_custom_call.1} parent=0 // pred_check
    _
  $region7: #{tpu_custom_call.1} parent=0 // pred_check_branch
    %14 = sbr.rel (0) target = $region9
  $region8: #{tpu_custom_call.1} parent=0 // pred_region
    _
  $region9: #{tpu_custom_call.1} parent=0 // pred_fallthru
    _
  // Predicated region
  $region10: #{tpu_custom_call.1} parent=0 // pred_check
    _
  $region11: #{tpu_custom_call.1} parent=0 // pred_check_branch
    %16 = sbr.rel (0) target = $region13
  $region12: #{tpu_custom_call.1} parent=0 // pred_region
    _
  $region13: #{tpu_custom_call.1} parent=0 // pred_fallthru
    _
  // Predicated region
  $region14: #{tpu_custom_call.1} parent=0 // pred_check
    _
  $region15: #{tpu_custom_call.1} parent=0 // pred_check_branch
    %18 = sbr.rel (0) target = $region17
  $region16: #{tpu_custom_call.1} parent=0 // pred_region
    _
  $region17: #{tpu_custom_call.1} parent=0 // pred_fallthru
    _
  // Predicated region
  $region18: #{tpu_custom_call.1} parent=0 // pred_check
    _
  $region19: #{tpu_custom_call.1} parent=0 // pred_check_branch
    %20 = sbr.rel (0) target = $region21
  $region20: #{tpu_custom_call.1} parent=0 // pred_region
    _
  $region21: #{tpu_custom_call.1} parent=0 // pred_fallthru
    _
  // Predicated region
  $region22: #{tpu_custom_call.1} parent=0 // pred_check
    _
  $region23: #{tpu_custom_call.1} parent=0 // pred_check_branch
    %22 = sbr.rel (0) target = $region25
  $region24: #{tpu_custom_call.1} parent=0 // pred_region
    _
  $region25: #{tpu_custom_call.1} parent=0 // pred_fallthru
    _
  %v23 = vld [vmem:[%s0] sm:$0xff]
  %v24 = vld [vmem:[%s0 + $0x8] sm:$0xff]
  %v25 = vld [vmem:[%s0 + $0x10] sm:$0xff]
  %v26 = vld [vmem:[%s0 + $0x18] sm:$0xff]
  %v27 = vld [vmem:[%s0 + $0x20] sm:$0xff]
  %v28 = vld [vmem:[%s0 + $0x28] sm:$0xff]
  %v29 = vld [vmem:[%s0 + $0x30] sm:$0xff]
  %v30 = vld [vmem:[%s0 + $0x38] sm:$0xff]
  %v31 = vld [vmem:[%s0 + $0x40] sm:$0xff]
  %v32 = vld [vmem:[%s0 + $0x48] sm:$0xff]
  %v33 = vld [vmem:[%s0 + $0x50] sm:$0xff]
  %v34 = vld [vmem:[%s0 + $0x58] sm:$0xff]
  %v35 = vld [vmem:[%s0 + $0x60] sm:$0xff]
  %v36 = vld [vmem:[%s0 + $0x68] sm:$0xff]
  %v37 = vld [vmem:[%s0 + $0x70] sm:$0xff]
  %v38 = vld [vmem:[%s0 + $0x78] sm:$0xff]
  %v39 = vld [vmem:[%s1] sm:$0x1]
  %v40 = vld [vmem:[%s2] sm:$0x1]
  %vm41 = vcmask 261120
  %v42 = vsel %vm41, %v23, 0.0
  %43 = vadd.xlane.f32.xlu0 %v42
  %v44 = vpop.xlane.xlu0 %43
  %v45 = vsel %vm41, %v24, 0.0
  %46 = vadd.xlane.f32.xlu0 %v45
  %v47 = vpop.xlane.xlu0 %46
  %v48 = vsel %vm41, %v25, 0.0
  %49 = vadd.xlane.f32.xlu0 %v48
  %v50 = vpop.xlane.xlu0 %49
  %v51 = vsel %vm41, %v26, 0.0
  %52 = vadd.xlane.f32.xlu0 %v51
  %v53 = vpop.xlane.xlu0 %52
  %v54 = vsel %vm41, %v27, 0.0
  %55 = vadd.xlane.f32.xlu0 %v54
  %v56 = vpop.xlane.xlu0 %55
  %v57 = vsel %vm41, %v28, 0.0
  %58 = vadd.xlane.f32.xlu0 %v57
  %v59 = vpop.xlane.xlu0 %58
  %v60 = vsel %vm41, %v29, 0.0
  %61 = vadd.xlane.f32.xlu0 %v60
  %v62 = vpop.xlane.xlu0 %61
  %v63 = vsel %vm41, %v30, 0.0
  %64 = vadd.xlane.f32.xlu0 %v63
  %v65 = vpop.xlane.xlu0 %64
  %v66 = vsel %vm41, %v31, 0.0
  %67 = vadd.xlane.f32.xlu0 %v66
  %v68 = vpop.xlane.xlu0 %67
  %v69 = vsel %vm41, %v32, 0.0
  %70 = vadd.xlane.f32.xlu0 %v69
  %v71 = vpop.xlane.xlu0 %70
  %v72 = vsel %vm41, %v33, 0.0
  %73 = vadd.xlane.f32.xlu0 %v72
  %v74 = vpop.xlane.xlu0 %73
  %v75 = vsel %vm41, %v34, 0.0
  %76 = vadd.xlane.f32.xlu0 %v75
  %v77 = vpop.xlane.xlu0 %76
  %v78 = vsel %vm41, %v35, 0.0
  %79 = vadd.xlane.f32.xlu0 %v78
  %v80 = vpop.xlane.xlu0 %79
  %v81 = vsel %vm41, %v36, 0.0
  %82 = vadd.xlane.f32.xlu0 %v81
  %v83 = vpop.xlane.xlu0 %82
  %v84 = vsel %vm41, %v37, 0.0
  %85 = vadd.xlane.f32.xlu0 %v84
  %v86 = vpop.xlane.xlu0 %85
  %v87 = vsel %vm41, %v38, 0.0
  %88 = vadd.xlane.f32.xlu0 %v87
  %v89 = vpop.xlane.xlu0 %88
  %v90 = vrcp.pop 32.0
  %v91 = vmul.f32 32.0, %v90
  %v92 = vsub.f32 1.0, %v91
  %v93 = vmul.f32 %v90, %v92
  %v94 = vadd.f32 %v90, %v93
  %vm95 = vweird.f32 %v90
  %v96 = vsel %vm95, %v90, %v94
  %v97 = vmul.f32 %v44, %v96
  %v98 = vmul.f32 %v47, %v96
  %v99 = vmul.f32 %v50, %v96
  %v100 = vmul.f32 %v53, %v96
  %v101 = vmul.f32 %v56, %v96
  %v102 = vmul.f32 %v59, %v96
  %v103 = vmul.f32 %v62, %v96
  %v104 = vmul.f32 %v65, %v96
  %v105 = vmul.f32 %v68, %v96
  %v106 = vmul.f32 %v71, %v96
  %v107 = vmul.f32 %v74, %v96
  %v108 = vmul.f32 %v77, %v96
  %v109 = vmul.f32 %v80, %v96
  %v110 = vmul.f32 %v83, %v96
  %v111 = vmul.f32 %v86, %v96
  %v112 = vmul.f32 %v89, %v96
  %v113 = vsub.f32 %v23, %v97
  %v114 = vsub.f32 %v24, %v98
  %v115 = vsub.f32 %v25, %v99
  %v116 = vsub.f32 %v26, %v100
  %v117 = vsub.f32 %v27, %v101
  %v118 = vsub.f32 %v28, %v102
  %v119 = vsub.f32 %v29, %v103
  %v120 = vsub.f32 %v30, %v104
  %v121 = vsub.f32 %v31, %v105
  %v122 = vsub.f32 %v32, %v106
  %v123 = vsub.f32 %v33, %v107
  %v124 = vsub.f32 %v34, %v108
  %v125 = vsub.f32 %v35, %v109
  %v126 = vsub.f32 %v36, %v110
  %v127 = vsub.f32 %v37, %v111
  %v128 = vsub.f32 %v38, %v112
  %v129 = vmul.f32 %v113, %v113
  %v130 = vmul.f32 %v114, %v114
  %v131 = vmul.f32 %v115, %v115
  %v132 = vmul.f32 %v116, %v116
  %v133 = vmul.f32 %v117, %v117
  %v134 = vmul.f32 %v118, %v118
  %v135 = vmul.f32 %v119, %v119
  %v136 = vmul.f32 %v120, %v120
  %v137 = vmul.f32 %v121, %v121
  %v138 = vmul.f32 %v122, %v122
  %v139 = vmul.f32 %v123, %v123
  %v140 = vmul.f32 %v124, %v124
  %v141 = vmul.f32 %v125, %v125
  %v142 = vmul.f32 %v126, %v126
  %v143 = vmul.f32 %v127, %v127
  %v144 = vmul.f32 %v128, %v128
  %v145 = vsel %vm41, %v129, 0.0
  %146 = vadd.xlane.f32.xlu0 %v145
  %v147 = vpop.xlane.xlu0 %146
  %v148 = vsel %vm41, %v130, 0.0
  %149 = vadd.xlane.f32.xlu0 %v148
  %v150 = vpop.xlane.xlu0 %149
  %v151 = vsel %vm41, %v131, 0.0
  %152 = vadd.xlane.f32.xlu0 %v151
  %v153 = vpop.xlane.xlu0 %152
  %v154 = vsel %vm41, %v132, 0.0
  %155 = vadd.xlane.f32.xlu0 %v154
  %v156 = vpop.xlane.xlu0 %155
  %v157 = vsel %vm41, %v133, 0.0
  %158 = vadd.xlane.f32.xlu0 %v157
  %v159 = vpop.xlane.xlu0 %158
  %v160 = vsel %vm41, %v134, 0.0
  %161 = vadd.xlane.f32.xlu0 %v160
  %v162 = vpop.xlane.xlu0 %161
  %v163 = vsel %vm41, %v135, 0.0
  %164 = vadd.xlane.f32.xlu0 %v163
  %v165 = vpop.xlane.xlu0 %164
  %v166 = vsel %vm41, %v136, 0.0
  %167 = vadd.xlane.f32.xlu0 %v166
  %v168 = vpop.xlane.xlu0 %167
  %v169 = vsel %vm41, %v137, 0.0
  %170 = vadd.xlane.f32.xlu0 %v169
  %v171 = vpop.xlane.xlu0 %170
  %v172 = vsel %vm41, %v138, 0.0
  %173 = vadd.xlane.f32.xlu0 %v172
  %v174 = vpop.xlane.xlu0 %173
  %v175 = vsel %vm41, %v139, 0.0
  %176 = vadd.xlane.f32.xlu0 %v175
  %v177 = vpop.xlane.xlu0 %176
  %v178 = vsel %vm41, %v140, 0.0
  %179 = vadd.xlane.f32.xlu0 %v178
  %v180 = vpop.xlane.xlu0 %179
  %v181 = vsel %vm41, %v141, 0.0
  %182 = vadd.xlane.f32.xlu0 %v181
  %v183 = vpop.xlane.xlu0 %182
  %v184 = vsel %vm41, %v142, 0.0
  %185 = vadd.xlane.f32.xlu0 %v184
  %v186 = vpop.xlane.xlu0 %185
  %v187 = vsel %vm41, %v143, 0.0
  %188 = vadd.xlane.f32.xlu0 %v187
  %v189 = vpop.xlane.xlu0 %188
  %v190 = vsel %vm41, %v144, 0.0
  %191 = vadd.xlane.f32.xlu0 %v190
  %v192 = vpop.xlane.xlu0 %191
  %v193 = vmul.f32 %v147, %v96
  %v194 = vmul.f32 %v150, %v96
  %v195 = vmul.f32 %v153, %v96
  %v196 = vmul.f32 %v156, %v96
  %v197 = vmul.f32 %v159, %v96
  %v198 = vmul.f32 %v162, %v96
  %v199 = vmul.f32 %v165, %v96
  %v200 = vmul.f32 %v168, %v96
  %v201 = vmul.f32 %v171, %v96
  %v202 = vmul.f32 %v174, %v96
  %v203 = vmul.f32 %v177, %v96
  %v204 = vmul.f32 %v180, %v96
  %v205 = vmul.f32 %v183, %v96
  %v206 = vmul.f32 %v186, %v96
  %v207 = vmul.f32 %v189, %v96
  %v208 = vmul.f32 %v192, %v96
  %v209 = vadd.f32 %v193, 1e-05
  %v210 = vadd.f32 %v194, 1e-05
  %v211 = vadd.f32 %v195, 1e-05
  %v212 = vadd.f32 %v196, 1e-05
  %v213 = vadd.f32 %v197, 1e-05
  %v214 = vadd.f32 %v198, 1e-05
  %v215 = vadd.f32 %v199, 1e-05
  %v216 = vadd.f32 %v200, 1e-05
  %v217 = vadd.f32 %v201, 1e-05
  %v218 = vadd.f32 %v202, 1e-05
  %v219 = vadd.f32 %v203, 1e-05
  %v220 = vadd.f32 %v204, 1e-05
  %v221 = vadd.f32 %v205, 1e-05
  %v222 = vadd.f32 %v206, 1e-05
  %v223 = vadd.f32 %v207, 1e-05
  %v224 = vadd.f32 %v208, 1e-05
  %v225 = vrsqrt.pop %v209
  %v226 = vmul.f32 %v225, %v209
  %v227 = vmul.f32 %v226, %v225
  %v228 = vmul.f32 0.5, %v227
  %v229 = vsub.f32 1.5, %v228
  %v230 = vmul.f32 %v225, %v229
  %vm231 = vweird.f32 %v209
  %vm232 = vweird.f32 %v225
  %vm233 = vmor %vm231, %vm232
  %v234 = vsel %vm233, %v225, %v230
  %v235 = vrsqrt.pop %v210
  %v236 = vmul.f32 %v235, %v210
  %v237 = vmul.f32 %v236, %v235
  %v238 = vmul.f32 0.5, %v237
  %v239 = vsub.f32 1.5, %v238
  %v240 = vmul.f32 %v235, %v239
  %vm241 = vweird.f32 %v210
  %vm242 = vweird.f32 %v235
  %vm243 = vmor %vm241, %vm242
  %v244 = vsel %vm243, %v235, %v240
  %v245 = vrsqrt.pop %v211
  %v246 = vmul.f32 %v245, %v211
  %v247 = vmul.f32 %v246, %v245
  %v248 = vmul.f32 0.5, %v247
  %v249 = vsub.f32 1.5, %v248
  %v250 = vmul.f32 %v245, %v249
  %vm251 = vweird.f32 %v211
  %vm252 = vweird.f32 %v245
  %vm253 = vmor %vm251, %vm252
  %v254 = vsel %vm253, %v245, %v250
  %v255 = vrsqrt.pop %v212
  %v256 = vmul.f32 %v255, %v212
  %v257 = vmul.f32 %v256, %v255
  %v258 = vmul.f32 0.5, %v257
  %v259 = vsub.f32 1.5, %v258
  %v260 = vmul.f32 %v255, %v259
  %vm261 = vweird.f32 %v212
  %vm262 = vweird.f32 %v255
  %vm263 = vmor %vm261, %vm262
  %v264 = vsel %vm263, %v255, %v260
  %v265 = vrsqrt.pop %v213
  %v266 = vmul.f32 %v265, %v213
  %v267 = vmul.f32 %v266, %v265
  %v268 = vmul.f32 0.5, %v267
  %v269 = vsub.f32 1.5, %v268
  %v270 = vmul.f32 %v265, %v269
  %vm271 = vweird.f32 %v213
  %vm272 = vweird.f32 %v265
  %vm273 = vmor %vm271, %vm272
  %v274 = vsel %vm273, %v265, %v270
  %v275 = vrsqrt.pop %v214
  %v276 = vmul.f32 %v275, %v214
  %v277 = vmul.f32 %v276, %v275
  %v278 = vmul.f32 0.5, %v277
  %v279 = vsub.f32 1.5, %v278
  %v280 = vmul.f32 %v275, %v279
  %vm281 = vweird.f32 %v214
  %vm282 = vweird.f32 %v275
  %vm283 = vmor %vm281, %vm282
  %v284 = vsel %vm283, %v275, %v280
  %v285 = vrsqrt.pop %v215
  %v286 = vmul.f32 %v285, %v215
  %v287 = vmul.f32 %v286, %v285
  %v288 = vmul.f32 0.5, %v287
  %v289 = vsub.f32 1.5, %v288
  %v290 = vmul.f32 %v285, %v289
  %vm291 = vweird.f32 %v215
  %vm292 = vweird.f32 %v285
  %vm293 = vmor %vm291, %vm292
  %v294 = vsel %vm293, %v285, %v290
  %v295 = vrsqrt.pop %v216
  %v296 = vmul.f32 %v295, %v216
  %v297 = vmul.f32 %v296, %v295
  %v298 = vmul.f32 0.5, %v297
  %v299 = vsub.f32 1.5, %v298
  %v300 = vmul.f32 %v295, %v299
  %vm301 = vweird.f32 %v216
  %vm302 = vweird.f32 %v295
  %vm303 = vmor %vm301, %vm302
  %v304 = vsel %vm303, %v295, %v300
  %v305 = vrsqrt.pop %v217
  %v306 = vmul.f32 %v305, %v217
  %v307 = vmul.f32 %v306, %v305
  %v308 = vmul.f32 0.5, %v307
  %v309 = vsub.f32 1.5, %v308
  %v310 = vmul.f32 %v305, %v309
  %vm311 = vweird.f32 %v217
  %vm312 = vweird.f32 %v305
  %vm313 = vmor %vm311, %vm312
  %v314 = vsel %vm313, %v305, %v310
  %v315 = vrsqrt.pop %v218
  %v316 = vmul.f32 %v315, %v218
  %v317 = vmul.f32 %v316, %v315
  %v318 = vmul.f32 0.5, %v317
  %v319 = vsub.f32 1.5, %v318
  %v320 = vmul.f32 %v315, %v319
  %vm321 = vweird.f32 %v218
  %vm322 = vweird.f32 %v315
  %vm323 = vmor %vm321, %vm322
  %v324 = vsel %vm323, %v315, %v320
  %v325 = vrsqrt.pop %v219
  %v326 = vmul.f32 %v325, %v219
  %v327 = vmul.f32 %v326, %v325
  %v328 = vmul.f32 0.5, %v327
  %v329 = vsub.f32 1.5, %v328
  %v330 = vmul.f32 %v325, %v329
  %vm331 = vweird.f32 %v219
  %vm332 = vweird.f32 %v325
  %vm333 = vmor %vm331, %vm332
  %v334 = vsel %vm333, %v325, %v330
  %v335 = vrsqrt.pop %v220
  %v336 = vmul.f32 %v335, %v220
  %v337 = vmul.f32 %v336, %v335
  %v338 = vmul.f32 0.5, %v337
  %v339 = vsub.f32 1.5, %v338
  %v340 = vmul.f32 %v335, %v339
  %vm341 = vweird.f32 %v220
  %vm342 = vweird.f32 %v335
  %vm343 = vmor %vm341, %vm342
  %v344 = vsel %vm343, %v335, %v340
  %v345 = vrsqrt.pop %v221
  %v346 = vmul.f32 %v345, %v221
  %v347 = vmul.f32 %v346, %v345
  %v348 = vmul.f32 0.5, %v347
  %v349 = vsub.f32 1.5, %v348
  %v350 = vmul.f32 %v345, %v349
  %vm351 = vweird.f32 %v221
  %vm352 = vweird.f32 %v345
  %vm353 = vmor %vm351, %vm352
  %v354 = vsel %vm353, %v345, %v350
  %v355 = vrsqrt.pop %v222
  %v356 = vmul.f32 %v355, %v222
  %v357 = vmul.f32 %v356, %v355
  %v358 = vmul.f32 0.5, %v357
  %v359 = vsub.f32 1.5, %v358
  %v360 = vmul.f32 %v355, %v359
  %vm361 = vweird.f32 %v222
  %vm362 = vweird.f32 %v355
  %vm363 = vmor %vm361, %vm362
  %v364 = vsel %vm363, %v355, %v360
  %v365 = vrsqrt.pop %v223
  %v366 = vmul.f32 %v365, %v223
  %v367 = vmul.f32 %v366, %v365
  %v368 = vmul.f32 0.5, %v367
  %v369 = vsub.f32 1.5, %v368
  %v370 = vmul.f32 %v365, %v369
  %vm371 = vweird.f32 %v223
  %vm372 = vweird.f32 %v365
  %vm373 = vmor %vm371, %vm372
  %v374 = vsel %vm373, %v365, %v370
  %v375 = vrsqrt.pop %v224
  %v376 = vmul.f32 %v375, %v224
  %v377 = vmul.f32 %v376, %v375
  %v378 = vmul.f32 0.5, %v377
  %v379 = vsub.f32 1.5, %v378
  %v380 = vmul.f32 %v375, %v379
  %vm381 = vweird.f32 %v224
  %vm382 = vweird.f32 %v375
  %vm383 = vmor %vm381, %vm382
  %v384 = vsel %vm383, %v375, %v380
  %v385 = vmul.f32 %v113, %v234
  %v386 = vmul.f32 %v114, %v244
  %v387 = vmul.f32 %v115, %v254
  %v388 = vmul.f32 %v116, %v264
  %v389 = vmul.f32 %v117, %v274
  %v390 = vmul.f32 %v118, %v284
  %v391 = vmul.f32 %v119, %v294
  %v392 = vmul.f32 %v120, %v304
  %v393 = vmul.f32 %v121, %v314
  %v394 = vmul.f32 %v122, %v324
  %v395 = vmul.f32 %v123, %v334
  %v396 = vmul.f32 %v124, %v344
  %v397 = vmul.f32 %v125, %v354
  %v398 = vmul.f32 %v126, %v364
  %v399 = vmul.f32 %v127, %v374
  %v400 = vmul.f32 %v128, %v384
  %v402 = vperm.slane %v39, 0
  %v404 = vmul.f32 %v385, %v402
  %v405 = vmul.f32 %v386, %v402
  %v406 = vmul.f32 %v387, %v402
  %v407 = vmul.f32 %v388, %v402
  %v408 = vmul.f32 %v389, %v402
  %v409 = vmul.f32 %v390, %v402
  %v410 = vmul.f32 %v391, %v402
  %v411 = vmul.f32 %v392, %v402
  %v412 = vmul.f32 %v393, %v402
  %v413 = vmul.f32 %v394, %v402
  %v414 = vmul.f32 %v395, %v402
  %v415 = vmul.f32 %v396, %v402
  %v416 = vmul.f32 %v397, %v402
  %v417 = vmul.f32 %v398, %v402
  %v418 = vmul.f32 %v399, %v402
  %v419 = vmul.f32 %v400, %v402
  %v421 = vperm.slane %v40, 0
  %v423 = vadd.f32 %v404, %v421
  %v424 = vadd.f32 %v405, %v421
  %v425 = vadd.f32 %v406, %v421
  %v426 = vadd.f32 %v407, %v421
  %v427 = vadd.f32 %v408, %v421
  %v428 = vadd.f32 %v409, %v421
  %v429 = vadd.f32 %v410, %v421
  %v430 = vadd.f32 %v411, %v421
  %v431 = vadd.f32 %v412, %v421
  %v432 = vadd.f32 %v413, %v421
  %v433 = vadd.f32 %v414, %v421
  %v434 = vadd.f32 %v415, %v421
  %v435 = vadd.f32 %v416, %v421
  %v436 = vadd.f32 %v417, %v421
  %v437 = vadd.f32 %v418, %v421
  %v438 = vadd.f32 %v419, %v421
  %v439 = vld [vmem:[%s3] sm:$0xff]
  %v440 = vld [vmem:[%s3 + $0x8] sm:$0xff]
  %v441 = vld [vmem:[%s3 + $0x10] sm:$0xff]
  %v442 = vld [vmem:[%s3 + $0x18] sm:$0xff]
  %v444 = vsel %vm41, %v423, 0
  %v447 = vsel %vm41, %v424, 0
  %v450 = vsel %vm41, %v425, 0
  %v453 = vsel %vm41, %v426, 0
  %v456 = vsel %vm41, %v427, 0
  %v459 = vsel %vm41, %v428, 0
  %v462 = vsel %vm41, %v429, 0
  %v465 = vsel %vm41, %v430, 0
  %v468 = vsel %vm41, %v431, 0
  %v471 = vsel %vm41, %v432, 0
  %v474 = vsel %vm41, %v433, 0
  %v477 = vsel %vm41, %v434, 0
  %v480 = vsel %vm41, %v435, 0
  %v483 = vsel %vm41, %v436, 0
  %v486 = vsel %vm41, %v437, 0
  %v489 = vsel %vm41, %v438, 0
  %491 = vmatpush.msra.mxu0 0.0
  %492 = vmatpush.msra.mxu0 0.0
  %493 = vmatpush.msra.mxu0 0.0
  %494 = vmatpush.msra.mxu0 0.0
  %495 = vmatpush.msra.mxu0 0.0
  %496 = vmatpush.msra.mxu0 0.0
  %497 = vmatpush.msra.mxu0 0.0
  %498 = vmatpush.msra.mxu0 0.0
  %499 = vmatpush.msra.mxu0 0.0
  %500 = vmatpush.msra.mxu0 0.0
  %501 = vmatpush.msra.mxu0 0.0
  %502 = vmatpush.msra.mxu0 0.0
  %503 = vmatpush.msra.mxu0 %v442
  %504 = vmatpush.msra.mxu0 %v441
  %505 = vmatpush.msra.mxu0 %v440
  %506 = vmatpush.msra.mxu0 %v439
  %507 = vmatmul.f32.gmra.mxu0 %v444
  %v508 = vpop.f32.mrf.mxu0
  %v509 = vadd.f32 0.0, %v508
  %510 = vmatmul.f32.gmra.mxu0 %v447
  %v511 = vpop.f32.mrf.mxu0
  %v512 = vadd.f32 0.0, %v511
  %513 = vmatmul.f32.gmra.mxu0 %v450
  %v514 = vpop.f32.mrf.mxu0
  %v515 = vadd.f32 0.0, %v514
  %516 = vmatmul.f32.gmra.mxu0 %v453
  %v517 = vpop.f32.mrf.mxu0
  %v518 = vadd.f32 0.0, %v517
  %519 = vmatmul.f32.gmra.mxu0 %v456
  %v520 = vpop.f32.mrf.mxu0
  %v521 = vadd.f32 0.0, %v520
  %522 = vmatmul.f32.gmra.mxu0 %v459
  %v523 = vpop.f32.mrf.mxu0
  %v524 = vadd.f32 0.0, %v523
  %525 = vmatmul.f32.gmra.mxu0 %v462
  %v526 = vpop.f32.mrf.mxu0
  %v527 = vadd.f32 0.0, %v526
  %528 = vmatmul.f32.gmra.mxu0 %v465
  %v529 = vpop.f32.mrf.mxu0
  %v530 = vadd.f32 0.0, %v529
  %531 = vmatmul.f32.gmra.mxu0 %v468
  %v532 = vpop.f32.mrf.mxu0
  %v533 = vadd.f32 0.0, %v532
  %534 = vmatmul.f32.gmra.mxu0 %v471
  %v535 = vpop.f32.mrf.mxu0
  %v536 = vadd.f32 0.0, %v535
  %537 = vmatmul.f32.gmra.mxu0 %v474
  %v538 = vpop.f32.mrf.mxu0
  %v539 = vadd.f32 0.0, %v538
  %540 = vmatmul.f32.gmra.mxu0 %v477
  %v541 = vpop.f32.mrf.mxu0
  %v542 = vadd.f32 0.0, %v541
  %543 = vmatmul.f32.gmra.mxu0 %v480
  %v544 = vpop.f32.mrf.mxu0
  %v545 = vadd.f32 0.0, %v544
  %546 = vmatmul.f32.gmra.mxu0 %v483
  %v547 = vpop.f32.mrf.mxu0
  %v548 = vadd.f32 0.0, %v547
  %549 = vmatmul.f32.gmra.mxu0 %v486
  %v550 = vpop.f32.mrf.mxu0
  %v551 = vadd.f32 0.0, %v550
  %552 = vmatmul.f32.gmra.mxu0 %v489
  %v553 = vpop.f32.mrf.mxu0
  %v554 = vadd.f32 0.0, %v553
  %555 = vdwg.mxu0
  %557 = vrot.lane.b32.xlu0 %v509, 96
  %v558 = vpop.permute.xlu0 %557
  %vm559 = vcmask 64512
  %v560 = vsel %vm559, %v509, 0
  %v562 = vsel %vm559, %v558, 0
  %564 = vmatpush.xpose.msra.mxu0 0.0
  %565 = vmatpush.xpose.msra.mxu0 0.0
  %566 = vmatpush.xpose.msra.mxu0 0.0
  %567 = vmatpush.xpose.msra.mxu0 0.0
  %568 = vmatpush.xpose.msra.mxu0 0.0
  %569 = vmatpush.xpose.msra.mxu0 0.0
  %570 = vmatpush.xpose.msra.mxu0 0.0
  %571 = vmatpush.xpose.msra.mxu0 0.0
  %572 = vmatpush.xpose.msra.mxu0 0.0
  %573 = vmatpush.xpose.msra.mxu0 0.0
  %574 = vmatpush.xpose.msra.mxu0 0.0
  %575 = vmatpush.xpose.msra.mxu0 0.0
  %576 = vmatpush.xpose.msra.mxu0 0.0
  %577 = vmatpush.xpose.msra.mxu0 0.0
  %578 = vmatpush.xpose.msra.mxu0 0.0
  %579 = vmatpush.xpose.msra.mxu0 %v562
  %580 = vmatmul.f32.gmra.mxu0 %v560
  %v581 = vpop.f32.mrf.mxu0
  %v582 = vadd.f32 0.0, %v581
  %583 = vdwg.mxu0
  %585 = vrot.lane.b32.xlu0 %v512, 96
  %v586 = vpop.permute.xlu0 %585
  %v587 = vsel %vm559, %v512, 0
  %v589 = vsel %vm559, %v586, 0
  %591 = vmatpush.xpose.msra.mxu0 0.0
  %592 = vmatpush.xpose.msra.mxu0 0.0
  %593 = vmatpush.xpose.msra.mxu0 0.0
  %594 = vmatpush.xpose.msra.mxu0 0.0
  %595 = vmatpush.xpose.msra.mxu0 0.0
  %596 = vmatpush.xpose.msra.mxu0 0.0
  %597 = vmatpush.xpose.msra.mxu0 0.0
  %598 = vmatpush.xpose.msra.mxu0 0.0
  %599 = vmatpush.xpose.msra.mxu0 0.0
  %600 = vmatpush.xpose.msra.mxu0 0.0
  %601 = vmatpush.xpose.msra.mxu0 0.0
  %602 = vmatpush.xpose.msra.mxu0 0.0
  %603 = vmatpush.xpose.msra.mxu0 0.0
  %604 = vmatpush.xpose.msra.mxu0 0.0
  %605 = vmatpush.xpose.msra.mxu0 0.0
  %606 = vmatpush.xpose.msra.mxu0 %v589
  %607 = vmatmul.f32.gmra.mxu0 %v587
  %v608 = vpop.f32.mrf.mxu0
  %v609 = vadd.f32 0.0, %v608
  %610 = vdwg.mxu0
  %612 = vrot.lane.b32.xlu0 %v515, 96
  %v613 = vpop.permute.xlu0 %612
  %v614 = vsel %vm559, %v515, 0
  %v616 = vsel %vm559, %v613, 0
  %618 = vmatpush.xpose.msra.mxu0 0.0
  %619 = vmatpush.xpose.msra.mxu0 0.0
  %620 = vmatpush.xpose.msra.mxu0 0.0
  %621 = vmatpush.xpose.msra.mxu0 0.0
  %622 = vmatpush.xpose.msra.mxu0 0.0
  %623 = vmatpush.xpose.msra.mxu0 0.0
  %624 = vmatpush.xpose.msra.mxu0 0.0
  %625 = vmatpush.xpose.msra.mxu0 0.0
  %626 = vmatpush.xpose.msra.mxu0 0.0
  %627 = vmatpush.xpose.msra.mxu0 0.0
  %628 = vmatpush.xpose.msra.mxu0 0.0
  %629 = vmatpush.xpose.msra.mxu0 0.0
  %630 = vmatpush.xpose.msra.mxu0 0.0
  %631 = vmatpush.xpose.msra.mxu0 0.0
  %632 = vmatpush.xpose.msra.mxu0 0.0
  %633 = vmatpush.xpose.msra.mxu0 %v616
  %634 = vmatmul.f32.gmra.mxu0 %v614
  %v635 = vpop.f32.mrf.mxu0
  %v636 = vadd.f32 0.0, %v635
  %637 = vdwg.mxu0
  %639 = vrot.lane.b32.xlu0 %v518, 96
  %v640 = vpop.permute.xlu0 %639
  %v641 = vsel %vm559, %v518, 0
  %v643 = vsel %vm559, %v640, 0
  %645 = vmatpush.xpose.msra.mxu0 0.0
  %646 = vmatpush.xpose.msra.mxu0 0.0
  %647 = vmatpush.xpose.msra.mxu0 0.0
  %648 = vmatpush.xpose.msra.mxu0 0.0
  %649 = vmatpush.xpose.msra.mxu0 0.0
  %650 = vmatpush.xpose.msra.mxu0 0.0
  %651 = vmatpush.xpose.msra.mxu0 0.0
  %652 = vmatpush.xpose.msra.mxu0 0.0
  %653 = vmatpush.xpose.msra.mxu0 0.0
  %654 = vmatpush.xpose.msra.mxu0 0.0
  %655 = vmatpush.xpose.msra.mxu0 0.0
  %656 = vmatpush.xpose.msra.mxu0 0.0
  %657 = vmatpush.xpose.msra.mxu0 0.0
  %658 = vmatpush.xpose.msra.mxu0 0.0
  %659 = vmatpush.xpose.msra.mxu0 0.0
  %660 = vmatpush.xpose.msra.mxu0 %v643
  %661 = vmatmul.f32.gmra.mxu0 %v641
  %v662 = vpop.f32.mrf.mxu0
  %v663 = vadd.f32 0.0, %v662
  %664 = vdwg.mxu0
  %666 = vrot.lane.b32.xlu0 %v521, 96
  %v667 = vpop.permute.xlu0 %666
  %v668 = vsel %vm559, %v521, 0
  %v670 = vsel %vm559, %v667, 0
  %672 = vmatpush.xpose.msra.mxu0 0.0
  %673 = vmatpush.xpose.msra.mxu0 0.0
  %674 = vmatpush.xpose.msra.mxu0 0.0
  %675 = vmatpush.xpose.msra.mxu0 0.0
  %676 = vmatpush.xpose.msra.mxu0 0.0
  %677 = vmatpush.xpose.msra.mxu0 0.0
  %678 = vmatpush.xpose.msra.mxu0 0.0
  %679 = vmatpush.xpose.msra.mxu0 0.0
  %680 = vmatpush.xpose.msra.mxu0 0.0
  %681 = vmatpush.xpose.msra.mxu0 0.0
  %682 = vmatpush.xpose.msra.mxu0 0.0
  %683 = vmatpush.xpose.msra.mxu0 0.0
  %684 = vmatpush.xpose.msra.mxu0 0.0
  %685 = vmatpush.xpose.msra.mxu0 0.0
  %686 = vmatpush.xpose.msra.mxu0 0.0
  %687 = vmatpush.xpose.msra.mxu0 %v670
  %688 = vmatmul.f32.gmra.mxu0 %v668
  %v689 = vpop.f32.mrf.mxu0
  %v690 = vadd.f32 0.0, %v689
  %691 = vdwg.mxu0
  %693 = vrot.lane.b32.xlu0 %v524, 96
  %v694 = vpop.permute.xlu0 %693
  %v695 = vsel %vm559, %v524, 0
  %v697 = vsel %vm559, %v694, 0
  %699 = vmatpush.xpose.msra.mxu0 0.0
  %700 = vmatpush.xpose.msra.mxu0 0.0
  %701 = vmatpush.xpose.msra.mxu0 0.0
  %702 = vmatpush.xpose.msra.mxu0 0.0
  %703 = vmatpush.xpose.msra.mxu0 0.0
  %704 = vmatpush.xpose.msra.mxu0 0.0
  %705 = vmatpush.xpose.msra.mxu0 0.0
  %706 = vmatpush.xpose.msra.mxu0 0.0
  %707 = vmatpush.xpose.msra.mxu0 0.0
  %708 = vmatpush.xpose.msra.mxu0 0.0
  %709 = vmatpush.xpose.msra.mxu0 0.0
  %710 = vmatpush.xpose.msra.mxu0 0.0
  %711 = vmatpush.xpose.msra.mxu0 0.0
  %712 = vmatpush.xpose.msra.mxu0 0.0
  %713 = vmatpush.xpose.msra.mxu0 0.0
  %714 = vmatpush.xpose.msra.mxu0 %v697
  %715 = vmatmul.f32.gmra.mxu0 %v695
  %v716 = vpop.f32.mrf.mxu0
  %v717 = vadd.f32 0.0, %v716
  %718 = vdwg.mxu0
  %720 = vrot.lane.b32.xlu0 %v527, 96
  %v721 = vpop.permute.xlu0 %720
  %v722 = vsel %vm559, %v527, 0
  %v724 = vsel %vm559, %v721, 0
  %726 = vmatpush.xpose.msra.mxu0 0.0
  %727 = vmatpush.xpose.msra.mxu0 0.0
  %728 = vmatpush.xpose.msra.mxu0 0.0
  %729 = vmatpush.xpose.msra.mxu0 0.0
  %730 = vmatpush.xpose.msra.mxu0 0.0
  %731 = vmatpush.xpose.msra.mxu0 0.0
  %732 = vmatpush.xpose.msra.mxu0 0.0
  %733 = vmatpush.xpose.msra.mxu0 0.0
  %734 = vmatpush.xpose.msra.mxu0 0.0
  %735 = vmatpush.xpose.msra.mxu0 0.0
  %736 = vmatpush.xpose.msra.mxu0 0.0
  %737 = vmatpush.xpose.msra.mxu0 0.0
  %738 = vmatpush.xpose.msra.mxu0 0.0
  %739 = vmatpush.xpose.msra.mxu0 0.0
  %740 = vmatpush.xpose.msra.mxu0 0.0
  %741 = vmatpush.xpose.msra.mxu0 %v724
  %742 = vmatmul.f32.gmra.mxu0 %v722
  %v743 = vpop.f32.mrf.mxu0
  %v744 = vadd.f32 0.0, %v743
  %745 = vdwg.mxu0
  %747 = vrot.lane.b32.xlu0 %v530, 96
  %v748 = vpop.permute.xlu0 %747
  %v749 = vsel %vm559, %v530, 0
  %v751 = vsel %vm559, %v748, 0
  %753 = vmatpush.xpose.msra.mxu0 0.0
  %754 = vmatpush.xpose.msra.mxu0 0.0
  %755 = vmatpush.xpose.msra.mxu0 0.0
  %756 = vmatpush.xpose.msra.mxu0 0.0
  %757 = vmatpush.xpose.msra.mxu0 0.0
  %758 = vmatpush.xpose.msra.mxu0 0.0
  %759 = vmatpush.xpose.msra.mxu0 0.0
  %760 = vmatpush.xpose.msra.mxu0 0.0
  %761 = vmatpush.xpose.msra.mxu0 0.0
  %762 = vmatpush.xpose.msra.mxu0 0.0
  %763 = vmatpush.xpose.msra.mxu0 0.0
  %764 = vmatpush.xpose.msra.mxu0 0.0
  %765 = vmatpush.xpose.msra.mxu0 0.0
  %766 = vmatpush.xpose.msra.mxu0 0.0
  %767 = vmatpush.xpose.msra.mxu0 0.0
  %768 = vmatpush.xpose.msra.mxu0 %v751
  %769 = vmatmul.f32.gmra.mxu0 %v749
  %v770 = vpop.f32.mrf.mxu0
  %v771 = vadd.f32 0.0, %v770
  %772 = vdwg.mxu0
  %774 = vrot.lane.b32.xlu0 %v533, 96
  %v775 = vpop.permute.xlu0 %774
  %v776 = vsel %vm559, %v533, 0
  %v778 = vsel %vm559, %v775, 0
  %780 = vmatpush.xpose.msra.mxu0 0.0
  %781 = vmatpush.xpose.msra.mxu0 0.0
  %782 = vmatpush.xpose.msra.mxu0 0.0
  %783 = vmatpush.xpose.msra.mxu0 0.0
  %784 = vmatpush.xpose.msra.mxu0 0.0
  %785 = vmatpush.xpose.msra.mxu0 0.0
  %786 = vmatpush.xpose.msra.mxu0 0.0
  %787 = vmatpush.xpose.msra.mxu0 0.0
  %788 = vmatpush.xpose.msra.mxu0 0.0
  %789 = vmatpush.xpose.msra.mxu0 0.0
  %790 = vmatpush.xpose.msra.mxu0 0.0
  %791 = vmatpush.xpose.msra.mxu0 0.0
  %792 = vmatpush.xpose.msra.mxu0 0.0
  %793 = vmatpush.xpose.msra.mxu0 0.0
  %794 = vmatpush.xpose.msra.mxu0 0.0
  %795 = vmatpush.xpose.msra.mxu0 %v778
  %796 = vmatmul.f32.gmra.mxu0 %v776
  %v797 = vpop.f32.mrf.mxu0
  %v798 = vadd.f32 0.0, %v797
  %799 = vdwg.mxu0
  %801 = vrot.lane.b32.xlu0 %v536, 96
  %v802 = vpop.permute.xlu0 %801
  %v803 = vsel %vm559, %v536, 0
  %v805 = vsel %vm559, %v802, 0
  %807 = vmatpush.xpose.msra.mxu0 0.0
  %808 = vmatpush.xpose.msra.mxu0 0.0
  %809 = vmatpush.xpose.msra.mxu0 0.0
  %810 = vmatpush.xpose.msra.mxu0 0.0
  %811 = vmatpush.xpose.msra.mxu0 0.0
  %812 = vmatpush.xpose.msra.mxu0 0.0
  %813 = vmatpush.xpose.msra.mxu0 0.0
  %814 = vmatpush.xpose.msra.mxu0 0.0
  %815 = vmatpush.xpose.msra.mxu0 0.0
  %816 = vmatpush.xpose.msra.mxu0 0.0
  %817 = vmatpush.xpose.msra.mxu0 0.0
  %818 = vmatpush.xpose.msra.mxu0 0.0
  %819 = vmatpush.xpose.msra.mxu0 0.0
  %820 = vmatpush.xpose.msra.mxu0 0.0
  %821 = vmatpush.xpose.msra.mxu0 0.0
  %822 = vmatpush.xpose.msra.mxu0 %v805
  %823 = vmatmul.f32.gmra.mxu0 %v803
  %v824 = vpop.f32.mrf.mxu0
  %v825 = vadd.f32 0.0, %v824
  %826 = vdwg.mxu0
  %828 = vrot.lane.b32.xlu0 %v539, 96
  %v829 = vpop.permute.xlu0 %828
  %v830 = vsel %vm559, %v539, 0
  %v832 = vsel %vm559, %v829, 0
  %834 = vmatpush.xpose.msra.mxu0 0.0
  %835 = vmatpush.xpose.msra.mxu0 0.0
  %836 = vmatpush.xpose.msra.mxu0 0.0
  %837 = vmatpush.xpose.msra.mxu0 0.0
  %838 = vmatpush.xpose.msra.mxu0 0.0
  %839 = vmatpush.xpose.msra.mxu0 0.0
  %840 = vmatpush.xpose.msra.mxu0 0.0
  %841 = vmatpush.xpose.msra.mxu0 0.0
  %842 = vmatpush.xpose.msra.mxu0 0.0
  %843 = vmatpush.xpose.msra.mxu0 0.0
  %844 = vmatpush.xpose.msra.mxu0 0.0
  %845 = vmatpush.xpose.msra.mxu0 0.0
  %846 = vmatpush.xpose.msra.mxu0 0.0
  %847 = vmatpush.xpose.msra.mxu0 0.0
  %848 = vmatpush.xpose.msra.mxu0 0.0
  %849 = vmatpush.xpose.msra.mxu0 %v832
  %850 = vmatmul.f32.gmra.mxu0 %v830
  %v851 = vpop.f32.mrf.mxu0
  %v852 = vadd.f32 0.0, %v851
  %853 = vdwg.mxu0
  %855 = vrot.lane.b32.xlu0 %v542, 96
  %v856 = vpop.permute.xlu0 %855
  %v857 = vsel %vm559, %v542, 0
  %v859 = vsel %vm559, %v856, 0
  %861 = vmatpush.xpose.msra.mxu0 0.0
  %862 = vmatpush.xpose.msra.mxu0 0.0
  %863 = vmatpush.xpose.msra.mxu0 0.0
  %864 = vmatpush.xpose.msra.mxu0 0.0
  %865 = vmatpush.xpose.msra.mxu0 0.0
  %866 = vmatpush.xpose.msra.mxu0 0.0
  %867 = vmatpush.xpose.msra.mxu0 0.0
  %868 = vmatpush.xpose.msra.mxu0 0.0
  %869 = vmatpush.xpose.msra.mxu0 0.0
  %870 = vmatpush.xpose.msra.mxu0 0.0
  %871 = vmatpush.xpose.msra.mxu0 0.0
  %872 = vmatpush.xpose.msra.mxu0 0.0
  %873 = vmatpush.xpose.msra.mxu0 0.0
  %874 = vmatpush.xpose.msra.mxu0 0.0
  %875 = vmatpush.xpose.msra.mxu0 0.0
  %876 = vmatpush.xpose.msra.mxu0 %v859
  %877 = vmatmul.f32.gmra.mxu0 %v857
  %v878 = vpop.f32.mrf.mxu0
  %v879 = vadd.f32 0.0, %v878
  %880 = vdwg.mxu0
  %882 = vrot.lane.b32.xlu0 %v545, 96
  %v883 = vpop.permute.xlu0 %882
  %v884 = vsel %vm559, %v545, 0
  %v886 = vsel %vm559, %v883, 0
  %888 = vmatpush.xpose.msra.mxu0 0.0
  %889 = vmatpush.xpose.msra.mxu0 0.0
  %890 = vmatpush.xpose.msra.mxu0 0.0
  %891 = vmatpush.xpose.msra.mxu0 0.0
  %892 = vmatpush.xpose.msra.mxu0 0.0
  %893 = vmatpush.xpose.msra.mxu0 0.0
  %894 = vmatpush.xpose.msra.mxu0 0.0
  %895 = vmatpush.xpose.msra.mxu0 0.0
  %896 = vmatpush.xpose.msra.mxu0 0.0
  %897 = vmatpush.xpose.msra.mxu0 0.0
  %898 = vmatpush.xpose.msra.mxu0 0.0
  %899 = vmatpush.xpose.msra.mxu0 0.0
  %900 = vmatpush.xpose.msra.mxu0 0.0
  %901 = vmatpush.xpose.msra.mxu0 0.0
  %902 = vmatpush.xpose.msra.mxu0 0.0
  %903 = vmatpush.xpose.msra.mxu0 %v886
  %904 = vmatmul.f32.gmra.mxu0 %v884
  %v905 = vpop.f32.mrf.mxu0
  %v906 = vadd.f32 0.0, %v905
  %907 = vdwg.mxu0
  %909 = vrot.lane.b32.xlu0 %v548, 96
  %v910 = vpop.permute.xlu0 %909
  %v911 = vsel %vm559, %v548, 0
  %v913 = vsel %vm559, %v910, 0
  %915 = vmatpush.xpose.msra.mxu0 0.0
  %916 = vmatpush.xpose.msra.mxu0 0.0
  %917 = vmatpush.xpose.msra.mxu0 0.0
  %918 = vmatpush.xpose.msra.mxu0 0.0
  %919 = vmatpush.xpose.msra.mxu0 0.0
  %920 = vmatpush.xpose.msra.mxu0 0.0
  %921 = vmatpush.xpose.msra.mxu0 0.0
  %922 = vmatpush.xpose.msra.mxu0 0.0
  %923 = vmatpush.xpose.msra.mxu0 0.0
  %924 = vmatpush.xpose.msra.mxu0 0.0
  %925 = vmatpush.xpose.msra.mxu0 0.0
  %926 = vmatpush.xpose.msra.mxu0 0.0
  %927 = vmatpush.xpose.msra.mxu0 0.0
  %928 = vmatpush.xpose.msra.mxu0 0.0
  %929 = vmatpush.xpose.msra.mxu0 0.0
  %930 = vmatpush.xpose.msra.mxu0 %v913
  %931 = vmatmul.f32.gmra.mxu0 %v911
  %v932 = vpop.f32.mrf.mxu0
  %v933 = vadd.f32 0.0, %v932
  %934 = vdwg.mxu0
  %936 = vrot.lane.b32.xlu0 %v551, 96
  %v937 = vpop.permute.xlu0 %936
  %v938 = vsel %vm559, %v551, 0
  %v940 = vsel %vm559, %v937, 0
  %942 = vmatpush.xpose.msra.mxu0 0.0
  %943 = vmatpush.xpose.msra.mxu0 0.0
  %944 = vmatpush.xpose.msra.mxu0 0.0
  %945 = vmatpush.xpose.msra.mxu0 0.0
  %946 = vmatpush.xpose.msra.mxu0 0.0
  %947 = vmatpush.xpose.msra.mxu0 0.0
  %948 = vmatpush.xpose.msra.mxu0 0.0
  %949 = vmatpush.xpose.msra.mxu0 0.0
  %950 = vmatpush.xpose.msra.mxu0 0.0
  %951 = vmatpush.xpose.msra.mxu0 0.0
  %952 = vmatpush.xpose.msra.mxu0 0.0
  %953 = vmatpush.xpose.msra.mxu0 0.0
  %954 = vmatpush.xpose.msra.mxu0 0.0
  %955 = vmatpush.xpose.msra.mxu0 0.0
  %956 = vmatpush.xpose.msra.mxu0 0.0
  %957 = vmatpush.xpose.msra.mxu0 %v940
  %958 = vmatmul.f32.gmra.mxu0 %v938
  %v959 = vpop.f32.mrf.mxu0
  %v960 = vadd.f32 0.0, %v959
  %961 = vdwg.mxu0
  %963 = vrot.lane.b32.xlu0 %v554, 96
  %v964 = vpop.permute.xlu0 %963
  %v965 = vsel %vm559, %v554, 0
  %v967 = vsel %vm559, %v964, 0
  %969 = vmatpush.xpose.msra.mxu0 0.0
  %970 = vmatpush.xpose.msra.mxu0 0.0
  %971 = vmatpush.xpose.msra.mxu0 0.0
  %972 = vmatpush.xpose.msra.mxu0 0.0
  %973 = vmatpush.xpose.msra.mxu0 0.0
  %974 = vmatpush.xpose.msra.mxu0 0.0
  %975 = vmatpush.xpose.msra.mxu0 0.0
  %976 = vmatpush.xpose.msra.mxu0 0.0
  %977 = vmatpush.xpose.msra.mxu0 0.0
  %978 = vmatpush.xpose.msra.mxu0 0.0
  %979 = vmatpush.xpose.msra.mxu0 0.0
  %980 = vmatpush.xpose.msra.mxu0 0.0
  %981 = vmatpush.xpose.msra.mxu0 0.0
  %982 = vmatpush.xpose.msra.mxu0 0.0
  %983 = vmatpush.xpose.msra.mxu0 0.0
  %984 = vmatpush.xpose.msra.mxu0 %v967
  %985 = vmatmul.f32.gmra.mxu0 %v965
  %v986 = vpop.f32.mrf.mxu0
  %v987 = vadd.f32 0.0, %v986
  %988 = vdwg.mxu0
  %v989 = vmul.f32 %v582, 0.35355338
  %v990 = vmul.f32 %v609, 0.35355338
  %v991 = vmul.f32 %v636, 0.35355338
  %v992 = vmul.f32 %v663, 0.35355338
  %v993 = vmul.f32 %v690, 0.35355338
  %v994 = vmul.f32 %v717, 0.35355338
  %v995 = vmul.f32 %v744, 0.35355338
  %v996 = vmul.f32 %v771, 0.35355338
  %v997 = vmul.f32 %v798, 0.35355338
  %v998 = vmul.f32 %v825, 0.35355338
  %v999 = vmul.f32 %v852, 0.35355338
  %v1000 = vmul.f32 %v879, 0.35355338
  %v1001 = vmul.f32 %v906, 0.35355338
  %v1002 = vmul.f32 %v933, 0.35355338
  %v1003 = vmul.f32 %v960, 0.35355338
  %v1004 = vmul.f32 %v987, 0.35355338
  %v1005 = vsel %vm559, %v989, -inf
  %1006 = vmax.xlane.f32.xlu0 %v1005
  %v1007 = vpop.xlane.xlu0 %1006
  %v1008 = vsel %vm559, %v990, -inf
  %1009 = vmax.xlane.f32.xlu0 %v1008
  %v1010 = vpop.xlane.xlu0 %1009
  %v1011 = vsel %vm559, %v991, -inf
  %1012 = vmax.xlane.f32.xlu0 %v1011
  %v1013 = vpop.xlane.xlu0 %1012
  %v1014 = vsel %vm559, %v992, -inf
  %1015 = vmax.xlane.f32.xlu0 %v1014
  %v1016 = vpop.xlane.xlu0 %1015
  %v1017 = vsel %vm559, %v993, -inf
  %1018 = vmax.xlane.f32.xlu0 %v1017
  %v1019 = vpop.xlane.xlu0 %1018
  %v1020 = vsel %vm559, %v994, -inf
  %1021 = vmax.xlane.f32.xlu0 %v1020
  %v1022 = vpop.xlane.xlu0 %1021
  %v1023 = vsel %vm559, %v995, -inf
  %1024 = vmax.xlane.f32.xlu0 %v1023
  %v1025 = vpop.xlane.xlu0 %1024
  %v1026 = vsel %vm559, %v996, -inf
  %1027 = vmax.xlane.f32.xlu0 %v1026
  %v1028 = vpop.xlane.xlu0 %1027
  %v1029 = vsel %vm559, %v997, -inf
  %1030 = vmax.xlane.f32.xlu0 %v1029
  %v1031 = vpop.xlane.xlu0 %1030
  %v1032 = vsel %vm559, %v998, -inf
  %1033 = vmax.xlane.f32.xlu0 %v1032
  %v1034 = vpop.xlane.xlu0 %1033
  %v1035 = vsel %vm559, %v999, -inf
  %1036 = vmax.xlane.f32.xlu0 %v1035
  %v1037 = vpop.xlane.xlu0 %1036
  %v1038 = vsel %vm559, %v1000, -inf
  %1039 = vmax.xlane.f32.xlu0 %v1038
  %v1040 = vpop.xlane.xlu0 %1039
  %v1041 = vsel %vm559, %v1001, -inf
  %1042 = vmax.xlane.f32.xlu0 %v1041
  %v1043 = vpop.xlane.xlu0 %1042
  %v1044 = vsel %vm559, %v1002, -inf
  %1045 = vmax.xlane.f32.xlu0 %v1044
  %v1046 = vpop.xlane.xlu0 %1045
  %v1047 = vsel %vm559, %v1003, -inf
  %1048 = vmax.xlane.f32.xlu0 %v1047
  %v1049 = vpop.xlane.xlu0 %1048
  %v1050 = vsel %vm559, %v1004, -inf
  %1051 = vmax.xlane.f32.xlu0 %v1050
  %v1052 = vpop.xlane.xlu0 %1051
  %v1053 = vsub.f32 %v989, %v1007
  %v1054 = vsub.f32 %v990, %v1010
  %v1055 = vsub.f32 %v991, %v1013
  %v1056 = vsub.f32 %v992, %v1016
  %v1057 = vsub.f32 %v993, %v1019
  %v1058 = vsub.f32 %v994, %v1022
  %v1059 = vsub.f32 %v995, %v1025
  %v1060 = vsub.f32 %v996, %v1028
  %v1061 = vsub.f32 %v997, %v1031
  %v1062 = vsub.f32 %v998, %v1034
  %v1063 = vsub.f32 %v999, %v1037
  %v1064 = vsub.f32 %v1000, %v1040
  %v1065 = vsub.f32 %v1001, %v1043
  %v1066 = vsub.f32 %v1002, %v1046
  %v1067 = vsub.f32 %v1003, %v1049
  %v1068 = vsub.f32 %v1004, %v1052
  %v1069 = vmul.f32 %v1053, 1.442695
  %v1070 = vpow.pop %v1069
  %v1071 = vmul.f32 %v1054, 1.442695
  %v1072 = vpow.pop %v1071
  %v1073 = vmul.f32 %v1055, 1.442695
  %v1074 = vpow.pop %v1073
  %v1075 = vmul.f32 %v1056, 1.442695
  %v1076 = vpow.pop %v1075
  %v1077 = vmul.f32 %v1057, 1.442695
  %v1078 = vpow.pop %v1077
  %v1079 = vmul.f32 %v1058, 1.442695
  %v1080 = vpow.pop %v1079
  %v1081 = vmul.f32 %v1059, 1.442695
  %v1082 = vpow.pop %v1081
  %v1083 = vmul.f32 %v1060, 1.442695
  %v1084 = vpow.pop %v1083
  %v1085 = vmul.f32 %v1061, 1.442695
  %v1086 = vpow.pop %v1085
  %v1087 = vmul.f32 %v1062, 1.442695
  %v1088 = vpow.pop %v1087
  %v1089 = vmul.f32 %v1063, 1.442695
  %v1090 = vpow.pop %v1089
  %v1091 = vmul.f32 %v1064, 1.442695
  %v1092 = vpow.pop %v1091
  %v1093 = vmul.f32 %v1065, 1.442695
  %v1094 = vpow.pop %v1093
  %v1095 = vmul.f32 %v1066, 1.442695
  %v1096 = vpow.pop %v1095
  %v1097 = vmul.f32 %v1067, 1.442695
  %v1098 = vpow.pop %v1097
  %v1099 = vmul.f32 %v1068, 1.442695
  %v1100 = vpow.pop %v1099
  %v1101 = vsel %vm559, %v1070, 0.0
  %1102 = vadd.xlane.f32.xlu0 %v1101
  %v1103 = vpop.xlane.xlu0 %1102
  %v1104 = vsel %vm559, %v1072, 0.0
  %1105 = vadd.xlane.f32.xlu0 %v1104
  %v1106 = vpop.xlane.xlu0 %1105
  %v1107 = vsel %vm559, %v1074, 0.0
  %1108 = vadd.xlane.f32.xlu0 %v1107
  %v1109 = vpop.xlane.xlu0 %1108
  %v1110 = vsel %vm559, %v1076, 0.0
  %1111 = vadd.xlane.f32.xlu0 %v1110
  %v1112 = vpop.xlane.xlu0 %1111
  %v1113 = vsel %vm559, %v1078, 0.0
  %1114 = vadd.xlane.f32.xlu0 %v1113
  %v1115 = vpop.xlane.xlu0 %1114
  %v1116 = vsel %vm559, %v1080, 0.0
  %1117 = vadd.xlane.f32.xlu0 %v1116
  %v1118 = vpop.xlane.xlu0 %1117
  %v1119 = vsel %vm559, %v1082, 0.0
  %1120 = vadd.xlane.f32.xlu0 %v1119
  %v1121 = vpop.xlane.xlu0 %1120
  %v1122 = vsel %vm559, %v1084, 0.0
  %1123 = vadd.xlane.f32.xlu0 %v1122
  %v1124 = vpop.xlane.xlu0 %1123
  %v1125 = vsel %vm559, %v1086, 0.0
  %1126 = vadd.xlane.f32.xlu0 %v1125
  %v1127 = vpop.xlane.xlu0 %1126
  %v1128 = vsel %vm559, %v1088, 0.0
  %1129 = vadd.xlane.f32.xlu0 %v1128
  %v1130 = vpop.xlane.xlu0 %1129
  %v1131 = vsel %vm559, %v1090, 0.0
  %1132 = vadd.xlane.f32.xlu0 %v1131
  %v1133 = vpop.xlane.xlu0 %1132
  %v1134 = vsel %vm559, %v1092, 0.0
  %1135 = vadd.xlane.f32.xlu0 %v1134
  %v1136 = vpop.xlane.xlu0 %1135
  %v1137 = vsel %vm559, %v1094, 0.0
  %1138 = vadd.xlane.f32.xlu0 %v1137
  %v1139 = vpop.xlane.xlu0 %1138
  %v1140 = vsel %vm559, %v1096, 0.0
  %1141 = vadd.xlane.f32.xlu0 %v1140
  %v1142 = vpop.xlane.xlu0 %1141
  %v1143 = vsel %vm559, %v1098, 0.0
  %1144 = vadd.xlane.f32.xlu0 %v1143
  %v1145 = vpop.xlane.xlu0 %1144
  %v1146 = vsel %vm559, %v1100, 0.0
  %1147 = vadd.xlane.f32.xlu0 %v1146
  %v1148 = vpop.xlane.xlu0 %1147
  %v1149 = vrcp.pop %v1103
  %v1150 = vmul.f32 %v1103, %v1149
  %v1151 = vsub.f32 1.0, %v1150
  %v1152 = vmul.f32 %v1149, %v1151
  %v1153 = vadd.f32 %v1149, %v1152
  %vm1154 = vweird.f32 %v1103
  %vm1155 = vweird.f32 %v1149
  %vm1156 = vmor %vm1154, %vm1155
  %v1157 = vsel %vm1156, %v1149, %v1153
  %v1158 = vand.u32 2147483647, %v1103
  %vm1159 = vcmp.eq.f32.partialorder %v1158, 8.507059e+37
  %v1160 = vand.u32 %v1103, 2147483648
  %v1161 = vor.u32 1.1754944e-38, %v1160
  %v1162 = vsel %vm1159, %v1161, %v1157
  %v1163 = vmul.f32 %v1070, %v1162
  %v1164 = vrcp.pop %v1106
  %v1165 = vmul.f32 %v1106, %v1164
  %v1166 = vsub.f32 1.0, %v1165
  %v1167 = vmul.f32 %v1164, %v1166
  %v1168 = vadd.f32 %v1164, %v1167
  %vm1169 = vweird.f32 %v1106
  %vm1170 = vweird.f32 %v1164
  %vm1171 = vmor %vm1169, %vm1170
  %v1172 = vsel %vm1171, %v1164, %v1168
  %v1173 = vand.u32 2147483647, %v1106
  %vm1174 = vcmp.eq.f32.partialorder %v1173, 8.507059e+37
  %v1175 = vand.u32 %v1106, 2147483648
  %v1176 = vor.u32 1.1754944e-38, %v1175
  %v1177 = vsel %vm1174, %v1176, %v1172
  %v1178 = vmul.f32 %v1072, %v1177
  %v1179 = vrcp.pop %v1109
  %v1180 = vmul.f32 %v1109, %v1179
  %v1181 = vsub.f32 1.0, %v1180
  %v1182 = vmul.f32 %v1179, %v1181
  %v1183 = vadd.f32 %v1179, %v1182
  %vm1184 = vweird.f32 %v1109
  %vm1185 = vweird.f32 %v1179
  %vm1186 = vmor %vm1184, %vm1185
  %v1187 = vsel %vm1186, %v1179, %v1183
  %v1188 = vand.u32 2147483647, %v1109
  %vm1189 = vcmp.eq.f32.partialorder %v1188, 8.507059e+37
  %v1190 = vand.u32 %v1109, 2147483648
  %v1191 = vor.u32 1.1754944e-38, %v1190
  %v1192 = vsel %vm1189, %v1191, %v1187
  %v1193 = vmul.f32 %v1074, %v1192
  %v1194 = vrcp.pop %v1112
  %v1195 = vmul.f32 %v1112, %v1194
  %v1196 = vsub.f32 1.0, %v1195
  %v1197 = vmul.f32 %v1194, %v1196
  %v1198 = vadd.f32 %v1194, %v1197
  %vm1199 = vweird.f32 %v1112
  %vm1200 = vweird.f32 %v1194
  %vm1201 = vmor %vm1199, %vm1200
  %v1202 = vsel %vm1201, %v1194, %v1198
  %v1203 = vand.u32 2147483647, %v1112
  %vm1204 = vcmp.eq.f32.partialorder %v1203, 8.507059e+37
  %v1205 = vand.u32 %v1112, 2147483648
  %v1206 = vor.u32 1.1754944e-38, %v1205
  %v1207 = vsel %vm1204, %v1206, %v1202
  %v1208 = vmul.f32 %v1076, %v1207
  %v1209 = vrcp.pop %v1115
  %v1210 = vmul.f32 %v1115, %v1209
  %v1211 = vsub.f32 1.0, %v1210
  %v1212 = vmul.f32 %v1209, %v1211
  %v1213 = vadd.f32 %v1209, %v1212
  %vm1214 = vweird.f32 %v1115
  %vm1215 = vweird.f32 %v1209
  %vm1216 = vmor %vm1214, %vm1215
  %v1217 = vsel %vm1216, %v1209, %v1213
  %v1218 = vand.u32 2147483647, %v1115
  %vm1219 = vcmp.eq.f32.partialorder %v1218, 8.507059e+37
  %v1220 = vand.u32 %v1115, 2147483648
  %v1221 = vor.u32 1.1754944e-38, %v1220
  %v1222 = vsel %vm1219, %v1221, %v1217
  %v1223 = vmul.f32 %v1078, %v1222
  %v1224 = vrcp.pop %v1118
  %v1225 = vmul.f32 %v1118, %v1224
  %v1226 = vsub.f32 1.0, %v1225
  %v1227 = vmul.f32 %v1224, %v1226
  %v1228 = vadd.f32 %v1224, %v1227
  %vm1229 = vweird.f32 %v1118
  %vm1230 = vweird.f32 %v1224
  %vm1231 = vmor %vm1229, %vm1230
  %v1232 = vsel %vm1231, %v1224, %v1228
  %v1233 = vand.u32 2147483647, %v1118
  %vm1234 = vcmp.eq.f32.partialorder %v1233, 8.507059e+37
  %v1235 = vand.u32 %v1118, 2147483648
  %v1236 = vor.u32 1.1754944e-38, %v1235
  %v1237 = vsel %vm1234, %v1236, %v1232
  %v1238 = vmul.f32 %v1080, %v1237
  %v1239 = vrcp.pop %v1121
  %v1240 = vmul.f32 %v1121, %v1239
  %v1241 = vsub.f32 1.0, %v1240
  %v1242 = vmul.f32 %v1239, %v1241
  %v1243 = vadd.f32 %v1239, %v1242
  %vm1244 = vweird.f32 %v1121
  %vm1245 = vweird.f32 %v1239
  %vm1246 = vmor %vm1244, %vm1245
  %v1247 = vsel %vm1246, %v1239, %v1243
  %v1248 = vand.u32 2147483647, %v1121
  %vm1249 = vcmp.eq.f32.partialorder %v1248, 8.507059e+37
  %v1250 = vand.u32 %v1121, 2147483648
  %v1251 = vor.u32 1.1754944e-38, %v1250
  %v1252 = vsel %vm1249, %v1251, %v1247
  %v1253 = vmul.f32 %v1082, %v1252
  %v1254 = vrcp.pop %v1124
  %v1255 = vmul.f32 %v1124, %v1254
  %v1256 = vsub.f32 1.0, %v1255
  %v1257 = vmul.f32 %v1254, %v1256
  %v1258 = vadd.f32 %v1254, %v1257
  %vm1259 = vweird.f32 %v1124
  %vm1260 = vweird.f32 %v1254
  %vm1261 = vmor %vm1259, %vm1260
  %v1262 = vsel %vm1261, %v1254, %v1258
  %v1263 = vand.u32 2147483647, %v1124
  %vm1264 = vcmp.eq.f32.partialorder %v1263, 8.507059e+37
  %v1265 = vand.u32 %v1124, 2147483648
  %v1266 = vor.u32 1.1754944e-38, %v1265
  %v1267 = vsel %vm1264, %v1266, %v1262
  %v1268 = vmul.f32 %v1084, %v1267
  %v1269 = vrcp.pop %v1127
  %v1270 = vmul.f32 %v1127, %v1269
  %v1271 = vsub.f32 1.0, %v1270
  %v1272 = vmul.f32 %v1269, %v1271
  %v1273 = vadd.f32 %v1269, %v1272
  %vm1274 = vweird.f32 %v1127
  %vm1275 = vweird.f32 %v1269
  %vm1276 = vmor %vm1274, %vm1275
  %v1277 = vsel %vm1276, %v1269, %v1273
  %v1278 = vand.u32 2147483647, %v1127
  %vm1279 = vcmp.eq.f32.partialorder %v1278, 8.507059e+37
  %v1280 = vand.u32 %v1127, 2147483648
  %v1281 = vor.u32 1.1754944e-38, %v1280
  %v1282 = vsel %vm1279, %v1281, %v1277
  %v1283 = vmul.f32 %v1086, %v1282
  %v1284 = vrcp.pop %v1130
  %v1285 = vmul.f32 %v1130, %v1284
  %v1286 = vsub.f32 1.0, %v1285
  %v1287 = vmul.f32 %v1284, %v1286
  %v1288 = vadd.f32 %v1284, %v1287
  %vm1289 = vweird.f32 %v1130
  %vm1290 = vweird.f32 %v1284
  %vm1291 = vmor %vm1289, %vm1290
  %v1292 = vsel %vm1291, %v1284, %v1288
  %v1293 = vand.u32 2147483647, %v1130
  %vm1294 = vcmp.eq.f32.partialorder %v1293, 8.507059e+37
  %v1295 = vand.u32 %v1130, 2147483648
  %v1296 = vor.u32 1.1754944e-38, %v1295
  %v1297 = vsel %vm1294, %v1296, %v1292
  %v1298 = vmul.f32 %v1088, %v1297
  %v1299 = vrcp.pop %v1133
  %v1300 = vmul.f32 %v1133, %v1299
  %v1301 = vsub.f32 1.0, %v1300
  %v1302 = vmul.f32 %v1299, %v1301
  %v1303 = vadd.f32 %v1299, %v1302
  %vm1304 = vweird.f32 %v1133
  %vm1305 = vweird.f32 %v1299
  %vm1306 = vmor %vm1304, %vm1305
  %v1307 = vsel %vm1306, %v1299, %v1303
  %v1308 = vand.u32 2147483647, %v1133
  %vm1309 = vcmp.eq.f32.partialorder %v1308, 8.507059e+37
  %v1310 = vand.u32 %v1133, 2147483648
  %v1311 = vor.u32 1.1754944e-38, %v1310
  %v1312 = vsel %vm1309, %v1311, %v1307
  %v1313 = vmul.f32 %v1090, %v1312
  %v1314 = vrcp.pop %v1136
  %v1315 = vmul.f32 %v1136, %v1314
  %v1316 = vsub.f32 1.0, %v1315
  %v1317 = vmul.f32 %v1314, %v1316
  %v1318 = vadd.f32 %v1314, %v1317
  %vm1319 = vweird.f32 %v1136
  %vm1320 = vweird.f32 %v1314
  %vm1321 = vmor %vm1319, %vm1320
  %v1322 = vsel %vm1321, %v1314, %v1318
  %v1323 = vand.u32 2147483647, %v1136
  %vm1324 = vcmp.eq.f32.partialorder %v1323, 8.507059e+37
  %v1325 = vand.u32 %v1136, 2147483648
  %v1326 = vor.u32 1.1754944e-38, %v1325
  %v1327 = vsel %vm1324, %v1326, %v1322
  %v1328 = vmul.f32 %v1092, %v1327
  %v1329 = vrcp.pop %v1139
  %v1330 = vmul.f32 %v1139, %v1329
  %v1331 = vsub.f32 1.0, %v1330
  %v1332 = vmul.f32 %v1329, %v1331
  %v1333 = vadd.f32 %v1329, %v1332
  %vm1334 = vweird.f32 %v1139
  %vm1335 = vweird.f32 %v1329
  %vm1336 = vmor %vm1334, %vm1335
  %v1337 = vsel %vm1336, %v1329, %v1333
  %v1338 = vand.u32 2147483647, %v1139
  %vm1339 = vcmp.eq.f32.partialorder %v1338, 8.507059e+37
  %v1340 = vand.u32 %v1139, 2147483648
  %v1341 = vor.u32 1.1754944e-38, %v1340
  %v1342 = vsel %vm1339, %v1341, %v1337
  %v1343 = vmul.f32 %v1094, %v1342
  %v1344 = vrcp.pop %v1142
  %v1345 = vmul.f32 %v1142, %v1344
  %v1346 = vsub.f32 1.0, %v1345
  %v1347 = vmul.f32 %v1344, %v1346
  %v1348 = vadd.f32 %v1344, %v1347
  %vm1349 = vweird.f32 %v1142
  %vm1350 = vweird.f32 %v1344
  %vm1351 = vmor %vm1349, %vm1350
  %v1352 = vsel %vm1351, %v1344, %v1348
  %v1353 = vand.u32 2147483647, %v1142
  %vm1354 = vcmp.eq.f32.partialorder %v1353, 8.507059e+37
  %v1355 = vand.u32 %v1142, 2147483648
  %v1356 = vor.u32 1.1754944e-38, %v1355
  %v1357 = vsel %vm1354, %v1356, %v1352
  %v1358 = vmul.f32 %v1096, %v1357
  %v1359 = vrcp.pop %v1145
  %v1360 = vmul.f32 %v1145, %v1359
  %v1361 = vsub.f32 1.0, %v1360
  %v1362 = vmul.f32 %v1359, %v1361
  %v1363 = vadd.f32 %v1359, %v1362
  %vm1364 = vweird.f32 %v1145
  %vm1365 = vweird.f32 %v1359
  %vm1366 = vmor %vm1364, %vm1365
  %v1367 = vsel %vm1366, %v1359, %v1363
  %v1368 = vand.u32 2147483647, %v1145
  %vm1369 = vcmp.eq.f32.partialorder %v1368, 8.507059e+37
  %v1370 = vand.u32 %v1145, 2147483648
  %v1371 = vor.u32 1.1754944e-38, %v1370
  %v1372 = vsel %vm1369, %v1371, %v1367
  %v1373 = vmul.f32 %v1098, %v1372
  %v1374 = vrcp.pop %v1148
  %v1375 = vmul.f32 %v1148, %v1374
  %v1376 = vsub.f32 1.0, %v1375
  %v1377 = vmul.f32 %v1374, %v1376
  %v1378 = vadd.f32 %v1374, %v1377
  %vm1379 = vweird.f32 %v1148
  %vm1380 = vweird.f32 %v1374
  %vm1381 = vmor %vm1379, %vm1380
  %v1382 = vsel %vm1381, %v1374, %v1378
  %v1383 = vand.u32 2147483647, %v1148
  %vm1384 = vcmp.eq.f32.partialorder %v1383, 8.507059e+37
  %v1385 = vand.u32 %v1148, 2147483648
  %v1386 = vor.u32 1.1754944e-38, %v1385
  %v1387 = vsel %vm1384, %v1386, %v1382
  %v1388 = vmul.f32 %v1100, %v1387
  %1389 = vrot.lane.b32.xlu0 %v509, 64
  %v1390 = vpop.permute.xlu0 %1389
  %v1393 = vsel %vm559, %v1163, 0
  %1395 = vmatpush.msra.mxu0 0.0
  %1396 = vmatpush.msra.mxu0 0.0
  %1397 = vmatpush.msra.mxu0 0.0
  %1398 = vmatpush.msra.mxu0 0.0
  %1399 = vmatpush.msra.mxu0 0.0
  %1400 = vmatpush.msra.mxu0 0.0
  %1401 = vmatpush.msra.mxu0 0.0
  %1402 = vmatpush.msra.mxu0 0.0
  %1403 = vmatpush.msra.mxu0 0.0
  %1404 = vmatpush.msra.mxu0 0.0
  %1405 = vmatpush.msra.mxu0 0.0
  %1406 = vmatpush.msra.mxu0 0.0
  %1407 = vmatpush.msra.mxu0 0.0
  %1408 = vmatpush.msra.mxu0 0.0
  %1409 = vmatpush.msra.mxu0 0.0
  %1410 = vmatpush.msra.mxu0 %v1390
  %1411 = vmatmul.f32.gmra.mxu0 %v1393
  %v1412 = vpop.f32.mrf.mxu0
  %v1413 = vadd.f32 0.0, %v1412
  %1414 = vdwg.mxu0
  %1415 = vrot.lane.b32.xlu0 %v512, 64
  %v1416 = vpop.permute.xlu0 %1415
  %v1419 = vsel %vm559, %v1178, 0
  %1421 = vmatpush.msra.mxu0 0.0
  %1422 = vmatpush.msra.mxu0 0.0
  %1423 = vmatpush.msra.mxu0 0.0
  %1424 = vmatpush.msra.mxu0 0.0
  %1425 = vmatpush.msra.mxu0 0.0
  %1426 = vmatpush.msra.mxu0 0.0
  %1427 = vmatpush.msra.mxu0 0.0
  %1428 = vmatpush.msra.mxu0 0.0
  %1429 = vmatpush.msra.mxu0 0.0
  %1430 = vmatpush.msra.mxu0 0.0
  %1431 = vmatpush.msra.mxu0 0.0
  %1432 = vmatpush.msra.mxu0 0.0
  %1433 = vmatpush.msra.mxu0 0.0
  %1434 = vmatpush.msra.mxu0 0.0
  %1435 = vmatpush.msra.mxu0 0.0
  %1436 = vmatpush.msra.mxu0 %v1416
  %1437 = vmatmul.f32.gmra.mxu0 %v1419
  %v1438 = vpop.f32.mrf.mxu0
  %v1439 = vadd.f32 0.0, %v1438
  %1440 = vdwg.mxu0
  %1441 = vrot.lane.b32.xlu0 %v515, 64
  %v1442 = vpop.permute.xlu0 %1441
  %v1445 = vsel %vm559, %v1193, 0
  %1447 = vmatpush.msra.mxu0 0.0
  %1448 = vmatpush.msra.mxu0 0.0
  %1449 = vmatpush.msra.mxu0 0.0
  %1450 = vmatpush.msra.mxu0 0.0
  %1451 = vmatpush.msra.mxu0 0.0
  %1452 = vmatpush.msra.mxu0 0.0
  %1453 = vmatpush.msra.mxu0 0.0
  %1454 = vmatpush.msra.mxu0 0.0
  %1455 = vmatpush.msra.mxu0 0.0
  %1456 = vmatpush.msra.mxu0 0.0
  %1457 = vmatpush.msra.mxu0 0.0
  %1458 = vmatpush.msra.mxu0 0.0
  %1459 = vmatpush.msra.mxu0 0.0
  %1460 = vmatpush.msra.mxu0 0.0
  %1461 = vmatpush.msra.mxu0 0.0
  %1462 = vmatpush.msra.mxu0 %v1442
  %1463 = vmatmul.f32.gmra.mxu0 %v1445
  %v1464 = vpop.f32.mrf.mxu0
  %v1465 = vadd.f32 0.0, %v1464
  %1466 = vdwg.mxu0
  %1467 = vrot.lane.b32.xlu0 %v518, 64
  %v1468 = vpop.permute.xlu0 %1467
  %v1471 = vsel %vm559, %v1208, 0
  %1473 = vmatpush.msra.mxu0 0.0
  %1474 = vmatpush.msra.mxu0 0.0
  %1475 = vmatpush.msra.mxu0 0.0
  %1476 = vmatpush.msra.mxu0 0.0
  %1477 = vmatpush.msra.mxu0 0.0
  %1478 = vmatpush.msra.mxu0 0.0
  %1479 = vmatpush.msra.mxu0 0.0
  %1480 = vmatpush.msra.mxu0 0.0
  %1481 = vmatpush.msra.mxu0 0.0
  %1482 = vmatpush.msra.mxu0 0.0
  %1483 = vmatpush.msra.mxu0 0.0
  %1484 = vmatpush.msra.mxu0 0.0
  %1485 = vmatpush.msra.mxu0 0.0
  %1486 = vmatpush.msra.mxu0 0.0
  %1487 = vmatpush.msra.mxu0 0.0
  %1488 = vmatpush.msra.mxu0 %v1468
  %1489 = vmatmul.f32.gmra.mxu0 %v1471
  %v1490 = vpop.f32.mrf.mxu0
  %v1491 = vadd.f32 0.0, %v1490
  %1492 = vdwg.mxu0
  %1493 = vrot.lane.b32.xlu0 %v521, 64
  %v1494 = vpop.permute.xlu0 %1493
  %v1497 = vsel %vm559, %v1223, 0
  %1499 = vmatpush.msra.mxu0 0.0
  %1500 = vmatpush.msra.mxu0 0.0
  %1501 = vmatpush.msra.mxu0 0.0
  %1502 = vmatpush.msra.mxu0 0.0
  %1503 = vmatpush.msra.mxu0 0.0
  %1504 = vmatpush.msra.mxu0 0.0
  %1505 = vmatpush.msra.mxu0 0.0
  %1506 = vmatpush.msra.mxu0 0.0
  %1507 = vmatpush.msra.mxu0 0.0
  %1508 = vmatpush.msra.mxu0 0.0
  %1509 = vmatpush.msra.mxu0 0.0
  %1510 = vmatpush.msra.mxu0 0.0
  %1511 = vmatpush.msra.mxu0 0.0
  %1512 = vmatpush.msra.mxu0 0.0
  %1513 = vmatpush.msra.mxu0 0.0
  %1514 = vmatpush.msra.mxu0 %v1494
  %1515 = vmatmul.f32.gmra.mxu0 %v1497
  %v1516 = vpop.f32.mrf.mxu0
  %v1517 = vadd.f32 0.0, %v1516
  %1518 = vdwg.mxu0
  %1519 = vrot.lane.b32.xlu0 %v524, 64
  %v1520 = vpop.permute.xlu0 %1519
  %v1523 = vsel %vm559, %v1238, 0
  %1525 = vmatpush.msra.mxu0 0.0
  %1526 = vmatpush.msra.mxu0 0.0
  %1527 = vmatpush.msra.mxu0 0.0
  %1528 = vmatpush.msra.mxu0 0.0
  %1529 = vmatpush.msra.mxu0 0.0
  %1530 = vmatpush.msra.mxu0 0.0
  %1531 = vmatpush.msra.mxu0 0.0
  %1532 = vmatpush.msra.mxu0 0.0
  %1533 = vmatpush.msra.mxu0 0.0
  %1534 = vmatpush.msra.mxu0 0.0
  %1535 = vmatpush.msra.mxu0 0.0
  %1536 = vmatpush.msra.mxu0 0.0
  %1537 = vmatpush.msra.mxu0 0.0
  %1538 = vmatpush.msra.mxu0 0.0
  %1539 = vmatpush.msra.mxu0 0.0
  %1540 = vmatpush.msra.mxu0 %v1520
  %1541 = vmatmul.f32.gmra.mxu0 %v1523
  %v1542 = vpop.f32.mrf.mxu0
  %v1543 = vadd.f32 0.0, %v1542
  %1544 = vdwg.mxu0
  %1545 = vrot.lane.b32.xlu0 %v527, 64
  %v1546 = vpop.permute.xlu0 %1545
  %v1549 = vsel %vm559, %v1253, 0
  %1551 = vmatpush.msra.mxu0 0.0
  %1552 = vmatpush.msra.mxu0 0.0
  %1553 = vmatpush.msra.mxu0 0.0
  %1554 = vmatpush.msra.mxu0 0.0
  %1555 = vmatpush.msra.mxu0 0.0
  %1556 = vmatpush.msra.mxu0 0.0
  %1557 = vmatpush.msra.mxu0 0.0
  %1558 = vmatpush.msra.mxu0 0.0
  %1559 = vmatpush.msra.mxu0 0.0
  %1560 = vmatpush.msra.mxu0 0.0
  %1561 = vmatpush.msra.mxu0 0.0
  %1562 = vmatpush.msra.mxu0 0.0
  %1563 = vmatpush.msra.mxu0 0.0
  %1564 = vmatpush.msra.mxu0 0.0
  %1565 = vmatpush.msra.mxu0 0.0
  %1566 = vmatpush.msra.mxu0 %v1546
  %1567 = vmatmul.f32.gmra.mxu0 %v1549
  %v1568 = vpop.f32.mrf.mxu0
  %v1569 = vadd.f32 0.0, %v1568
  %1570 = vdwg.mxu0
  %1571 = vrot.lane.b32.xlu0 %v530, 64
  %v1572 = vpop.permute.xlu0 %1571
  %v1575 = vsel %vm559, %v1268, 0
  %1577 = vmatpush.msra.mxu0 0.0
  %1578 = vmatpush.msra.mxu0 0.0
  %1579 = vmatpush.msra.mxu0 0.0
  %1580 = vmatpush.msra.mxu0 0.0
  %1581 = vmatpush.msra.mxu0 0.0
  %1582 = vmatpush.msra.mxu0 0.0
  %1583 = vmatpush.msra.mxu0 0.0
  %1584 = vmatpush.msra.mxu0 0.0
  %1585 = vmatpush.msra.mxu0 0.0
  %1586 = vmatpush.msra.mxu0 0.0
  %1587 = vmatpush.msra.mxu0 0.0
  %1588 = vmatpush.msra.mxu0 0.0
  %1589 = vmatpush.msra.mxu0 0.0
  %1590 = vmatpush.msra.mxu0 0.0
  %1591 = vmatpush.msra.mxu0 0.0
  %1592 = vmatpush.msra.mxu0 %v1572
  %1593 = vmatmul.f32.gmra.mxu0 %v1575
  %v1594 = vpop.f32.mrf.mxu0
  %v1595 = vadd.f32 0.0, %v1594
  %1596 = vdwg.mxu0
  %1597 = vrot.lane.b32.xlu0 %v533, 64
  %v1598 = vpop.permute.xlu0 %1597
  %v1601 = vsel %vm559, %v1283, 0
  %1603 = vmatpush.msra.mxu0 0.0
  %1604 = vmatpush.msra.mxu0 0.0
  %1605 = vmatpush.msra.mxu0 0.0
  %1606 = vmatpush.msra.mxu0 0.0
  %1607 = vmatpush.msra.mxu0 0.0
  %1608 = vmatpush.msra.mxu0 0.0
  %1609 = vmatpush.msra.mxu0 0.0
  %1610 = vmatpush.msra.mxu0 0.0
  %1611 = vmatpush.msra.mxu0 0.0
  %1612 = vmatpush.msra.mxu0 0.0
  %1613 = vmatpush.msra.mxu0 0.0
  %1614 = vmatpush.msra.mxu0 0.0
  %1615 = vmatpush.msra.mxu0 0.0
  %1616 = vmatpush.msra.mxu0 0.0
  %1617 = vmatpush.msra.mxu0 0.0
  %1618 = vmatpush.msra.mxu0 %v1598
  %1619 = vmatmul.f32.gmra.mxu0 %v1601
  %v1620 = vpop.f32.mrf.mxu0
  %v1621 = vadd.f32 0.0, %v1620
  %1622 = vdwg.mxu0
  %1623 = vrot.lane.b32.xlu0 %v536, 64
  %v1624 = vpop.permute.xlu0 %1623
  %v1627 = vsel %vm559, %v1298, 0
  %1629 = vmatpush.msra.mxu0 0.0
  %1630 = vmatpush.msra.mxu0 0.0
  %1631 = vmatpush.msra.mxu0 0.0
  %1632 = vmatpush.msra.mxu0 0.0
  %1633 = vmatpush.msra.mxu0 0.0
  %1634 = vmatpush.msra.mxu0 0.0
  %1635 = vmatpush.msra.mxu0 0.0
  %1636 = vmatpush.msra.mxu0 0.0
  %1637 = vmatpush.msra.mxu0 0.0
  %1638 = vmatpush.msra.mxu0 0.0
  %1639 = vmatpush.msra.mxu0 0.0
  %1640 = vmatpush.msra.mxu0 0.0
  %1641 = vmatpush.msra.mxu0 0.0
  %1642 = vmatpush.msra.mxu0 0.0
  %1643 = vmatpush.msra.mxu0 0.0
  %1644 = vmatpush.msra.mxu0 %v1624
  %1645 = vmatmul.f32.gmra.mxu0 %v1627
  %v1646 = vpop.f32.mrf.mxu0
  %v1647 = vadd.f32 0.0, %v1646
  %1648 = vdwg.mxu0
  %1649 = vrot.lane.b32.xlu0 %v539, 64
  %v1650 = vpop.permute.xlu0 %1649
  %v1653 = vsel %vm559, %v1313, 0
  %1655 = vmatpush.msra.mxu0 0.0
  %1656 = vmatpush.msra.mxu0 0.0
  %1657 = vmatpush.msra.mxu0 0.0
  %1658 = vmatpush.msra.mxu0 0.0
  %1659 = vmatpush.msra.mxu0 0.0
  %1660 = vmatpush.msra.mxu0 0.0
  %1661 = vmatpush.msra.mxu0 0.0
  %1662 = vmatpush.msra.mxu0 0.0
  %1663 = vmatpush.msra.mxu0 0.0
  %1664 = vmatpush.msra.mxu0 0.0
  %1665 = vmatpush.msra.mxu0 0.0
  %1666 = vmatpush.msra.mxu0 0.0
  %1667 = vmatpush.msra.mxu0 0.0
  %1668 = vmatpush.msra.mxu0 0.0
  %1669 = vmatpush.msra.mxu0 0.0
  %1670 = vmatpush.msra.mxu0 %v1650
  %1671 = vmatmul.f32.gmra.mxu0 %v1653
  %v1672 = vpop.f32.mrf.mxu0
  %v1673 = vadd.f32 0.0, %v1672
  %1674 = vdwg.mxu0
  %1675 = vrot.lane.b32.xlu0 %v542, 64
  %v1676 = vpop.permute.xlu0 %1675
  %v1679 = vsel %vm559, %v1328, 0
  %1681 = vmatpush.msra.mxu0 0.0
  %1682 = vmatpush.msra.mxu0 0.0
  %1683 = vmatpush.msra.mxu0 0.0
  %1684 = vmatpush.msra.mxu0 0.0
  %1685 = vmatpush.msra.mxu0 0.0
  %1686 = vmatpush.msra.mxu0 0.0
  %1687 = vmatpush.msra.mxu0 0.0
  %1688 = vmatpush.msra.mxu0 0.0
  %1689 = vmatpush.msra.mxu0 0.0
  %1690 = vmatpush.msra.mxu0 0.0
  %1691 = vmatpush.msra.mxu0 0.0
  %1692 = vmatpush.msra.mxu0 0.0
  %1693 = vmatpush.msra.mxu0 0.0
  %1694 = vmatpush.msra.mxu0 0.0
  %1695 = vmatpush.msra.mxu0 0.0
  %1696 = vmatpush.msra.mxu0 %v1676
  %1697 = vmatmul.f32.gmra.mxu0 %v1679
  %v1698 = vpop.f32.mrf.mxu0
  %v1699 = vadd.f32 0.0, %v1698
  %1700 = vdwg.mxu0
  %1701 = vrot.lane.b32.xlu0 %v545, 64
  %v1702 = vpop.permute.xlu0 %1701
  %v1705 = vsel %vm559, %v1343, 0
  %1707 = vmatpush.msra.mxu0 0.0
  %1708 = vmatpush.msra.mxu0 0.0
  %1709 = vmatpush.msra.mxu0 0.0
  %1710 = vmatpush.msra.mxu0 0.0
  %1711 = vmatpush.msra.mxu0 0.0
  %1712 = vmatpush.msra.mxu0 0.0
  %1713 = vmatpush.msra.mxu0 0.0
  %1714 = vmatpush.msra.mxu0 0.0
  %1715 = vmatpush.msra.mxu0 0.0
  %1716 = vmatpush.msra.mxu0 0.0
  %1717 = vmatpush.msra.mxu0 0.0
  %1718 = vmatpush.msra.mxu0 0.0
  %1719 = vmatpush.msra.mxu0 0.0
  %1720 = vmatpush.msra.mxu0 0.0
  %1721 = vmatpush.msra.mxu0 0.0
  %1722 = vmatpush.msra.mxu0 %v1702
  %1723 = vmatmul.f32.gmra.mxu0 %v1705
  %v1724 = vpop.f32.mrf.mxu0
  %v1725 = vadd.f32 0.0, %v1724
  %1726 = vdwg.mxu0
  %1727 = vrot.lane.b32.xlu0 %v548, 64
  %v1728 = vpop.permute.xlu0 %1727
  %v1731 = vsel %vm559, %v1358, 0
  %1733 = vmatpush.msra.mxu0 0.0
  %1734 = vmatpush.msra.mxu0 0.0
  %1735 = vmatpush.msra.mxu0 0.0
  %1736 = vmatpush.msra.mxu0 0.0
  %1737 = vmatpush.msra.mxu0 0.0
  %1738 = vmatpush.msra.mxu0 0.0
  %1739 = vmatpush.msra.mxu0 0.0
  %1740 = vmatpush.msra.mxu0 0.0
  %1741 = vmatpush.msra.mxu0 0.0
  %1742 = vmatpush.msra.mxu0 0.0
  %1743 = vmatpush.msra.mxu0 0.0
  %1744 = vmatpush.msra.mxu0 0.0
  %1745 = vmatpush.msra.mxu0 0.0
  %1746 = vmatpush.msra.mxu0 0.0
  %1747 = vmatpush.msra.mxu0 0.0
  %1748 = vmatpush.msra.mxu0 %v1728
  %1749 = vmatmul.f32.gmra.mxu0 %v1731
  %v1750 = vpop.f32.mrf.mxu0
  %v1751 = vadd.f32 0.0, %v1750
  %1752 = vdwg.mxu0
  %1753 = vrot.lane.b32.xlu0 %v551, 64
  %v1754 = vpop.permute.xlu0 %1753
  %v1757 = vsel %vm559, %v1373, 0
  %1759 = vmatpush.msra.mxu0 0.0
  %1760 = vmatpush.msra.mxu0 0.0
  %1761 = vmatpush.msra.mxu0 0.0
  %1762 = vmatpush.msra.mxu0 0.0
  %1763 = vmatpush.msra.mxu0 0.0
  %1764 = vmatpush.msra.mxu0 0.0
  %1765 = vmatpush.msra.mxu0 0.0
  %1766 = vmatpush.msra.mxu0 0.0
  %1767 = vmatpush.msra.mxu0 0.0
  %1768 = vmatpush.msra.mxu0 0.0
  %1769 = vmatpush.msra.mxu0 0.0
  %1770 = vmatpush.msra.mxu0 0.0
  %1771 = vmatpush.msra.mxu0 0.0
  %1772 = vmatpush.msra.mxu0 0.0
  %1773 = vmatpush.msra.mxu0 0.0
  %1774 = vmatpush.msra.mxu0 %v1754
  %1775 = vmatmul.f32.gmra.mxu0 %v1757
  %v1776 = vpop.f32.mrf.mxu0
  %v1777 = vadd.f32 0.0, %v1776
  %1778 = vdwg.mxu0
  %1779 = vrot.lane.b32.xlu0 %v554, 64
  %v1780 = vpop.permute.xlu0 %1779
  %v1783 = vsel %vm559, %v1388, 0
  %1785 = vmatpush.msra.mxu0 0.0
  %1786 = vmatpush.msra.mxu0 0.0
  %1787 = vmatpush.msra.mxu0 0.0
  %1788 = vmatpush.msra.mxu0 0.0
  %1789 = vmatpush.msra.mxu0 0.0
  %1790 = vmatpush.msra.mxu0 0.0
  %1791 = vmatpush.msra.mxu0 0.0
  %1792 = vmatpush.msra.mxu0 0.0
  %1793 = vmatpush.msra.mxu0 0.0
  %1794 = vmatpush.msra.mxu0 0.0
  %1795 = vmatpush.msra.mxu0 0.0
  %1796 = vmatpush.msra.mxu0 0.0
  %1797 = vmatpush.msra.mxu0 0.0
  %1798 = vmatpush.msra.mxu0 0.0
  %1799 = vmatpush.msra.mxu0 0.0
  %1800 = vmatpush.msra.mxu0 %v1780
  %1801 = vmatmul.f32.gmra.mxu0 %v1783
  %v1802 = vpop.f32.mrf.mxu0
  %v1803 = vadd.f32 0.0, %v1802
  %1804 = vdwg.mxu0
  %1805 = vrot.lane.b32.xlu0 %v509, 120
  %v1806 = vpop.permute.xlu0 %1805
  %1807 = vrot.lane.b32.xlu0 %v509, 88
  %v1808 = vpop.permute.xlu0 %1807
  %v1809 = vsel %vm559, %v1806, 0
  %v1811 = vsel %vm559, %v1808, 0
  %1813 = vmatpush.xpose.msra.mxu0 0.0
  %1814 = vmatpush.xpose.msra.mxu0 0.0
  %1815 = vmatpush.xpose.msra.mxu0 0.0
  %1816 = vmatpush.xpose.msra.mxu0 0.0
  %1817 = vmatpush.xpose.msra.mxu0 0.0
  %1818 = vmatpush.xpose.msra.mxu0 0.0
  %1819 = vmatpush.xpose.msra.mxu0 0.0
  %1820 = vmatpush.xpose.msra.mxu0 0.0
  %1821 = vmatpush.xpose.msra.mxu0 0.0
  %1822 = vmatpush.xpose.msra.mxu0 0.0
  %1823 = vmatpush.xpose.msra.mxu0 0.0
  %1824 = vmatpush.xpose.msra.mxu0 0.0
  %1825 = vmatpush.xpose.msra.mxu0 0.0
  %1826 = vmatpush.xpose.msra.mxu0 0.0
  %1827 = vmatpush.xpose.msra.mxu0 0.0
  %1828 = vmatpush.xpose.msra.mxu0 %v1811
  %1829 = vmatmul.f32.gmra.mxu0 %v1809
  %v1830 = vpop.f32.mrf.mxu0
  %v1831 = vadd.f32 0.0, %v1830
  %1832 = vdwg.mxu0
  %1833 = vrot.lane.b32.xlu0 %v512, 120
  %v1834 = vpop.permute.xlu0 %1833
  %1835 = vrot.lane.b32.xlu0 %v512, 88
  %v1836 = vpop.permute.xlu0 %1835
  %v1837 = vsel %vm559, %v1834, 0
  %v1839 = vsel %vm559, %v1836, 0
  %1841 = vmatpush.xpose.msra.mxu0 0.0
  %1842 = vmatpush.xpose.msra.mxu0 0.0
  %1843 = vmatpush.xpose.msra.mxu0 0.0
  %1844 = vmatpush.xpose.msra.mxu0 0.0
  %1845 = vmatpush.xpose.msra.mxu0 0.0
  %1846 = vmatpush.xpose.msra.mxu0 0.0
  %1847 = vmatpush.xpose.msra.mxu0 0.0
  %1848 = vmatpush.xpose.msra.mxu0 0.0
  %1849 = vmatpush.xpose.msra.mxu0 0.0
  %1850 = vmatpush.xpose.msra.mxu0 0.0
  %1851 = vmatpush.xpose.msra.mxu0 0.0
  %1852 = vmatpush.xpose.msra.mxu0 0.0
  %1853 = vmatpush.xpose.msra.mxu0 0.0
  %1854 = vmatpush.xpose.msra.mxu0 0.0
  %1855 = vmatpush.xpose.msra.mxu0 0.0
  %1856 = vmatpush.xpose.msra.mxu0 %v1839
  %1857 = vmatmul.f32.gmra.mxu0 %v1837
  %v1858 = vpop.f32.mrf.mxu0
  %v1859 = vadd.f32 0.0, %v1858
  %1860 = vdwg.mxu0
  %1861 = vrot.lane.b32.xlu0 %v515, 120
  %v1862 = vpop.permute.xlu0 %1861
  %1863 = vrot.lane.b32.xlu0 %v515, 88
  %v1864 = vpop.permute.xlu0 %1863
  %v1865 = vsel %vm559, %v1862, 0
  %v1867 = vsel %vm559, %v1864, 0
  %1869 = vmatpush.xpose.msra.mxu0 0.0
  %1870 = vmatpush.xpose.msra.mxu0 0.0
  %1871 = vmatpush.xpose.msra.mxu0 0.0
  %1872 = vmatpush.xpose.msra.mxu0 0.0
  %1873 = vmatpush.xpose.msra.mxu0 0.0
  %1874 = vmatpush.xpose.msra.mxu0 0.0
  %1875 = vmatpush.xpose.msra.mxu0 0.0
  %1876 = vmatpush.xpose.msra.mxu0 0.0
  %1877 = vmatpush.xpose.msra.mxu0 0.0
  %1878 = vmatpush.xpose.msra.mxu0 0.0
  %1879 = vmatpush.xpose.msra.mxu0 0.0
  %1880 = vmatpush.xpose.msra.mxu0 0.0
  %1881 = vmatpush.xpose.msra.mxu0 0.0
  %1882 = vmatpush.xpose.msra.mxu0 0.0
  %1883 = vmatpush.xpose.msra.mxu0 0.0
  %1884 = vmatpush.xpose.msra.mxu0 %v1867
  %1885 = vmatmul.f32.gmra.mxu0 %v1865
  %v1886 = vpop.f32.mrf.mxu0
  %v1887 = vadd.f32 0.0, %v1886
  %1888 = vdwg.mxu0
  %1889 = vrot.lane.b32.xlu0 %v518, 120
  %v1890 = vpop.permute.xlu0 %1889
  %1891 = vrot.lane.b32.xlu0 %v518, 88
  %v1892 = vpop.permute.xlu0 %1891
  %v1893 = vsel %vm559, %v1890, 0
  %v1895 = vsel %vm559, %v1892, 0
  %1897 = vmatpush.xpose.msra.mxu0 0.0
  %1898 = vmatpush.xpose.msra.mxu0 0.0
  %1899 = vmatpush.xpose.msra.mxu0 0.0
  %1900 = vmatpush.xpose.msra.mxu0 0.0
  %1901 = vmatpush.xpose.msra.mxu0 0.0
  %1902 = vmatpush.xpose.msra.mxu0 0.0
  %1903 = vmatpush.xpose.msra.mxu0 0.0
  %1904 = vmatpush.xpose.msra.mxu0 0.0
  %1905 = vmatpush.xpose.msra.mxu0 0.0
  %1906 = vmatpush.xpose.msra.mxu0 0.0
  %1907 = vmatpush.xpose.msra.mxu0 0.0
  %1908 = vmatpush.xpose.msra.mxu0 0.0
  %1909 = vmatpush.xpose.msra.mxu0 0.0
  %1910 = vmatpush.xpose.msra.mxu0 0.0
  %1911 = vmatpush.xpose.msra.mxu0 0.0
  %1912 = vmatpush.xpose.msra.mxu0 %v1895
  %1913 = vmatmul.f32.gmra.mxu0 %v1893
  %v1914 = vpop.f32.mrf.mxu0
  %v1915 = vadd.f32 0.0, %v1914
  %1916 = vdwg.mxu0
  %1917 = vrot.lane.b32.xlu0 %v521, 120
  %v1918 = vpop.permute.xlu0 %1917
  %1919 = vrot.lane.b32.xlu0 %v521, 88
  %v1920 = vpop.permute.xlu0 %1919
  %v1921 = vsel %vm559, %v1918, 0
  %v1923 = vsel %vm559, %v1920, 0
  %1925 = vmatpush.xpose.msra.mxu0 0.0
  %1926 = vmatpush.xpose.msra.mxu0 0.0
  %1927 = vmatpush.xpose.msra.mxu0 0.0
  %1928 = vmatpush.xpose.msra.mxu0 0.0
  %1929 = vmatpush.xpose.msra.mxu0 0.0
  %1930 = vmatpush.xpose.msra.mxu0 0.0
  %1931 = vmatpush.xpose.msra.mxu0 0.0
  %1932 = vmatpush.xpose.msra.mxu0 0.0
  %1933 = vmatpush.xpose.msra.mxu0 0.0
  %1934 = vmatpush.xpose.msra.mxu0 0.0
  %1935 = vmatpush.xpose.msra.mxu0 0.0
  %1936 = vmatpush.xpose.msra.mxu0 0.0
  %1937 = vmatpush.xpose.msra.mxu0 0.0
  %1938 = vmatpush.xpose.msra.mxu0 0.0
  %1939 = vmatpush.xpose.msra.mxu0 0.0
  %1940 = vmatpush.xpose.msra.mxu0 %v1923
  %1941 = vmatmul.f32.gmra.mxu0 %v1921
  %v1942 = vpop.f32.mrf.mxu0
  %v1943 = vadd.f32 0.0, %v1942
  %1944 = vdwg.mxu0
  %1945 = vrot.lane.b32.xlu0 %v524, 120
  %v1946 = vpop.permute.xlu0 %1945
  %1947 = vrot.lane.b32.xlu0 %v524, 88
  %v1948 = vpop.permute.xlu0 %1947
  %v1949 = vsel %vm559, %v1946, 0
  %v1951 = vsel %vm559, %v1948, 0
  %1953 = vmatpush.xpose.msra.mxu0 0.0
  %1954 = vmatpush.xpose.msra.mxu0 0.0
  %1955 = vmatpush.xpose.msra.mxu0 0.0
  %1956 = vmatpush.xpose.msra.mxu0 0.0
  %1957 = vmatpush.xpose.msra.mxu0 0.0
  %1958 = vmatpush.xpose.msra.mxu0 0.0
  %1959 = vmatpush.xpose.msra.mxu0 0.0
  %1960 = vmatpush.xpose.msra.mxu0 0.0
  %1961 = vmatpush.xpose.msra.mxu0 0.0
  %1962 = vmatpush.xpose.msra.mxu0 0.0
  %1963 = vmatpush.xpose.msra.mxu0 0.0
  %1964 = vmatpush.xpose.msra.mxu0 0.0
  %1965 = vmatpush.xpose.msra.mxu0 0.0
  %1966 = vmatpush.xpose.msra.mxu0 0.0
  %1967 = vmatpush.xpose.msra.mxu0 0.0
  %1968 = vmatpush.xpose.msra.mxu0 %v1951
  %1969 = vmatmul.f32.gmra.mxu0 %v1949
  %v1970 = vpop.f32.mrf.mxu0
  %v1971 = vadd.f32 0.0, %v1970
  %1972 = vdwg.mxu0
  %1973 = vrot.lane.b32.xlu0 %v527, 120
  %v1974 = vpop.permute.xlu0 %1973
  %1975 = vrot.lane.b32.xlu0 %v527, 88
  %v1976 = vpop.permute.xlu0 %1975
  %v1977 = vsel %vm559, %v1974, 0
  %v1979 = vsel %vm559, %v1976, 0
  %1981 = vmatpush.xpose.msra.mxu0 0.0
  %1982 = vmatpush.xpose.msra.mxu0 0.0
  %1983 = vmatpush.xpose.msra.mxu0 0.0
  %1984 = vmatpush.xpose.msra.mxu0 0.0
  %1985 = vmatpush.xpose.msra.mxu0 0.0
  %1986 = vmatpush.xpose.msra.mxu0 0.0
  %1987 = vmatpush.xpose.msra.mxu0 0.0
  %1988 = vmatpush.xpose.msra.mxu0 0.0
  %1989 = vmatpush.xpose.msra.mxu0 0.0
  %1990 = vmatpush.xpose.msra.mxu0 0.0
  %1991 = vmatpush.xpose.msra.mxu0 0.0
  %1992 = vmatpush.xpose.msra.mxu0 0.0
  %1993 = vmatpush.xpose.msra.mxu0 0.0
  %1994 = vmatpush.xpose.msra.mxu0 0.0
  %1995 = vmatpush.xpose.msra.mxu0 0.0
  %1996 = vmatpush.xpose.msra.mxu0 %v1979
  %1997 = vmatmul.f32.gmra.mxu0 %v1977
  %v1998 = vpop.f32.mrf.mxu0
  %v1999 = vadd.f32 0.0, %v1998
  %2000 = vdwg.mxu0
  %2001 = vrot.lane.b32.xlu0 %v530, 120
  %v2002 = vpop.permute.xlu0 %2001
  %2003 = vrot.lane.b32.xlu0 %v530, 88
  %v2004 = vpop.permute.xlu0 %2003
  %v2005 = vsel %vm559, %v2002, 0
  %v2007 = vsel %vm559, %v2004, 0
  %2009 = vmatpush.xpose.msra.mxu0 0.0
  %2010 = vmatpush.xpose.msra.mxu0 0.0
  %2011 = vmatpush.xpose.msra.mxu0 0.0
  %2012 = vmatpush.xpose.msra.mxu0 0.0
  %2013 = vmatpush.xpose.msra.mxu0 0.0
  %2014 = vmatpush.xpose.msra.mxu0 0.0
  %2015 = vmatpush.xpose.msra.mxu0 0.0
  %2016 = vmatpush.xpose.msra.mxu0 0.0
  %2017 = vmatpush.xpose.msra.mxu0 0.0
  %2018 = vmatpush.xpose.msra.mxu0 0.0
  %2019 = vmatpush.xpose.msra.mxu0 0.0
  %2020 = vmatpush.xpose.msra.mxu0 0.0
  %2021 = vmatpush.xpose.msra.mxu0 0.0
  %2022 = vmatpush.xpose.msra.mxu0 0.0
  %2023 = vmatpush.xpose.msra.mxu0 0.0
  %2024 = vmatpush.xpose.msra.mxu0 %v2007
  %2025 = vmatmul.f32.gmra.mxu0 %v2005
  %v2026 = vpop.f32.mrf.mxu0
  %v2027 = vadd.f32 0.0, %v2026
  %2028 = vdwg.mxu0
  %2029 = vrot.lane.b32.xlu0 %v533, 120
  %v2030 = vpop.permute.xlu0 %2029
  %2031 = vrot.lane.b32.xlu0 %v533, 88
  %v2032 = vpop.permute.xlu0 %2031
  %v2033 = vsel %vm559, %v2030, 0
  %v2035 = vsel %vm559, %v2032, 0
  %2037 = vmatpush.xpose.msra.mxu0 0.0
  %2038 = vmatpush.xpose.msra.mxu0 0.0
  %2039 = vmatpush.xpose.msra.mxu0 0.0
  %2040 = vmatpush.xpose.msra.mxu0 0.0
  %2041 = vmatpush.xpose.msra.mxu0 0.0
  %2042 = vmatpush.xpose.msra.mxu0 0.0
  %2043 = vmatpush.xpose.msra.mxu0 0.0
  %2044 = vmatpush.xpose.msra.mxu0 0.0
  %2045 = vmatpush.xpose.msra.mxu0 0.0
  %2046 = vmatpush.xpose.msra.mxu0 0.0
  %2047 = vmatpush.xpose.msra.mxu0 0.0
  %2048 = vmatpush.xpose.msra.mxu0 0.0
  %2049 = vmatpush.xpose.msra.mxu0 0.0
  %2050 = vmatpush.xpose.msra.mxu0 0.0
  %2051 = vmatpush.xpose.msra.mxu0 0.0
  %2052 = vmatpush.xpose.msra.mxu0 %v2035
  %2053 = vmatmul.f32.gmra.mxu0 %v2033
  %v2054 = vpop.f32.mrf.mxu0
  %v2055 = vadd.f32 0.0, %v2054
  %2056 = vdwg.mxu0
  %2057 = vrot.lane.b32.xlu0 %v536, 120
  %v2058 = vpop.permute.xlu0 %2057
  %2059 = vrot.lane.b32.xlu0 %v536, 88
  %v2060 = vpop.permute.xlu0 %2059
  %v2061 = vsel %vm559, %v2058, 0
  %v2063 = vsel %vm559, %v2060, 0
  %2065 = vmatpush.xpose.msra.mxu0 0.0
  %2066 = vmatpush.xpose.msra.mxu0 0.0
  %2067 = vmatpush.xpose.msra.mxu0 0.0
  %2068 = vmatpush.xpose.msra.mxu0 0.0
  %2069 = vmatpush.xpose.msra.mxu0 0.0
  %2070 = vmatpush.xpose.msra.mxu0 0.0
  %2071 = vmatpush.xpose.msra.mxu0 0.0
  %2072 = vmatpush.xpose.msra.mxu0 0.0
  %2073 = vmatpush.xpose.msra.mxu0 0.0
  %2074 = vmatpush.xpose.msra.mxu0 0.0
  %2075 = vmatpush.xpose.msra.mxu0 0.0
  %2076 = vmatpush.xpose.msra.mxu0 0.0
  %2077 = vmatpush.xpose.msra.mxu0 0.0
  %2078 = vmatpush.xpose.msra.mxu0 0.0
  %2079 = vmatpush.xpose.msra.mxu0 0.0
  %2080 = vmatpush.xpose.msra.mxu0 %v2063
  %2081 = vmatmul.f32.gmra.mxu0 %v2061
  %v2082 = vpop.f32.mrf.mxu0
  %v2083 = vadd.f32 0.0, %v2082
  %2084 = vdwg.mxu0
  %2085 = vrot.lane.b32.xlu0 %v539, 120
  %v2086 = vpop.permute.xlu0 %2085
  %2087 = vrot.lane.b32.xlu0 %v539, 88
  %v2088 = vpop.permute.xlu0 %2087
  %v2089 = vsel %vm559, %v2086, 0
  %v2091 = vsel %vm559, %v2088, 0
  %2093 = vmatpush.xpose.msra.mxu0 0.0
  %2094 = vmatpush.xpose.msra.mxu0 0.0
  %2095 = vmatpush.xpose.msra.mxu0 0.0
  %2096 = vmatpush.xpose.msra.mxu0 0.0
  %2097 = vmatpush.xpose.msra.mxu0 0.0
  %2098 = vmatpush.xpose.msra.mxu0 0.0
  %2099 = vmatpush.xpose.msra.mxu0 0.0
  %2100 = vmatpush.xpose.msra.mxu0 0.0
  %2101 = vmatpush.xpose.msra.mxu0 0.0
  %2102 = vmatpush.xpose.msra.mxu0 0.0
  %2103 = vmatpush.xpose.msra.mxu0 0.0
  %2104 = vmatpush.xpose.msra.mxu0 0.0
  %2105 = vmatpush.xpose.msra.mxu0 0.0
  %2106 = vmatpush.xpose.msra.mxu0 0.0
  %2107 = vmatpush.xpose.msra.mxu0 0.0
  %2108 = vmatpush.xpose.msra.mxu0 %v2091
  %2109 = vmatmul.f32.gmra.mxu0 %v2089
  %v2110 = vpop.f32.mrf.mxu0
  %v2111 = vadd.f32 0.0, %v2110
  %2112 = vdwg.mxu0
  %2113 = vrot.lane.b32.xlu0 %v542, 120
  %v2114 = vpop.permute.xlu0 %2113
  %2115 = vrot.lane.b32.xlu0 %v542, 88
  %v2116 = vpop.permute.xlu0 %2115
  %v2117 = vsel %vm559, %v2114, 0
  %v2119 = vsel %vm559, %v2116, 0
  %2121 = vmatpush.xpose.msra.mxu0 0.0
  %2122 = vmatpush.xpose.msra.mxu0 0.0
  %2123 = vmatpush.xpose.msra.mxu0 0.0
  %2124 = vmatpush.xpose.msra.mxu0 0.0
  %2125 = vmatpush.xpose.msra.mxu0 0.0
  %2126 = vmatpush.xpose.msra.mxu0 0.0
  %2127 = vmatpush.xpose.msra.mxu0 0.0
  %2128 = vmatpush.xpose.msra.mxu0 0.0
  %2129 = vmatpush.xpose.msra.mxu0 0.0
  %2130 = vmatpush.xpose.msra.mxu0 0.0
  %2131 = vmatpush.xpose.msra.mxu0 0.0
  %2132 = vmatpush.xpose.msra.mxu0 0.0
  %2133 = vmatpush.xpose.msra.mxu0 0.0
  %2134 = vmatpush.xpose.msra.mxu0 0.0
  %2135 = vmatpush.xpose.msra.mxu0 0.0
  %2136 = vmatpush.xpose.msra.mxu0 %v2119
  %2137 = vmatmul.f32.gmra.mxu0 %v2117
  %v2138 = vpop.f32.mrf.mxu0
  %v2139 = vadd.f32 0.0, %v2138
  %2140 = vdwg.mxu0
  %2141 = vrot.lane.b32.xlu0 %v545, 120
  %v2142 = vpop.permute.xlu0 %2141
  %2143 = vrot.lane.b32.xlu0 %v545, 88
  %v2144 = vpop.permute.xlu0 %2143
  %v2145 = vsel %vm559, %v2142, 0
  %v2147 = vsel %vm559, %v2144, 0
  %2149 = vmatpush.xpose.msra.mxu0 0.0
  %2150 = vmatpush.xpose.msra.mxu0 0.0
  %2151 = vmatpush.xpose.msra.mxu0 0.0
  %2152 = vmatpush.xpose.msra.mxu0 0.0
  %2153 = vmatpush.xpose.msra.mxu0 0.0
  %2154 = vmatpush.xpose.msra.mxu0 0.0
  %2155 = vmatpush.xpose.msra.mxu0 0.0
  %2156 = vmatpush.xpose.msra.mxu0 0.0
  %2157 = vmatpush.xpose.msra.mxu0 0.0
  %2158 = vmatpush.xpose.msra.mxu0 0.0
  %2159 = vmatpush.xpose.msra.mxu0 0.0
  %2160 = vmatpush.xpose.msra.mxu0 0.0
  %2161 = vmatpush.xpose.msra.mxu0 0.0
  %2162 = vmatpush.xpose.msra.mxu0 0.0
  %2163 = vmatpush.xpose.msra.mxu0 0.0
  %2164 = vmatpush.xpose.msra.mxu0 %v2147
  %2165 = vmatmul.f32.gmra.mxu0 %v2145
  %v2166 = vpop.f32.mrf.mxu0
  %v2167 = vadd.f32 0.0, %v2166
  %2168 = vdwg.mxu0
  %2169 = vrot.lane.b32.xlu0 %v548, 120
  %v2170 = vpop.permute.xlu0 %2169
  %2171 = vrot.lane.b32.xlu0 %v548, 88
  %v2172 = vpop.permute.xlu0 %2171
  %v2173 = vsel %vm559, %v2170, 0
  %v2175 = vsel %vm559, %v2172, 0
  %2177 = vmatpush.xpose.msra.mxu0 0.0
  %2178 = vmatpush.xpose.msra.mxu0 0.0
  %2179 = vmatpush.xpose.msra.mxu0 0.0
  %2180 = vmatpush.xpose.msra.mxu0 0.0
  %2181 = vmatpush.xpose.msra.mxu0 0.0
  %2182 = vmatpush.xpose.msra.mxu0 0.0
  %2183 = vmatpush.xpose.msra.mxu0 0.0
  %2184 = vmatpush.xpose.msra.mxu0 0.0
  %2185 = vmatpush.xpose.msra.mxu0 0.0
  %2186 = vmatpush.xpose.msra.mxu0 0.0
  %2187 = vmatpush.xpose.msra.mxu0 0.0
  %2188 = vmatpush.xpose.msra.mxu0 0.0
  %2189 = vmatpush.xpose.msra.mxu0 0.0
  %2190 = vmatpush.xpose.msra.mxu0 0.0
  %2191 = vmatpush.xpose.msra.mxu0 0.0
  %2192 = vmatpush.xpose.msra.mxu0 %v2175
  %2193 = vmatmul.f32.gmra.mxu0 %v2173
  %v2194 = vpop.f32.mrf.mxu0
  %v2195 = vadd.f32 0.0, %v2194
  %2196 = vdwg.mxu0
  %2197 = vrot.lane.b32.xlu0 %v551, 120
  %v2198 = vpop.permute.xlu0 %2197
  %2199 = vrot.lane.b32.xlu0 %v551, 88
  %v2200 = vpop.permute.xlu0 %2199
  %v2201 = vsel %vm559, %v2198, 0
  %v2203 = vsel %vm559, %v2200, 0
  %2205 = vmatpush.xpose.msra.mxu0 0.0
  %2206 = vmatpush.xpose.msra.mxu0 0.0
  %2207 = vmatpush.xpose.msra.mxu0 0.0
  %2208 = vmatpush.xpose.msra.mxu0 0.0
  %2209 = vmatpush.xpose.msra.mxu0 0.0
  %2210 = vmatpush.xpose.msra.mxu0 0.0
  %2211 = vmatpush.xpose.msra.mxu0 0.0
  %2212 = vmatpush.xpose.msra.mxu0 0.0
  %2213 = vmatpush.xpose.msra.mxu0 0.0
  %2214 = vmatpush.xpose.msra.mxu0 0.0
  %2215 = vmatpush.xpose.msra.mxu0 0.0
  %2216 = vmatpush.xpose.msra.mxu0 0.0
  %2217 = vmatpush.xpose.msra.mxu0 0.0
  %2218 = vmatpush.xpose.msra.mxu0 0.0
  %2219 = vmatpush.xpose.msra.mxu0 0.0
  %2220 = vmatpush.xpose.msra.mxu0 %v2203
  %2221 = vmatmul.f32.gmra.mxu0 %v2201
  %v2222 = vpop.f32.mrf.mxu0
  %v2223 = vadd.f32 0.0, %v2222
  %2224 = vdwg.mxu0
  %2225 = vrot.lane.b32.xlu0 %v554, 120
  %v2226 = vpop.permute.xlu0 %2225
  %2227 = vrot.lane.b32.xlu0 %v554, 88
  %v2228 = vpop.permute.xlu0 %2227
  %v2229 = vsel %vm559, %v2226, 0
  %v2231 = vsel %vm559, %v2228, 0
  %2233 = vmatpush.xpose.msra.mxu0 0.0
  %2234 = vmatpush.xpose.msra.mxu0 0.0
  %2235 = vmatpush.xpose.msra.mxu0 0.0
  %2236 = vmatpush.xpose.msra.mxu0 0.0
  %2237 = vmatpush.xpose.msra.mxu0 0.0
  %2238 = vmatpush.xpose.msra.mxu0 0.0
  %2239 = vmatpush.xpose.msra.mxu0 0.0
  %2240 = vmatpush.xpose.msra.mxu0 0.0
  %2241 = vmatpush.xpose.msra.mxu0 0.0
  %2242 = vmatpush.xpose.msra.mxu0 0.0
  %2243 = vmatpush.xpose.msra.mxu0 0.0
  %2244 = vmatpush.xpose.msra.mxu0 0.0
  %2245 = vmatpush.xpose.msra.mxu0 0.0
  %2246 = vmatpush.xpose.msra.mxu0 0.0
  %2247 = vmatpush.xpose.msra.mxu0 0.0
  %2248 = vmatpush.xpose.msra.mxu0 %v2231
  %2249 = vmatmul.f32.gmra.mxu0 %v2229
  %v2250 = vpop.f32.mrf.mxu0
  %v2251 = vadd.f32 0.0, %v2250
  %2252 = vdwg.mxu0
  %v2253 = vmul.f32 %v1831, 0.35355338
  %v2254 = vmul.f32 %v1859, 0.35355338
  %v2255 = vmul.f32 %v1887, 0.35355338
  %v2256 = vmul.f32 %v1915, 0.35355338
  %v2257 = vmul.f32 %v1943, 0.35355338
  %v2258 = vmul.f32 %v1971, 0.35355338
  %v2259 = vmul.f32 %v1999, 0.35355338
  %v2260 = vmul.f32 %v2027, 0.35355338
  %v2261 = vmul.f32 %v2055, 0.35355338
  %v2262 = vmul.f32 %v2083, 0.35355338
  %v2263 = vmul.f32 %v2111, 0.35355338
  %v2264 = vmul.f32 %v2139, 0.35355338
  %v2265 = vmul.f32 %v2167, 0.35355338
  %v2266 = vmul.f32 %v2195, 0.35355338
  %v2267 = vmul.f32 %v2223, 0.35355338
  %v2268 = vmul.f32 %v2251, 0.35355338
  %v2269 = vsel %vm559, %v2253, -inf
  %2270 = vmax.xlane.f32.xlu0 %v2269
  %v2271 = vpop.xlane.xlu0 %2270
  %v2272 = vsel %vm559, %v2254, -inf
  %2273 = vmax.xlane.f32.xlu0 %v2272
  %v2274 = vpop.xlane.xlu0 %2273
  %v2275 = vsel %vm559, %v2255, -inf
  %2276 = vmax.xlane.f32.xlu0 %v2275
  %v2277 = vpop.xlane.xlu0 %2276
  %v2278 = vsel %vm559, %v2256, -inf
  %2279 = vmax.xlane.f32.xlu0 %v2278
  %v2280 = vpop.xlane.xlu0 %2279
  %v2281 = vsel %vm559, %v2257, -inf
  %2282 = vmax.xlane.f32.xlu0 %v2281
  %v2283 = vpop.xlane.xlu0 %2282
  %v2284 = vsel %vm559, %v2258, -inf
  %2285 = vmax.xlane.f32.xlu0 %v2284
  %v2286 = vpop.xlane.xlu0 %2285
  %v2287 = vsel %vm559, %v2259, -inf
  %2288 = vmax.xlane.f32.xlu0 %v2287
  %v2289 = vpop.xlane.xlu0 %2288
  %v2290 = vsel %vm559, %v2260, -inf
  %2291 = vmax.xlane.f32.xlu0 %v2290
  %v2292 = vpop.xlane.xlu0 %2291
  %v2293 = vsel %vm559, %v2261, -inf
  %2294 = vmax.xlane.f32.xlu0 %v2293
  %v2295 = vpop.xlane.xlu0 %2294
  %v2296 = vsel %vm559, %v2262, -inf
  %2297 = vmax.xlane.f32.xlu0 %v2296
  %v2298 = vpop.xlane.xlu0 %2297
  %v2299 = vsel %vm559, %v2263, -inf
  %2300 = vmax.xlane.f32.xlu0 %v2299
  %v2301 = vpop.xlane.xlu0 %2300
  %v2302 = vsel %vm559, %v2264, -inf
  %2303 = vmax.xlane.f32.xlu0 %v2302
  %v2304 = vpop.xlane.xlu0 %2303
  %v2305 = vsel %vm559, %v2265, -inf
  %2306 = vmax.xlane.f32.xlu0 %v2305
  %v2307 = vpop.xlane.xlu0 %2306
  %v2308 = vsel %vm559, %v2266, -inf
  %2309 = vmax.xlane.f32.xlu0 %v2308
  %v2310 = vpop.xlane.xlu0 %2309
  %v2311 = vsel %vm559, %v2267, -inf
  %2312 = vmax.xlane.f32.xlu0 %v2311
  %v2313 = vpop.xlane.xlu0 %2312
  %v2314 = vsel %vm559, %v2268, -inf
  %2315 = vmax.xlane.f32.xlu0 %v2314
  %v2316 = vpop.xlane.xlu0 %2315
  %v2317 = vsub.f32 %v2253, %v2271
  %v2318 = vsub.f32 %v2254, %v2274
  %v2319 = vsub.f32 %v2255, %v2277
  %v2320 = vsub.f32 %v2256, %v2280
  %v2321 = vsub.f32 %v2257, %v2283
  %v2322 = vsub.f32 %v2258, %v2286
  %v2323 = vsub.f32 %v2259, %v2289
  %v2324 = vsub.f32 %v2260, %v2292
  %v2325 = vsub.f32 %v2261, %v2295
  %v2326 = vsub.f32 %v2262, %v2298
  %v2327 = vsub.f32 %v2263, %v2301
  %v2328 = vsub.f32 %v2264, %v2304
  %v2329 = vsub.f32 %v2265, %v2307
  %v2330 = vsub.f32 %v2266, %v2310
  %v2331 = vsub.f32 %v2267, %v2313
  %v2332 = vsub.f32 %v2268, %v2316
  %v2333 = vmul.f32 %v2317, 1.442695
  %v2334 = vpow.pop %v2333
  %v2335 = vmul.f32 %v2318, 1.442695
  %v2336 = vpow.pop %v2335
  %v2337 = vmul.f32 %v2319, 1.442695
  %v2338 = vpow.pop %v2337
  %v2339 = vmul.f32 %v2320, 1.442695
  %v2340 = vpow.pop %v2339
  %v2341 = vmul.f32 %v2321, 1.442695
  %v2342 = vpow.pop %v2341
  %v2343 = vmul.f32 %v2322, 1.442695
  %v2344 = vpow.pop %v2343
  %v2345 = vmul.f32 %v2323, 1.442695
  %v2346 = vpow.pop %v2345
  %v2347 = vmul.f32 %v2324, 1.442695
  %v2348 = vpow.pop %v2347
  %v2349 = vmul.f32 %v2325, 1.442695
  %v2350 = vpow.pop %v2349
  %v2351 = vmul.f32 %v2326, 1.442695
  %v2352 = vpow.pop %v2351
  %v2353 = vmul.f32 %v2327, 1.442695
  %v2354 = vpow.pop %v2353
  %v2355 = vmul.f32 %v2328, 1.442695
  %v2356 = vpow.pop %v2355
  %v2357 = vmul.f32 %v2329, 1.442695
  %v2358 = vpow.pop %v2357
  %v2359 = vmul.f32 %v2330, 1.442695
  %v2360 = vpow.pop %v2359
  %v2361 = vmul.f32 %v2331, 1.442695
  %v2362 = vpow.pop %v2361
  %v2363 = vmul.f32 %v2332, 1.442695
  %v2364 = vpow.pop %v2363
  %v2365 = vsel %vm559, %v2334, 0.0
  %2366 = vadd.xlane.f32.xlu0 %v2365
  %v2367 = vpop.xlane.xlu0 %2366
  %v2368 = vsel %vm559, %v2336, 0.0
  %2369 = vadd.xlane.f32.xlu0 %v2368
  %v2370 = vpop.xlane.xlu0 %2369
  %v2371 = vsel %vm559, %v2338, 0.0
  %2372 = vadd.xlane.f32.xlu0 %v2371
  %v2373 = vpop.xlane.xlu0 %2372
  %v2374 = vsel %vm559, %v2340, 0.0
  %2375 = vadd.xlane.f32.xlu0 %v2374
  %v2376 = vpop.xlane.xlu0 %2375
  %v2377 = vsel %vm559, %v2342, 0.0
  %2378 = vadd.xlane.f32.xlu0 %v2377
  %v2379 = vpop.xlane.xlu0 %2378
  %v2380 = vsel %vm559, %v2344, 0.0
  %2381 = vadd.xlane.f32.xlu0 %v2380
  %v2382 = vpop.xlane.xlu0 %2381
  %v2383 = vsel %vm559, %v2346, 0.0
  %2384 = vadd.xlane.f32.xlu0 %v2383
  %v2385 = vpop.xlane.xlu0 %2384
  %v2386 = vsel %vm559, %v2348, 0.0
  %2387 = vadd.xlane.f32.xlu0 %v2386
  %v2388 = vpop.xlane.xlu0 %2387
  %v2389 = vsel %vm559, %v2350, 0.0
  %2390 = vadd.xlane.f32.xlu0 %v2389
  %v2391 = vpop.xlane.xlu0 %2390
  %v2392 = vsel %vm559, %v2352, 0.0
  %2393 = vadd.xlane.f32.xlu0 %v2392
  %v2394 = vpop.xlane.xlu0 %2393
  %v2395 = vsel %vm559, %v2354, 0.0
  %2396 = vadd.xlane.f32.xlu0 %v2395
  %v2397 = vpop.xlane.xlu0 %2396
  %v2398 = vsel %vm559, %v2356, 0.0
  %2399 = vadd.xlane.f32.xlu0 %v2398
  %v2400 = vpop.xlane.xlu0 %2399
  %v2401 = vsel %vm559, %v2358, 0.0
  %2402 = vadd.xlane.f32.xlu0 %v2401
  %v2403 = vpop.xlane.xlu0 %2402
  %v2404 = vsel %vm559, %v2360, 0.0
  %2405 = vadd.xlane.f32.xlu0 %v2404
  %v2406 = vpop.xlane.xlu0 %2405
  %v2407 = vsel %vm559, %v2362, 0.0
  %2408 = vadd.xlane.f32.xlu0 %v2407
  %v2409 = vpop.xlane.xlu0 %2408
  %v2410 = vsel %vm559, %v2364, 0.0
  %2411 = vadd.xlane.f32.xlu0 %v2410
  %v2412 = vpop.xlane.xlu0 %2411
  %v2413 = vrcp.pop %v2367
  %v2414 = vmul.f32 %v2367, %v2413
  %v2415 = vsub.f32 1.0, %v2414
  %v2416 = vmul.f32 %v2413, %v2415
  %v2417 = vadd.f32 %v2413, %v2416
  %vm2418 = vweird.f32 %v2367
  %vm2419 = vweird.f32 %v2413
  %vm2420 = vmor %vm2418, %vm2419
  %v2421 = vsel %vm2420, %v2413, %v2417
  %v2422 = vand.u32 2147483647, %v2367
  %vm2423 = vcmp.eq.f32.partialorder %v2422, 8.507059e+37
  %v2424 = vand.u32 %v2367, 2147483648
  %v2425 = vor.u32 1.1754944e-38, %v2424
  %v2426 = vsel %vm2423, %v2425, %v2421
  %v2427 = vmul.f32 %v2334, %v2426
  %v2428 = vrcp.pop %v2370
  %v2429 = vmul.f32 %v2370, %v2428
  %v2430 = vsub.f32 1.0, %v2429
  %v2431 = vmul.f32 %v2428, %v2430
  %v2432 = vadd.f32 %v2428, %v2431
  %vm2433 = vweird.f32 %v2370
  %vm2434 = vweird.f32 %v2428
  %vm2435 = vmor %vm2433, %vm2434
  %v2436 = vsel %vm2435, %v2428, %v2432
  %v2437 = vand.u32 2147483647, %v2370
  %vm2438 = vcmp.eq.f32.partialorder %v2437, 8.507059e+37
  %v2439 = vand.u32 %v2370, 2147483648
  %v2440 = vor.u32 1.1754944e-38, %v2439
  %v2441 = vsel %vm2438, %v2440, %v2436
  %v2442 = vmul.f32 %v2336, %v2441
  %v2443 = vrcp.pop %v2373
  %v2444 = vmul.f32 %v2373, %v2443
  %v2445 = vsub.f32 1.0, %v2444
  %v2446 = vmul.f32 %v2443, %v2445
  %v2447 = vadd.f32 %v2443, %v2446
  %vm2448 = vweird.f32 %v2373
  %vm2449 = vweird.f32 %v2443
  %vm2450 = vmor %vm2448, %vm2449
  %v2451 = vsel %vm2450, %v2443, %v2447
  %v2452 = vand.u32 2147483647, %v2373
  %vm2453 = vcmp.eq.f32.partialorder %v2452, 8.507059e+37
  %v2454 = vand.u32 %v2373, 2147483648
  %v2455 = vor.u32 1.1754944e-38, %v2454
  %v2456 = vsel %vm2453, %v2455, %v2451
  %v2457 = vmul.f32 %v2338, %v2456
  %v2458 = vrcp.pop %v2376
  %v2459 = vmul.f32 %v2376, %v2458
  %v2460 = vsub.f32 1.0, %v2459
  %v2461 = vmul.f32 %v2458, %v2460
  %v2462 = vadd.f32 %v2458, %v2461
  %vm2463 = vweird.f32 %v2376
  %vm2464 = vweird.f32 %v2458
  %vm2465 = vmor %vm2463, %vm2464
  %v2466 = vsel %vm2465, %v2458, %v2462
  %v2467 = vand.u32 2147483647, %v2376
  %vm2468 = vcmp.eq.f32.partialorder %v2467, 8.507059e+37
  %v2469 = vand.u32 %v2376, 2147483648
  %v2470 = vor.u32 1.1754944e-38, %v2469
  %v2471 = vsel %vm2468, %v2470, %v2466
  %v2472 = vmul.f32 %v2340, %v2471
  %v2473 = vrcp.pop %v2379
  %v2474 = vmul.f32 %v2379, %v2473
  %v2475 = vsub.f32 1.0, %v2474
  %v2476 = vmul.f32 %v2473, %v2475
  %v2477 = vadd.f32 %v2473, %v2476
  %vm2478 = vweird.f32 %v2379
  %vm2479 = vweird.f32 %v2473
  %vm2480 = vmor %vm2478, %vm2479
  %v2481 = vsel %vm2480, %v2473, %v2477
  %v2482 = vand.u32 2147483647, %v2379
  %vm2483 = vcmp.eq.f32.partialorder %v2482, 8.507059e+37
  %v2484 = vand.u32 %v2379, 2147483648
  %v2485 = vor.u32 1.1754944e-38, %v2484
  %v2486 = vsel %vm2483, %v2485, %v2481
  %v2487 = vmul.f32 %v2342, %v2486
  %v2488 = vrcp.pop %v2382
  %v2489 = vmul.f32 %v2382, %v2488
  %v2490 = vsub.f32 1.0, %v2489
  %v2491 = vmul.f32 %v2488, %v2490
  %v2492 = vadd.f32 %v2488, %v2491
  %vm2493 = vweird.f32 %v2382
  %vm2494 = vweird.f32 %v2488
  %vm2495 = vmor %vm2493, %vm2494
  %v2496 = vsel %vm2495, %v2488, %v2492
  %v2497 = vand.u32 2147483647, %v2382
  %vm2498 = vcmp.eq.f32.partialorder %v2497, 8.507059e+37
  %v2499 = vand.u32 %v2382, 2147483648
  %v2500 = vor.u32 1.1754944e-38, %v2499
  %v2501 = vsel %vm2498, %v2500, %v2496
  %v2502 = vmul.f32 %v2344, %v2501
  %v2503 = vrcp.pop %v2385
  %v2504 = vmul.f32 %v2385, %v2503
  %v2505 = vsub.f32 1.0, %v2504
  %v2506 = vmul.f32 %v2503, %v2505
  %v2507 = vadd.f32 %v2503, %v2506
  %vm2508 = vweird.f32 %v2385
  %vm2509 = vweird.f32 %v2503
  %vm2510 = vmor %vm2508, %vm2509
  %v2511 = vsel %vm2510, %v2503, %v2507
  %v2512 = vand.u32 2147483647, %v2385
  %vm2513 = vcmp.eq.f32.partialorder %v2512, 8.507059e+37
  %v2514 = vand.u32 %v2385, 2147483648
  %v2515 = vor.u32 1.1754944e-38, %v2514
  %v2516 = vsel %vm2513, %v2515, %v2511
  %v2517 = vmul.f32 %v2346, %v2516
  %v2518 = vrcp.pop %v2388
  %v2519 = vmul.f32 %v2388, %v2518
  %v2520 = vsub.f32 1.0, %v2519
  %v2521 = vmul.f32 %v2518, %v2520
  %v2522 = vadd.f32 %v2518, %v2521
  %vm2523 = vweird.f32 %v2388
  %vm2524 = vweird.f32 %v2518
  %vm2525 = vmor %vm2523, %vm2524
  %v2526 = vsel %vm2525, %v2518, %v2522
  %v2527 = vand.u32 2147483647, %v2388
  %vm2528 = vcmp.eq.f32.partialorder %v2527, 8.507059e+37
  %v2529 = vand.u32 %v2388, 2147483648
  %v2530 = vor.u32 1.1754944e-38, %v2529
  %v2531 = vsel %vm2528, %v2530, %v2526
  %v2532 = vmul.f32 %v2348, %v2531
  %v2533 = vrcp.pop %v2391
  %v2534 = vmul.f32 %v2391, %v2533
  %v2535 = vsub.f32 1.0, %v2534
  %v2536 = vmul.f32 %v2533, %v2535
  %v2537 = vadd.f32 %v2533, %v2536
  %vm2538 = vweird.f32 %v2391
  %vm2539 = vweird.f32 %v2533
  %vm2540 = vmor %vm2538, %vm2539
  %v2541 = vsel %vm2540, %v2533, %v2537
  %v2542 = vand.u32 2147483647, %v2391
  %vm2543 = vcmp.eq.f32.partialorder %v2542, 8.507059e+37
  %v2544 = vand.u32 %v2391, 2147483648
  %v2545 = vor.u32 1.1754944e-38, %v2544
  %v2546 = vsel %vm2543, %v2545, %v2541
  %v2547 = vmul.f32 %v2350, %v2546
  %v2548 = vrcp.pop %v2394
  %v2549 = vmul.f32 %v2394, %v2548
  %v2550 = vsub.f32 1.0, %v2549
  %v2551 = vmul.f32 %v2548, %v2550
  %v2552 = vadd.f32 %v2548, %v2551
  %vm2553 = vweird.f32 %v2394
  %vm2554 = vweird.f32 %v2548
  %vm2555 = vmor %vm2553, %vm2554
  %v2556 = vsel %vm2555, %v2548, %v2552
  %v2557 = vand.u32 2147483647, %v2394
  %vm2558 = vcmp.eq.f32.partialorder %v2557, 8.507059e+37
  %v2559 = vand.u32 %v2394, 2147483648
  %v2560 = vor.u32 1.1754944e-38, %v2559
  %v2561 = vsel %vm2558, %v2560, %v2556
  %v2562 = vmul.f32 %v2352, %v2561
  %v2563 = vrcp.pop %v2397
  %v2564 = vmul.f32 %v2397, %v2563
  %v2565 = vsub.f32 1.0, %v2564
  %v2566 = vmul.f32 %v2563, %v2565
  %v2567 = vadd.f32 %v2563, %v2566
  %vm2568 = vweird.f32 %v2397
  %vm2569 = vweird.f32 %v2563
  %vm2570 = vmor %vm2568, %vm2569
  %v2571 = vsel %vm2570, %v2563, %v2567
  %v2572 = vand.u32 2147483647, %v2397
  %vm2573 = vcmp.eq.f32.partialorder %v2572, 8.507059e+37
  %v2574 = vand.u32 %v2397, 2147483648
  %v2575 = vor.u32 1.1754944e-38, %v2574
  %v2576 = vsel %vm2573, %v2575, %v2571
  %v2577 = vmul.f32 %v2354, %v2576
  %v2578 = vrcp.pop %v2400
  %v2579 = vmul.f32 %v2400, %v2578
  %v2580 = vsub.f32 1.0, %v2579
  %v2581 = vmul.f32 %v2578, %v2580
  %v2582 = vadd.f32 %v2578, %v2581
  %vm2583 = vweird.f32 %v2400
  %vm2584 = vweird.f32 %v2578
  %vm2585 = vmor %vm2583, %vm2584
  %v2586 = vsel %vm2585, %v2578, %v2582
  %v2587 = vand.u32 2147483647, %v2400
  %vm2588 = vcmp.eq.f32.partialorder %v2587, 8.507059e+37
  %v2589 = vand.u32 %v2400, 2147483648
  %v2590 = vor.u32 1.1754944e-38, %v2589
  %v2591 = vsel %vm2588, %v2590, %v2586
  %v2592 = vmul.f32 %v2356, %v2591
  %v2593 = vrcp.pop %v2403
  %v2594 = vmul.f32 %v2403, %v2593
  %v2595 = vsub.f32 1.0, %v2594
  %v2596 = vmul.f32 %v2593, %v2595
  %v2597 = vadd.f32 %v2593, %v2596
  %vm2598 = vweird.f32 %v2403
  %vm2599 = vweird.f32 %v2593
  %vm2600 = vmor %vm2598, %vm2599
  %v2601 = vsel %vm2600, %v2593, %v2597
  %v2602 = vand.u32 2147483647, %v2403
  %vm2603 = vcmp.eq.f32.partialorder %v2602, 8.507059e+37
  %v2604 = vand.u32 %v2403, 2147483648
  %v2605 = vor.u32 1.1754944e-38, %v2604
  %v2606 = vsel %vm2603, %v2605, %v2601
  %v2607 = vmul.f32 %v2358, %v2606
  %v2608 = vrcp.pop %v2406
  %v2609 = vmul.f32 %v2406, %v2608
  %v2610 = vsub.f32 1.0, %v2609
  %v2611 = vmul.f32 %v2608, %v2610
  %v2612 = vadd.f32 %v2608, %v2611
  %vm2613 = vweird.f32 %v2406
  %vm2614 = vweird.f32 %v2608
  %vm2615 = vmor %vm2613, %vm2614
  %v2616 = vsel %vm2615, %v2608, %v2612
  %v2617 = vand.u32 2147483647, %v2406
  %vm2618 = vcmp.eq.f32.partialorder %v2617, 8.507059e+37
  %v2619 = vand.u32 %v2406, 2147483648
  %v2620 = vor.u32 1.1754944e-38, %v2619
  %v2621 = vsel %vm2618, %v2620, %v2616
  %v2622 = vmul.f32 %v2360, %v2621
  %v2623 = vrcp.pop %v2409
  %v2624 = vmul.f32 %v2409, %v2623
  %v2625 = vsub.f32 1.0, %v2624
  %v2626 = vmul.f32 %v2623, %v2625
  %v2627 = vadd.f32 %v2623, %v2626
  %vm2628 = vweird.f32 %v2409
  %vm2629 = vweird.f32 %v2623
  %vm2630 = vmor %vm2628, %vm2629
  %v2631 = vsel %vm2630, %v2623, %v2627
  %v2632 = vand.u32 2147483647, %v2409
  %vm2633 = vcmp.eq.f32.partialorder %v2632, 8.507059e+37
  %v2634 = vand.u32 %v2409, 2147483648
  %v2635 = vor.u32 1.1754944e-38, %v2634
  %v2636 = vsel %vm2633, %v2635, %v2631
  %v2637 = vmul.f32 %v2362, %v2636
  %v2638 = vrcp.pop %v2412
  %v2639 = vmul.f32 %v2412, %v2638
  %v2640 = vsub.f32 1.0, %v2639
  %v2641 = vmul.f32 %v2638, %v2640
  %v2642 = vadd.f32 %v2638, %v2641
  %vm2643 = vweird.f32 %v2412
  %vm2644 = vweird.f32 %v2638
  %vm2645 = vmor %vm2643, %vm2644
  %v2646 = vsel %vm2645, %v2638, %v2642
  %v2647 = vand.u32 2147483647, %v2412
  %vm2648 = vcmp.eq.f32.partialorder %v2647, 8.507059e+37
  %v2649 = vand.u32 %v2412, 2147483648
  %v2650 = vor.u32 1.1754944e-38, %v2649
  %v2651 = vsel %vm2648, %v2650, %v2646
  %v2652 = vmul.f32 %v2364, %v2651
  %2653 = vrot.lane.b32.xlu0 %v509, 56
  %v2654 = vpop.permute.xlu0 %2653
  %v2657 = vsel %vm559, %v2427, 0
  %2659 = vmatpush.msra.mxu0 0.0
  %2660 = vmatpush.msra.mxu0 0.0
  %2661 = vmatpush.msra.mxu0 0.0
  %2662 = vmatpush.msra.mxu0 0.0
  %2663 = vmatpush.msra.mxu0 0.0
  %2664 = vmatpush.msra.mxu0 0.0
  %2665 = vmatpush.msra.mxu0 0.0
  %2666 = vmatpush.msra.mxu0 0.0
  %2667 = vmatpush.msra.mxu0 0.0
  %2668 = vmatpush.msra.mxu0 0.0
  %2669 = vmatpush.msra.mxu0 0.0
  %2670 = vmatpush.msra.mxu0 0.0
  %2671 = vmatpush.msra.mxu0 0.0
  %2672 = vmatpush.msra.mxu0 0.0
  %2673 = vmatpush.msra.mxu0 0.0
  %2674 = vmatpush.msra.mxu0 %v2654
  %2675 = vmatmul.f32.gmra.mxu0 %v2657
  %v2676 = vpop.f32.mrf.mxu0
  %v2677 = vadd.f32 0.0, %v2676
  %2678 = vdwg.mxu0
  %2679 = vrot.lane.b32.xlu0 %v512, 56
  %v2680 = vpop.permute.xlu0 %2679
  %v2683 = vsel %vm559, %v2442, 0
  %2685 = vmatpush.msra.mxu0 0.0
  %2686 = vmatpush.msra.mxu0 0.0
  %2687 = vmatpush.msra.mxu0 0.0
  %2688 = vmatpush.msra.mxu0 0.0
  %2689 = vmatpush.msra.mxu0 0.0
  %2690 = vmatpush.msra.mxu0 0.0
  %2691 = vmatpush.msra.mxu0 0.0
  %2692 = vmatpush.msra.mxu0 0.0
  %2693 = vmatpush.msra.mxu0 0.0
  %2694 = vmatpush.msra.mxu0 0.0
  %2695 = vmatpush.msra.mxu0 0.0
  %2696 = vmatpush.msra.mxu0 0.0
  %2697 = vmatpush.msra.mxu0 0.0
  %2698 = vmatpush.msra.mxu0 0.0
  %2699 = vmatpush.msra.mxu0 0.0
  %2700 = vmatpush.msra.mxu0 %v2680
  %2701 = vmatmul.f32.gmra.mxu0 %v2683
  %v2702 = vpop.f32.mrf.mxu0
  %v2703 = vadd.f32 0.0, %v2702
  %2704 = vdwg.mxu0
  %2705 = vrot.lane.b32.xlu0 %v515, 56
  %v2706 = vpop.permute.xlu0 %2705
  %v2709 = vsel %vm559, %v2457, 0
  %2711 = vmatpush.msra.mxu0 0.0
  %2712 = vmatpush.msra.mxu0 0.0
  %2713 = vmatpush.msra.mxu0 0.0
  %2714 = vmatpush.msra.mxu0 0.0
  %2715 = vmatpush.msra.mxu0 0.0
  %2716 = vmatpush.msra.mxu0 0.0
  %2717 = vmatpush.msra.mxu0 0.0
  %2718 = vmatpush.msra.mxu0 0.0
  %2719 = vmatpush.msra.mxu0 0.0
  %2720 = vmatpush.msra.mxu0 0.0
  %2721 = vmatpush.msra.mxu0 0.0
  %2722 = vmatpush.msra.mxu0 0.0
  %2723 = vmatpush.msra.mxu0 0.0
  %2724 = vmatpush.msra.mxu0 0.0
  %2725 = vmatpush.msra.mxu0 0.0
  %2726 = vmatpush.msra.mxu0 %v2706
  %2727 = vmatmul.f32.gmra.mxu0 %v2709
  %v2728 = vpop.f32.mrf.mxu0
  %v2729 = vadd.f32 0.0, %v2728
  %2730 = vdwg.mxu0
  %2731 = vrot.lane.b32.xlu0 %v518, 56
  %v2732 = vpop.permute.xlu0 %2731
  %v2735 = vsel %vm559, %v2472, 0
  %2737 = vmatpush.msra.mxu0 0.0
  %2738 = vmatpush.msra.mxu0 0.0
  %2739 = vmatpush.msra.mxu0 0.0
  %2740 = vmatpush.msra.mxu0 0.0
  %2741 = vmatpush.msra.mxu0 0.0
  %2742 = vmatpush.msra.mxu0 0.0
  %2743 = vmatpush.msra.mxu0 0.0
  %2744 = vmatpush.msra.mxu0 0.0
  %2745 = vmatpush.msra.mxu0 0.0
  %2746 = vmatpush.msra.mxu0 0.0
  %2747 = vmatpush.msra.mxu0 0.0
  %2748 = vmatpush.msra.mxu0 0.0
  %2749 = vmatpush.msra.mxu0 0.0
  %2750 = vmatpush.msra.mxu0 0.0
  %2751 = vmatpush.msra.mxu0 0.0
  %2752 = vmatpush.msra.mxu0 %v2732
  %2753 = vmatmul.f32.gmra.mxu0 %v2735
  %v2754 = vpop.f32.mrf.mxu0
  %v2755 = vadd.f32 0.0, %v2754
  %2756 = vdwg.mxu0
  %2757 = vrot.lane.b32.xlu0 %v521, 56
  %v2758 = vpop.permute.xlu0 %2757
  %v2761 = vsel %vm559, %v2487, 0
  %2763 = vmatpush.msra.mxu0 0.0
  %2764 = vmatpush.msra.mxu0 0.0
  %2765 = vmatpush.msra.mxu0 0.0
  %2766 = vmatpush.msra.mxu0 0.0
  %2767 = vmatpush.msra.mxu0 0.0
  %2768 = vmatpush.msra.mxu0 0.0
  %2769 = vmatpush.msra.mxu0 0.0
  %2770 = vmatpush.msra.mxu0 0.0
  %2771 = vmatpush.msra.mxu0 0.0
  %2772 = vmatpush.msra.mxu0 0.0
  %2773 = vmatpush.msra.mxu0 0.0
  %2774 = vmatpush.msra.mxu0 0.0
  %2775 = vmatpush.msra.mxu0 0.0
  %2776 = vmatpush.msra.mxu0 0.0
  %2777 = vmatpush.msra.mxu0 0.0
  %2778 = vmatpush.msra.mxu0 %v2758
  %2779 = vmatmul.f32.gmra.mxu0 %v2761
  %v2780 = vpop.f32.mrf.mxu0
  %v2781 = vadd.f32 0.0, %v2780
  %2782 = vdwg.mxu0
  %2783 = vrot.lane.b32.xlu0 %v524, 56
  %v2784 = vpop.permute.xlu0 %2783
  %v2787 = vsel %vm559, %v2502, 0
  %2789 = vmatpush.msra.mxu0 0.0
  %2790 = vmatpush.msra.mxu0 0.0
  %2791 = vmatpush.msra.mxu0 0.0
  %2792 = vmatpush.msra.mxu0 0.0
  %2793 = vmatpush.msra.mxu0 0.0
  %2794 = vmatpush.msra.mxu0 0.0
  %2795 = vmatpush.msra.mxu0 0.0
  %2796 = vmatpush.msra.mxu0 0.0
  %2797 = vmatpush.msra.mxu0 0.0
  %2798 = vmatpush.msra.mxu0 0.0
  %2799 = vmatpush.msra.mxu0 0.0
  %2800 = vmatpush.msra.mxu0 0.0
  %2801 = vmatpush.msra.mxu0 0.0
  %2802 = vmatpush.msra.mxu0 0.0
  %2803 = vmatpush.msra.mxu0 0.0
  %2804 = vmatpush.msra.mxu0 %v2784
  %2805 = vmatmul.f32.gmra.mxu0 %v2787
  %v2806 = vpop.f32.mrf.mxu0
  %v2807 = vadd.f32 0.0, %v2806
  %2808 = vdwg.mxu0
  %2809 = vrot.lane.b32.xlu0 %v527, 56
  %v2810 = vpop.permute.xlu0 %2809
  %v2813 = vsel %vm559, %v2517, 0
  %2815 = vmatpush.msra.mxu0 0.0
  %2816 = vmatpush.msra.mxu0 0.0
  %2817 = vmatpush.msra.mxu0 0.0
  %2818 = vmatpush.msra.mxu0 0.0
  %2819 = vmatpush.msra.mxu0 0.0
  %2820 = vmatpush.msra.mxu0 0.0
  %2821 = vmatpush.msra.mxu0 0.0
  %2822 = vmatpush.msra.mxu0 0.0
  %2823 = vmatpush.msra.mxu0 0.0
  %2824 = vmatpush.msra.mxu0 0.0
  %2825 = vmatpush.msra.mxu0 0.0
  %2826 = vmatpush.msra.mxu0 0.0
  %2827 = vmatpush.msra.mxu0 0.0
  %2828 = vmatpush.msra.mxu0 0.0
  %2829 = vmatpush.msra.mxu0 0.0
  %2830 = vmatpush.msra.mxu0 %v2810
  %2831 = vmatmul.f32.gmra.mxu0 %v2813
  %v2832 = vpop.f32.mrf.mxu0
  %v2833 = vadd.f32 0.0, %v2832
  %2834 = vdwg.mxu0
  %2835 = vrot.lane.b32.xlu0 %v530, 56
  %v2836 = vpop.permute.xlu0 %2835
  %v2839 = vsel %vm559, %v2532, 0
  %2841 = vmatpush.msra.mxu0 0.0
  %2842 = vmatpush.msra.mxu0 0.0
  %2843 = vmatpush.msra.mxu0 0.0
  %2844 = vmatpush.msra.mxu0 0.0
  %2845 = vmatpush.msra.mxu0 0.0
  %2846 = vmatpush.msra.mxu0 0.0
  %2847 = vmatpush.msra.mxu0 0.0
  %2848 = vmatpush.msra.mxu0 0.0
  %2849 = vmatpush.msra.mxu0 0.0
  %2850 = vmatpush.msra.mxu0 0.0
  %2851 = vmatpush.msra.mxu0 0.0
  %2852 = vmatpush.msra.mxu0 0.0
  %2853 = vmatpush.msra.mxu0 0.0
  %2854 = vmatpush.msra.mxu0 0.0
  %2855 = vmatpush.msra.mxu0 0.0
  %2856 = vmatpush.msra.mxu0 %v2836
  %2857 = vmatmul.f32.gmra.mxu0 %v2839
  %v2858 = vpop.f32.mrf.mxu0
  %v2859 = vadd.f32 0.0, %v2858
  %2860 = vdwg.mxu0
  %2861 = vrot.lane.b32.xlu0 %v533, 56
  %v2862 = vpop.permute.xlu0 %2861
  %v2865 = vsel %vm559, %v2547, 0
  %2867 = vmatpush.msra.mxu0 0.0
  %2868 = vmatpush.msra.mxu0 0.0
  %2869 = vmatpush.msra.mxu0 0.0
  %2870 = vmatpush.msra.mxu0 0.0
  %2871 = vmatpush.msra.mxu0 0.0
  %2872 = vmatpush.msra.mxu0 0.0
  %2873 = vmatpush.msra.mxu0 0.0
  %2874 = vmatpush.msra.mxu0 0.0
  %2875 = vmatpush.msra.mxu0 0.0
  %2876 = vmatpush.msra.mxu0 0.0
  %2877 = vmatpush.msra.mxu0 0.0
  %2878 = vmatpush.msra.mxu0 0.0
  %2879 = vmatpush.msra.mxu0 0.0
  %2880 = vmatpush.msra.mxu0 0.0
  %2881 = vmatpush.msra.mxu0 0.0
  %2882 = vmatpush.msra.mxu0 %v2862
  %2883 = vmatmul.f32.gmra.mxu0 %v2865
  %v2884 = vpop.f32.mrf.mxu0
  %v2885 = vadd.f32 0.0, %v2884
  %2886 = vdwg.mxu0
  %2887 = vrot.lane.b32.xlu0 %v536, 56
  %v2888 = vpop.permute.xlu0 %2887
  %v2891 = vsel %vm559, %v2562, 0
  %2893 = vmatpush.msra.mxu0 0.0
  %2894 = vmatpush.msra.mxu0 0.0
  %2895 = vmatpush.msra.mxu0 0.0
  %2896 = vmatpush.msra.mxu0 0.0
  %2897 = vmatpush.msra.mxu0 0.0
  %2898 = vmatpush.msra.mxu0 0.0
  %2899 = vmatpush.msra.mxu0 0.0
  %2900 = vmatpush.msra.mxu0 0.0
  %2901 = vmatpush.msra.mxu0 0.0
  %2902 = vmatpush.msra.mxu0 0.0
  %2903 = vmatpush.msra.mxu0 0.0
  %2904 = vmatpush.msra.mxu0 0.0
  %2905 = vmatpush.msra.mxu0 0.0
  %2906 = vmatpush.msra.mxu0 0.0
  %2907 = vmatpush.msra.mxu0 0.0
  %2908 = vmatpush.msra.mxu0 %v2888
  %2909 = vmatmul.f32.gmra.mxu0 %v2891
  %v2910 = vpop.f32.mrf.mxu0
  %v2911 = vadd.f32 0.0, %v2910
  %2912 = vdwg.mxu0
  %2913 = vrot.lane.b32.xlu0 %v539, 56
  %v2914 = vpop.permute.xlu0 %2913
  %v2917 = vsel %vm559, %v2577, 0
  %2919 = vmatpush.msra.mxu0 0.0
  %2920 = vmatpush.msra.mxu0 0.0
  %2921 = vmatpush.msra.mxu0 0.0
  %2922 = vmatpush.msra.mxu0 0.0
  %2923 = vmatpush.msra.mxu0 0.0
  %2924 = vmatpush.msra.mxu0 0.0
  %2925 = vmatpush.msra.mxu0 0.0
  %2926 = vmatpush.msra.mxu0 0.0
  %2927 = vmatpush.msra.mxu0 0.0
  %2928 = vmatpush.msra.mxu0 0.0
  %2929 = vmatpush.msra.mxu0 0.0
  %2930 = vmatpush.msra.mxu0 0.0
  %2931 = vmatpush.msra.mxu0 0.0
  %2932 = vmatpush.msra.mxu0 0.0
  %2933 = vmatpush.msra.mxu0 0.0
  %2934 = vmatpush.msra.mxu0 %v2914
  %2935 = vmatmul.f32.gmra.mxu0 %v2917
  %v2936 = vpop.f32.mrf.mxu0
  %v2937 = vadd.f32 0.0, %v2936
  %2938 = vdwg.mxu0
  %2939 = vrot.lane.b32.xlu0 %v542, 56
  %v2940 = vpop.permute.xlu0 %2939
  %v2943 = vsel %vm559, %v2592, 0
  %2945 = vmatpush.msra.mxu0 0.0
  %2946 = vmatpush.msra.mxu0 0.0
  %2947 = vmatpush.msra.mxu0 0.0
  %2948 = vmatpush.msra.mxu0 0.0
  %2949 = vmatpush.msra.mxu0 0.0
  %2950 = vmatpush.msra.mxu0 0.0
  %2951 = vmatpush.msra.mxu0 0.0
  %2952 = vmatpush.msra.mxu0 0.0
  %2953 = vmatpush.msra.mxu0 0.0
  %2954 = vmatpush.msra.mxu0 0.0
  %2955 = vmatpush.msra.mxu0 0.0
  %2956 = vmatpush.msra.mxu0 0.0
  %2957 = vmatpush.msra.mxu0 0.0
  %2958 = vmatpush.msra.mxu0 0.0
  %2959 = vmatpush.msra.mxu0 0.0
  %2960 = vmatpush.msra.mxu0 %v2940
  %2961 = vmatmul.f32.gmra.mxu0 %v2943
  %v2962 = vpop.f32.mrf.mxu0
  %v2963 = vadd.f32 0.0, %v2962
  %2964 = vdwg.mxu0
  %2965 = vrot.lane.b32.xlu0 %v545, 56
  %v2966 = vpop.permute.xlu0 %2965
  %v2969 = vsel %vm559, %v2607, 0
  %2971 = vmatpush.msra.mxu0 0.0
  %2972 = vmatpush.msra.mxu0 0.0
  %2973 = vmatpush.msra.mxu0 0.0
  %2974 = vmatpush.msra.mxu0 0.0
  %2975 = vmatpush.msra.mxu0 0.0
  %2976 = vmatpush.msra.mxu0 0.0
  %2977 = vmatpush.msra.mxu0 0.0
  %2978 = vmatpush.msra.mxu0 0.0
  %2979 = vmatpush.msra.mxu0 0.0
  %2980 = vmatpush.msra.mxu0 0.0
  %2981 = vmatpush.msra.mxu0 0.0
  %2982 = vmatpush.msra.mxu0 0.0
  %2983 = vmatpush.msra.mxu0 0.0
  %2984 = vmatpush.msra.mxu0 0.0
  %2985 = vmatpush.msra.mxu0 0.0
  %2986 = vmatpush.msra.mxu0 %v2966
  %2987 = vmatmul.f32.gmra.mxu0 %v2969
  %v2988 = vpop.f32.mrf.mxu0
  %v2989 = vadd.f32 0.0, %v2988
  %2990 = vdwg.mxu0
  %2991 = vrot.lane.b32.xlu0 %v548, 56
  %v2992 = vpop.permute.xlu0 %2991
  %v2995 = vsel %vm559, %v2622, 0
  %2997 = vmatpush.msra.mxu0 0.0
  %2998 = vmatpush.msra.mxu0 0.0
  %2999 = vmatpush.msra.mxu0 0.0
  %3000 = vmatpush.msra.mxu0 0.0
  %3001 = vmatpush.msra.mxu0 0.0
  %3002 = vmatpush.msra.mxu0 0.0
  %3003 = vmatpush.msra.mxu0 0.0
  %3004 = vmatpush.msra.mxu0 0.0
  %3005 = vmatpush.msra.mxu0 0.0
  %3006 = vmatpush.msra.mxu0 0.0
  %3007 = vmatpush.msra.mxu0 0.0
  %3008 = vmatpush.msra.mxu0 0.0
  %3009 = vmatpush.msra.mxu0 0.0
  %3010 = vmatpush.msra.mxu0 0.0
  %3011 = vmatpush.msra.mxu0 0.0
  %3012 = vmatpush.msra.mxu0 %v2992
  %3013 = vmatmul.f32.gmra.mxu0 %v2995
  %v3014 = vpop.f32.mrf.mxu0
  %v3015 = vadd.f32 0.0, %v3014
  %3016 = vdwg.mxu0
  %3017 = vrot.lane.b32.xlu0 %v551, 56
  %v3018 = vpop.permute.xlu0 %3017
  %v3021 = vsel %vm559, %v2637, 0
  %3023 = vmatpush.msra.mxu0 0.0
  %3024 = vmatpush.msra.mxu0 0.0
  %3025 = vmatpush.msra.mxu0 0.0
  %3026 = vmatpush.msra.mxu0 0.0
  %3027 = vmatpush.msra.mxu0 0.0
  %3028 = vmatpush.msra.mxu0 0.0
  %3029 = vmatpush.msra.mxu0 0.0
  %3030 = vmatpush.msra.mxu0 0.0
  %3031 = vmatpush.msra.mxu0 0.0
  %3032 = vmatpush.msra.mxu0 0.0
  %3033 = vmatpush.msra.mxu0 0.0
  %3034 = vmatpush.msra.mxu0 0.0
  %3035 = vmatpush.msra.mxu0 0.0
  %3036 = vmatpush.msra.mxu0 0.0
  %3037 = vmatpush.msra.mxu0 0.0
  %3038 = vmatpush.msra.mxu0 %v3018
  %3039 = vmatmul.f32.gmra.mxu0 %v3021
  %v3040 = vpop.f32.mrf.mxu0
  %v3041 = vadd.f32 0.0, %v3040
  %3042 = vdwg.mxu0
  %3043 = vrot.lane.b32.xlu0 %v554, 56
  %v3044 = vpop.permute.xlu0 %3043
  %v3047 = vsel %vm559, %v2652, 0
  %3049 = vmatpush.msra.mxu0 0.0
  %3050 = vmatpush.msra.mxu0 0.0
  %3051 = vmatpush.msra.mxu0 0.0
  %3052 = vmatpush.msra.mxu0 0.0
  %3053 = vmatpush.msra.mxu0 0.0
  %3054 = vmatpush.msra.mxu0 0.0
  %3055 = vmatpush.msra.mxu0 0.0
  %3056 = vmatpush.msra.mxu0 0.0
  %3057 = vmatpush.msra.mxu0 0.0
  %3058 = vmatpush.msra.mxu0 0.0
  %3059 = vmatpush.msra.mxu0 0.0
  %3060 = vmatpush.msra.mxu0 0.0
  %3061 = vmatpush.msra.mxu0 0.0
  %3062 = vmatpush.msra.mxu0 0.0
  %3063 = vmatpush.msra.mxu0 0.0
  %3064 = vmatpush.msra.mxu0 %v3044
  %3065 = vmatmul.f32.gmra.mxu0 %v3047
  %v3066 = vpop.f32.mrf.mxu0
  %v3067 = vadd.f32 0.0, %v3066
  %3068 = vdwg.mxu0
  %3069 = vrot.lane.b32.xlu0 %v509, 112
  %v3070 = vpop.permute.xlu0 %3069
  %3071 = vrot.lane.b32.xlu0 %v509, 80
  %v3072 = vpop.permute.xlu0 %3071
  %v3073 = vsel %vm559, %v3070, 0
  %v3075 = vsel %vm559, %v3072, 0
  %3077 = vmatpush.xpose.msra.mxu0 0.0
  %3078 = vmatpush.xpose.msra.mxu0 0.0
  %3079 = vmatpush.xpose.msra.mxu0 0.0
  %3080 = vmatpush.xpose.msra.mxu0 0.0
  %3081 = vmatpush.xpose.msra.mxu0 0.0
  %3082 = vmatpush.xpose.msra.mxu0 0.0
  %3083 = vmatpush.xpose.msra.mxu0 0.0
  %3084 = vmatpush.xpose.msra.mxu0 0.0
  %3085 = vmatpush.xpose.msra.mxu0 0.0
  %3086 = vmatpush.xpose.msra.mxu0 0.0
  %3087 = vmatpush.xpose.msra.mxu0 0.0
  %3088 = vmatpush.xpose.msra.mxu0 0.0
  %3089 = vmatpush.xpose.msra.mxu0 0.0
  %3090 = vmatpush.xpose.msra.mxu0 0.0
  %3091 = vmatpush.xpose.msra.mxu0 0.0
  %3092 = vmatpush.xpose.msra.mxu0 %v3075
  %3093 = vmatmul.f32.gmra.mxu0 %v3073
  %v3094 = vpop.f32.mrf.mxu0
  %v3095 = vadd.f32 0.0, %v3094
  %3096 = vdwg.mxu0
  %3097 = vrot.lane.b32.xlu0 %v512, 112
  %v3098 = vpop.permute.xlu0 %3097
  %3099 = vrot.lane.b32.xlu0 %v512, 80
  %v3100 = vpop.permute.xlu0 %3099
  %v3101 = vsel %vm559, %v3098, 0
  %v3103 = vsel %vm559, %v3100, 0
  %3105 = vmatpush.xpose.msra.mxu0 0.0
  %3106 = vmatpush.xpose.msra.mxu0 0.0
  %3107 = vmatpush.xpose.msra.mxu0 0.0
  %3108 = vmatpush.xpose.msra.mxu0 0.0
  %3109 = vmatpush.xpose.msra.mxu0 0.0
  %3110 = vmatpush.xpose.msra.mxu0 0.0
  %3111 = vmatpush.xpose.msra.mxu0 0.0
  %3112 = vmatpush.xpose.msra.mxu0 0.0
  %3113 = vmatpush.xpose.msra.mxu0 0.0
  %3114 = vmatpush.xpose.msra.mxu0 0.0
  %3115 = vmatpush.xpose.msra.mxu0 0.0
  %3116 = vmatpush.xpose.msra.mxu0 0.0
  %3117 = vmatpush.xpose.msra.mxu0 0.0
  %3118 = vmatpush.xpose.msra.mxu0 0.0
  %3119 = vmatpush.xpose.msra.mxu0 0.0
  %3120 = vmatpush.xpose.msra.mxu0 %v3103
  %3121 = vmatmul.f32.gmra.mxu0 %v3101
  %v3122 = vpop.f32.mrf.mxu0
  %v3123 = vadd.f32 0.0, %v3122
  %3124 = vdwg.mxu0
  %3125 = vrot.lane.b32.xlu0 %v515, 112
  %v3126 = vpop.permute.xlu0 %3125
  %3127 = vrot.lane.b32.xlu0 %v515, 80
  %v3128 = vpop.permute.xlu0 %3127
  %v3129 = vsel %vm559, %v3126, 0
  %v3131 = vsel %vm559, %v3128, 0
  %3133 = vmatpush.xpose.msra.mxu0 0.0
  %3134 = vmatpush.xpose.msra.mxu0 0.0
  %3135 = vmatpush.xpose.msra.mxu0 0.0
  %3136 = vmatpush.xpose.msra.mxu0 0.0
  %3137 = vmatpush.xpose.msra.mxu0 0.0
  %3138 = vmatpush.xpose.msra.mxu0 0.0
  %3139 = vmatpush.xpose.msra.mxu0 0.0
  %3140 = vmatpush.xpose.msra.mxu0 0.0
  %3141 = vmatpush.xpose.msra.mxu0 0.0
  %3142 = vmatpush.xpose.msra.mxu0 0.0
  %3143 = vmatpush.xpose.msra.mxu0 0.0
  %3144 = vmatpush.xpose.msra.mxu0 0.0
  %3145 = vmatpush.xpose.msra.mxu0 0.0
  %3146 = vmatpush.xpose.msra.mxu0 0.0
  %3147 = vmatpush.xpose.msra.mxu0 0.0
  %3148 = vmatpush.xpose.msra.mxu0 %v3131
  %3149 = vmatmul.f32.gmra.mxu0 %v3129
  %v3150 = vpop.f32.mrf.mxu0
  %v3151 = vadd.f32 0.0, %v3150
  %3152 = vdwg.mxu0
  %3153 = vrot.lane.b32.xlu0 %v518, 112
  %v3154 = vpop.permute.xlu0 %3153
  %3155 = vrot.lane.b32.xlu0 %v518, 80
  %v3156 = vpop.permute.xlu0 %3155
  %v3157 = vsel %vm559, %v3154, 0
  %v3159 = vsel %vm559, %v3156, 0
  %3161 = vmatpush.xpose.msra.mxu0 0.0
  %3162 = vmatpush.xpose.msra.mxu0 0.0
  %3163 = vmatpush.xpose.msra.mxu0 0.0
  %3164 = vmatpush.xpose.msra.mxu0 0.0
  %3165 = vmatpush.xpose.msra.mxu0 0.0
  %3166 = vmatpush.xpose.msra.mxu0 0.0
  %3167 = vmatpush.xpose.msra.mxu0 0.0
  %3168 = vmatpush.xpose.msra.mxu0 0.0
  %3169 = vmatpush.xpose.msra.mxu0 0.0
  %3170 = vmatpush.xpose.msra.mxu0 0.0
  %3171 = vmatpush.xpose.msra.mxu0 0.0
  %3172 = vmatpush.xpose.msra.mxu0 0.0
  %3173 = vmatpush.xpose.msra.mxu0 0.0
  %3174 = vmatpush.xpose.msra.mxu0 0.0
  %3175 = vmatpush.xpose.msra.mxu0 0.0
  %3176 = vmatpush.xpose.msra.mxu0 %v3159
  %3177 = vmatmul.f32.gmra.mxu0 %v3157
  %v3178 = vpop.f32.mrf.mxu0
  %v3179 = vadd.f32 0.0, %v3178
  %3180 = vdwg.mxu0
  %3181 = vrot.lane.b32.xlu0 %v521, 112
  %v3182 = vpop.permute.xlu0 %3181
  %3183 = vrot.lane.b32.xlu0 %v521, 80
  %v3184 = vpop.permute.xlu0 %3183
  %v3185 = vsel %vm559, %v3182, 0
  %v3187 = vsel %vm559, %v3184, 0
  %3189 = vmatpush.xpose.msra.mxu0 0.0
  %3190 = vmatpush.xpose.msra.mxu0 0.0
  %3191 = vmatpush.xpose.msra.mxu0 0.0
  %3192 = vmatpush.xpose.msra.mxu0 0.0
  %3193 = vmatpush.xpose.msra.mxu0 0.0
  %3194 = vmatpush.xpose.msra.mxu0 0.0
  %3195 = vmatpush.xpose.msra.mxu0 0.0
  %3196 = vmatpush.xpose.msra.mxu0 0.0
  %3197 = vmatpush.xpose.msra.mxu0 0.0
  %3198 = vmatpush.xpose.msra.mxu0 0.0
  %3199 = vmatpush.xpose.msra.mxu0 0.0
  %3200 = vmatpush.xpose.msra.mxu0 0.0
  %3201 = vmatpush.xpose.msra.mxu0 0.0
  %3202 = vmatpush.xpose.msra.mxu0 0.0
  %3203 = vmatpush.xpose.msra.mxu0 0.0
  %3204 = vmatpush.xpose.msra.mxu0 %v3187
  %3205 = vmatmul.f32.gmra.mxu0 %v3185
  %v3206 = vpop.f32.mrf.mxu0
  %v3207 = vadd.f32 0.0, %v3206
  %3208 = vdwg.mxu0
  %3209 = vrot.lane.b32.xlu0 %v524, 112
  %v3210 = vpop.permute.xlu0 %3209
  %3211 = vrot.lane.b32.xlu0 %v524, 80
  %v3212 = vpop.permute.xlu0 %3211
  %v3213 = vsel %vm559, %v3210, 0
  %v3215 = vsel %vm559, %v3212, 0
  %3217 = vmatpush.xpose.msra.mxu0 0.0
  %3218 = vmatpush.xpose.msra.mxu0 0.0
  %3219 = vmatpush.xpose.msra.mxu0 0.0
  %3220 = vmatpush.xpose.msra.mxu0 0.0
  %3221 = vmatpush.xpose.msra.mxu0 0.0
  %3222 = vmatpush.xpose.msra.mxu0 0.0
  %3223 = vmatpush.xpose.msra.mxu0 0.0
  %3224 = vmatpush.xpose.msra.mxu0 0.0
  %3225 = vmatpush.xpose.msra.mxu0 0.0
  %3226 = vmatpush.xpose.msra.mxu0 0.0
  %3227 = vmatpush.xpose.msra.mxu0 0.0
  %3228 = vmatpush.xpose.msra.mxu0 0.0
  %3229 = vmatpush.xpose.msra.mxu0 0.0
  %3230 = vmatpush.xpose.msra.mxu0 0.0
  %3231 = vmatpush.xpose.msra.mxu0 0.0
  %3232 = vmatpush.xpose.msra.mxu0 %v3215
  %3233 = vmatmul.f32.gmra.mxu0 %v3213
  %v3234 = vpop.f32.mrf.mxu0
  %v3235 = vadd.f32 0.0, %v3234
  %3236 = vdwg.mxu0
  %3237 = vrot.lane.b32.xlu0 %v527, 112
  %v3238 = vpop.permute.xlu0 %3237
  %3239 = vrot.lane.b32.xlu0 %v527, 80
  %v3240 = vpop.permute.xlu0 %3239
  %v3241 = vsel %vm559, %v3238, 0
  %v3243 = vsel %vm559, %v3240, 0
  %3245 = vmatpush.xpose.msra.mxu0 0.0
  %3246 = vmatpush.xpose.msra.mxu0 0.0
  %3247 = vmatpush.xpose.msra.mxu0 0.0
  %3248 = vmatpush.xpose.msra.mxu0 0.0
  %3249 = vmatpush.xpose.msra.mxu0 0.0
  %3250 = vmatpush.xpose.msra.mxu0 0.0
  %3251 = vmatpush.xpose.msra.mxu0 0.0
  %3252 = vmatpush.xpose.msra.mxu0 0.0
  %3253 = vmatpush.xpose.msra.mxu0 0.0
  %3254 = vmatpush.xpose.msra.mxu0 0.0
  %3255 = vmatpush.xpose.msra.mxu0 0.0
  %3256 = vmatpush.xpose.msra.mxu0 0.0
  %3257 = vmatpush.xpose.msra.mxu0 0.0
  %3258 = vmatpush.xpose.msra.mxu0 0.0
  %3259 = vmatpush.xpose.msra.mxu0 0.0
  %3260 = vmatpush.xpose.msra.mxu0 %v3243
  %3261 = vmatmul.f32.gmra.mxu0 %v3241
  %v3262 = vpop.f32.mrf.mxu0
  %v3263 = vadd.f32 0.0, %v3262
  %3264 = vdwg.mxu0
  %3265 = vrot.lane.b32.xlu0 %v530, 112
  %v3266 = vpop.permute.xlu0 %3265
  %3267 = vrot.lane.b32.xlu0 %v530, 80
  %v3268 = vpop.permute.xlu0 %3267
  %v3269 = vsel %vm559, %v3266, 0
  %v3271 = vsel %vm559, %v3268, 0
  %3273 = vmatpush.xpose.msra.mxu0 0.0
  %3274 = vmatpush.xpose.msra.mxu0 0.0
  %3275 = vmatpush.xpose.msra.mxu0 0.0
  %3276 = vmatpush.xpose.msra.mxu0 0.0
  %3277 = vmatpush.xpose.msra.mxu0 0.0
  %3278 = vmatpush.xpose.msra.mxu0 0.0
  %3279 = vmatpush.xpose.msra.mxu0 0.0
  %3280 = vmatpush.xpose.msra.mxu0 0.0
  %3281 = vmatpush.xpose.msra.mxu0 0.0
  %3282 = vmatpush.xpose.msra.mxu0 0.0
  %3283 = vmatpush.xpose.msra.mxu0 0.0
  %3284 = vmatpush.xpose.msra.mxu0 0.0
  %3285 = vmatpush.xpose.msra.mxu0 0.0
  %3286 = vmatpush.xpose.msra.mxu0 0.0
  %3287 = vmatpush.xpose.msra.mxu0 0.0
  %3288 = vmatpush.xpose.msra.mxu0 %v3271
  %3289 = vmatmul.f32.gmra.mxu0 %v3269
  %v3290 = vpop.f32.mrf.mxu0
  %v3291 = vadd.f32 0.0, %v3290
  %3292 = vdwg.mxu0
  %3293 = vrot.lane.b32.xlu0 %v533, 112
  %v3294 = vpop.permute.xlu0 %3293
  %3295 = vrot.lane.b32.xlu0 %v533, 80
  %v3296 = vpop.permute.xlu0 %3295
  %v3297 = vsel %vm559, %v3294, 0
  %v3299 = vsel %vm559, %v3296, 0
  %3301 = vmatpush.xpose.msra.mxu0 0.0
  %3302 = vmatpush.xpose.msra.mxu0 0.0
  %3303 = vmatpush.xpose.msra.mxu0 0.0
  %3304 = vmatpush.xpose.msra.mxu0 0.0
  %3305 = vmatpush.xpose.msra.mxu0 0.0
  %3306 = vmatpush.xpose.msra.mxu0 0.0
  %3307 = vmatpush.xpose.msra.mxu0 0.0
  %3308 = vmatpush.xpose.msra.mxu0 0.0
  %3309 = vmatpush.xpose.msra.mxu0 0.0
  %3310 = vmatpush.xpose.msra.mxu0 0.0
  %3311 = vmatpush.xpose.msra.mxu0 0.0
  %3312 = vmatpush.xpose.msra.mxu0 0.0
  %3313 = vmatpush.xpose.msra.mxu0 0.0
  %3314 = vmatpush.xpose.msra.mxu0 0.0
  %3315 = vmatpush.xpose.msra.mxu0 0.0
  %3316 = vmatpush.xpose.msra.mxu0 %v3299
  %3317 = vmatmul.f32.gmra.mxu0 %v3297
  %v3318 = vpop.f32.mrf.mxu0
  %v3319 = vadd.f32 0.0, %v3318
  %3320 = vdwg.mxu0
  %3321 = vrot.lane.b32.xlu0 %v536, 112
  %v3322 = vpop.permute.xlu0 %3321
  %3323 = vrot.lane.b32.xlu0 %v536, 80
  %v3324 = vpop.permute.xlu0 %3323
  %v3325 = vsel %vm559, %v3322, 0
  %v3327 = vsel %vm559, %v3324, 0
  %3329 = vmatpush.xpose.msra.mxu0 0.0
  %3330 = vmatpush.xpose.msra.mxu0 0.0
  %3331 = vmatpush.xpose.msra.mxu0 0.0
  %3332 = vmatpush.xpose.msra.mxu0 0.0
  %3333 = vmatpush.xpose.msra.mxu0 0.0
  %3334 = vmatpush.xpose.msra.mxu0 0.0
  %3335 = vmatpush.xpose.msra.mxu0 0.0
  %3336 = vmatpush.xpose.msra.mxu0 0.0
  %3337 = vmatpush.xpose.msra.mxu0 0.0
  %3338 = vmatpush.xpose.msra.mxu0 0.0
  %3339 = vmatpush.xpose.msra.mxu0 0.0
  %3340 = vmatpush.xpose.msra.mxu0 0.0
  %3341 = vmatpush.xpose.msra.mxu0 0.0
  %3342 = vmatpush.xpose.msra.mxu0 0.0
  %3343 = vmatpush.xpose.msra.mxu0 0.0
  %3344 = vmatpush.xpose.msra.mxu0 %v3327
  %3345 = vmatmul.f32.gmra.mxu0 %v3325
  %v3346 = vpop.f32.mrf.mxu0
  %v3347 = vadd.f32 0.0, %v3346
  %3348 = vdwg.mxu0
  %3349 = vrot.lane.b32.xlu0 %v539, 112
  %v3350 = vpop.permute.xlu0 %3349
  %3351 = vrot.lane.b32.xlu0 %v539, 80
  %v3352 = vpop.permute.xlu0 %3351
  %v3353 = vsel %vm559, %v3350, 0
  %v3355 = vsel %vm559, %v3352, 0
  %3357 = vmatpush.xpose.msra.mxu0 0.0
  %3358 = vmatpush.xpose.msra.mxu0 0.0
  %3359 = vmatpush.xpose.msra.mxu0 0.0
  %3360 = vmatpush.xpose.msra.mxu0 0.0
  %3361 = vmatpush.xpose.msra.mxu0 0.0
  %3362 = vmatpush.xpose.msra.mxu0 0.0
  %3363 = vmatpush.xpose.msra.mxu0 0.0
  %3364 = vmatpush.xpose.msra.mxu0 0.0
  %3365 = vmatpush.xpose.msra.mxu0 0.0
  %3366 = vmatpush.xpose.msra.mxu0 0.0
  %3367 = vmatpush.xpose.msra.mxu0 0.0
  %3368 = vmatpush.xpose.msra.mxu0 0.0
  %3369 = vmatpush.xpose.msra.mxu0 0.0
  %3370 = vmatpush.xpose.msra.mxu0 0.0
  %3371 = vmatpush.xpose.msra.mxu0 0.0
  %3372 = vmatpush.xpose.msra.mxu0 %v3355
  %3373 = vmatmul.f32.gmra.mxu0 %v3353
  %v3374 = vpop.f32.mrf.mxu0
  %v3375 = vadd.f32 0.0, %v3374
  %3376 = vdwg.mxu0
  %3377 = vrot.lane.b32.xlu0 %v542, 112
  %v3378 = vpop.permute.xlu0 %3377
  %3379 = vrot.lane.b32.xlu0 %v542, 80
  %v3380 = vpop.permute.xlu0 %3379
  %v3381 = vsel %vm559, %v3378, 0
  %v3383 = vsel %vm559, %v3380, 0
  %3385 = vmatpush.xpose.msra.mxu0 0.0
  %3386 = vmatpush.xpose.msra.mxu0 0.0
  %3387 = vmatpush.xpose.msra.mxu0 0.0
  %3388 = vmatpush.xpose.msra.mxu0 0.0
  %3389 = vmatpush.xpose.msra.mxu0 0.0
  %3390 = vmatpush.xpose.msra.mxu0 0.0
  %3391 = vmatpush.xpose.msra.mxu0 0.0
  %3392 = vmatpush.xpose.msra.mxu0 0.0
  %3393 = vmatpush.xpose.msra.mxu0 0.0
  %3394 = vmatpush.xpose.msra.mxu0 0.0
  %3395 = vmatpush.xpose.msra.mxu0 0.0
  %3396 = vmatpush.xpose.msra.mxu0 0.0
  %3397 = vmatpush.xpose.msra.mxu0 0.0
  %3398 = vmatpush.xpose.msra.mxu0 0.0
  %3399 = vmatpush.xpose.msra.mxu0 0.0
  %3400 = vmatpush.xpose.msra.mxu0 %v3383
  %3401 = vmatmul.f32.gmra.mxu0 %v3381
  %v3402 = vpop.f32.mrf.mxu0
  %v3403 = vadd.f32 0.0, %v3402
  %3404 = vdwg.mxu0
  %3405 = vrot.lane.b32.xlu0 %v545, 112
  %v3406 = vpop.permute.xlu0 %3405
  %3407 = vrot.lane.b32.xlu0 %v545, 80
  %v3408 = vpop.permute.xlu0 %3407
  %v3409 = vsel %vm559, %v3406, 0
  %v3411 = vsel %vm559, %v3408, 0
  %3413 = vmatpush.xpose.msra.mxu0 0.0
  %3414 = vmatpush.xpose.msra.mxu0 0.0
  %3415 = vmatpush.xpose.msra.mxu0 0.0
  %3416 = vmatpush.xpose.msra.mxu0 0.0
  %3417 = vmatpush.xpose.msra.mxu0 0.0
  %3418 = vmatpush.xpose.msra.mxu0 0.0
  %3419 = vmatpush.xpose.msra.mxu0 0.0
  %3420 = vmatpush.xpose.msra.mxu0 0.0
  %3421 = vmatpush.xpose.msra.mxu0 0.0
  %3422 = vmatpush.xpose.msra.mxu0 0.0
  %3423 = vmatpush.xpose.msra.mxu0 0.0
  %3424 = vmatpush.xpose.msra.mxu0 0.0
  %3425 = vmatpush.xpose.msra.mxu0 0.0
  %3426 = vmatpush.xpose.msra.mxu0 0.0
  %3427 = vmatpush.xpose.msra.mxu0 0.0
  %3428 = vmatpush.xpose.msra.mxu0 %v3411
  %3429 = vmatmul.f32.gmra.mxu0 %v3409
  %v3430 = vpop.f32.mrf.mxu0
  %v3431 = vadd.f32 0.0, %v3430
  %3432 = vdwg.mxu0
  %3433 = vrot.lane.b32.xlu0 %v548, 112
  %v3434 = vpop.permute.xlu0 %3433
  %3435 = vrot.lane.b32.xlu0 %v548, 80
  %v3436 = vpop.permute.xlu0 %3435
  %v3437 = vsel %vm559, %v3434, 0
  %v3439 = vsel %vm559, %v3436, 0
  %3441 = vmatpush.xpose.msra.mxu0 0.0
  %3442 = vmatpush.xpose.msra.mxu0 0.0
  %3443 = vmatpush.xpose.msra.mxu0 0.0
  %3444 = vmatpush.xpose.msra.mxu0 0.0
  %3445 = vmatpush.xpose.msra.mxu0 0.0
  %3446 = vmatpush.xpose.msra.mxu0 0.0
  %3447 = vmatpush.xpose.msra.mxu0 0.0
  %3448 = vmatpush.xpose.msra.mxu0 0.0
  %3449 = vmatpush.xpose.msra.mxu0 0.0
  %3450 = vmatpush.xpose.msra.mxu0 0.0
  %3451 = vmatpush.xpose.msra.mxu0 0.0
  %3452 = vmatpush.xpose.msra.mxu0 0.0
  %3453 = vmatpush.xpose.msra.mxu0 0.0
  %3454 = vmatpush.xpose.msra.mxu0 0.0
  %3455 = vmatpush.xpose.msra.mxu0 0.0
  %3456 = vmatpush.xpose.msra.mxu0 %v3439
  %3457 = vmatmul.f32.gmra.mxu0 %v3437
  %v3458 = vpop.f32.mrf.mxu0
  %v3459 = vadd.f32 0.0, %v3458
  %3460 = vdwg.mxu0
  %3461 = vrot.lane.b32.xlu0 %v551, 112
  %v3462 = vpop.permute.xlu0 %3461
  %3463 = vrot.lane.b32.xlu0 %v551, 80
  %v3464 = vpop.permute.xlu0 %3463
  %v3465 = vsel %vm559, %v3462, 0
  %v3467 = vsel %vm559, %v3464, 0
  %3469 = vmatpush.xpose.msra.mxu0 0.0
  %3470 = vmatpush.xpose.msra.mxu0 0.0
  %3471 = vmatpush.xpose.msra.mxu0 0.0
  %3472 = vmatpush.xpose.msra.mxu0 0.0
  %3473 = vmatpush.xpose.msra.mxu0 0.0
  %3474 = vmatpush.xpose.msra.mxu0 0.0
  %3475 = vmatpush.xpose.msra.mxu0 0.0
  %3476 = vmatpush.xpose.msra.mxu0 0.0
  %3477 = vmatpush.xpose.msra.mxu0 0.0
  %3478 = vmatpush.xpose.msra.mxu0 0.0
  %3479 = vmatpush.xpose.msra.mxu0 0.0
  %3480 = vmatpush.xpose.msra.mxu0 0.0
  %3481 = vmatpush.xpose.msra.mxu0 0.0
  %3482 = vmatpush.xpose.msra.mxu0 0.0
  %3483 = vmatpush.xpose.msra.mxu0 0.0
  %3484 = vmatpush.xpose.msra.mxu0 %v3467
  %3485 = vmatmul.f32.gmra.mxu0 %v3465
  %v3486 = vpop.f32.mrf.mxu0
  %v3487 = vadd.f32 0.0, %v3486
  %3488 = vdwg.mxu0
  %3489 = vrot.lane.b32.xlu0 %v554, 112
  %v3490 = vpop.permute.xlu0 %3489
  %3491 = vrot.lane.b32.xlu0 %v554, 80
  %v3492 = vpop.permute.xlu0 %3491
  %v3493 = vsel %vm559, %v3490, 0
  %v3495 = vsel %vm559, %v3492, 0
  %3497 = vmatpush.xpose.msra.mxu0 0.0
  %3498 = vmatpush.xpose.msra.mxu0 0.0
  %3499 = vmatpush.xpose.msra.mxu0 0.0
  %3500 = vmatpush.xpose.msra.mxu0 0.0
  %3501 = vmatpush.xpose.msra.mxu0 0.0
  %3502 = vmatpush.xpose.msra.mxu0 0.0
  %3503 = vmatpush.xpose.msra.mxu0 0.0
  %3504 = vmatpush.xpose.msra.mxu0 0.0
  %3505 = vmatpush.xpose.msra.mxu0 0.0
  %3506 = vmatpush.xpose.msra.mxu0 0.0
  %3507 = vmatpush.xpose.msra.mxu0 0.0
  %3508 = vmatpush.xpose.msra.mxu0 0.0
  %3509 = vmatpush.xpose.msra.mxu0 0.0
  %3510 = vmatpush.xpose.msra.mxu0 0.0
  %3511 = vmatpush.xpose.msra.mxu0 0.0
  %3512 = vmatpush.xpose.msra.mxu0 %v3495
  %3513 = vmatmul.f32.gmra.mxu0 %v3493
  %v3514 = vpop.f32.mrf.mxu0
  %v3515 = vadd.f32 0.0, %v3514
  %3516 = vdwg.mxu0
  %v3517 = vmul.f32 %v3095, 0.35355338
  %v3518 = vmul.f32 %v3123, 0.35355338
  %v3519 = vmul.f32 %v3151, 0.35355338
  %v3520 = vmul.f32 %v3179, 0.35355338
  %v3521 = vmul.f32 %v3207, 0.35355338
  %v3522 = vmul.f32 %v3235, 0.35355338
  %v3523 = vmul.f32 %v3263, 0.35355338
  %v3524 = vmul.f32 %v3291, 0.35355338
  %v3525 = vmul.f32 %v3319, 0.35355338
  %v3526 = vmul.f32 %v3347, 0.35355338
  %v3527 = vmul.f32 %v3375, 0.35355338
  %v3528 = vmul.f32 %v3403, 0.35355338
  %v3529 = vmul.f32 %v3431, 0.35355338
  %v3530 = vmul.f32 %v3459, 0.35355338
  %v3531 = vmul.f32 %v3487, 0.35355338
  %v3532 = vmul.f32 %v3515, 0.35355338
  %v3533 = vsel %vm559, %v3517, -inf
  %3534 = vmax.xlane.f32.xlu0 %v3533
  %v3535 = vpop.xlane.xlu0 %3534
  %v3536 = vsel %vm559, %v3518, -inf
  %3537 = vmax.xlane.f32.xlu0 %v3536
  %v3538 = vpop.xlane.xlu0 %3537
  %v3539 = vsel %vm559, %v3519, -inf
  %3540 = vmax.xlane.f32.xlu0 %v3539
  %v3541 = vpop.xlane.xlu0 %3540
  %v3542 = vsel %vm559, %v3520, -inf
  %3543 = vmax.xlane.f32.xlu0 %v3542
  %v3544 = vpop.xlane.xlu0 %3543
  %v3545 = vsel %vm559, %v3521, -inf
  %3546 = vmax.xlane.f32.xlu0 %v3545
  %v3547 = vpop.xlane.xlu0 %3546
  %v3548 = vsel %vm559, %v3522, -inf
  %3549 = vmax.xlane.f32.xlu0 %v3548
  %v3550 = vpop.xlane.xlu0 %3549
  %v3551 = vsel %vm559, %v3523, -inf
  %3552 = vmax.xlane.f32.xlu0 %v3551
  %v3553 = vpop.xlane.xlu0 %3552
  %v3554 = vsel %vm559, %v3524, -inf
  %3555 = vmax.xlane.f32.xlu0 %v3554
  %v3556 = vpop.xlane.xlu0 %3555
  %v3557 = vsel %vm559, %v3525, -inf
  %3558 = vmax.xlane.f32.xlu0 %v3557
  %v3559 = vpop.xlane.xlu0 %3558
  %v3560 = vsel %vm559, %v3526, -inf
  %3561 = vmax.xlane.f32.xlu0 %v3560
  %v3562 = vpop.xlane.xlu0 %3561
  %v3563 = vsel %vm559, %v3527, -inf
  %3564 = vmax.xlane.f32.xlu0 %v3563
  %v3565 = vpop.xlane.xlu0 %3564
  %v3566 = vsel %vm559, %v3528, -inf
  %3567 = vmax.xlane.f32.xlu0 %v3566
  %v3568 = vpop.xlane.xlu0 %3567
  %v3569 = vsel %vm559, %v3529, -inf
  %3570 = vmax.xlane.f32.xlu0 %v3569
  %v3571 = vpop.xlane.xlu0 %3570
  %v3572 = vsel %vm559, %v3530, -inf
  %3573 = vmax.xlane.f32.xlu0 %v3572
  %v3574 = vpop.xlane.xlu0 %3573
  %v3575 = vsel %vm559, %v3531, -inf
  %3576 = vmax.xlane.f32.xlu0 %v3575
  %v3577 = vpop.xlane.xlu0 %3576
  %v3578 = vsel %vm559, %v3532, -inf
  %3579 = vmax.xlane.f32.xlu0 %v3578
  %v3580 = vpop.xlane.xlu0 %3579
  %v3581 = vsub.f32 %v3517, %v3535
  %v3582 = vsub.f32 %v3518, %v3538
  %v3583 = vsub.f32 %v3519, %v3541
  %v3584 = vsub.f32 %v3520, %v3544
  %v3585 = vsub.f32 %v3521, %v3547
  %v3586 = vsub.f32 %v3522, %v3550
  %v3587 = vsub.f32 %v3523, %v3553
  %v3588 = vsub.f32 %v3524, %v3556
  %v3589 = vsub.f32 %v3525, %v3559
  %v3590 = vsub.f32 %v3526, %v3562
  %v3591 = vsub.f32 %v3527, %v3565
  %v3592 = vsub.f32 %v3528, %v3568
  %v3593 = vsub.f32 %v3529, %v3571
  %v3594 = vsub.f32 %v3530, %v3574
  %v3595 = vsub.f32 %v3531, %v3577
  %v3596 = vsub.f32 %v3532, %v3580
  %v3597 = vmul.f32 %v3581, 1.442695
  %v3598 = vpow.pop %v3597
  %v3599 = vmul.f32 %v3582, 1.442695
  %v3600 = vpow.pop %v3599
  %v3601 = vmul.f32 %v3583, 1.442695
  %v3602 = vpow.pop %v3601
  %v3603 = vmul.f32 %v3584, 1.442695
  %v3604 = vpow.pop %v3603
  %v3605 = vmul.f32 %v3585, 1.442695
  %v3606 = vpow.pop %v3605
  %v3607 = vmul.f32 %v3586, 1.442695
  %v3608 = vpow.pop %v3607
  %v3609 = vmul.f32 %v3587, 1.442695
  %v3610 = vpow.pop %v3609
  %v3611 = vmul.f32 %v3588, 1.442695
  %v3612 = vpow.pop %v3611
  %v3613 = vmul.f32 %v3589, 1.442695
  %v3614 = vpow.pop %v3613
  %v3615 = vmul.f32 %v3590, 1.442695
  %v3616 = vpow.pop %v3615
  %v3617 = vmul.f32 %v3591, 1.442695
  %v3618 = vpow.pop %v3617
  %v3619 = vmul.f32 %v3592, 1.442695
  %v3620 = vpow.pop %v3619
  %v3621 = vmul.f32 %v3593, 1.442695
  %v3622 = vpow.pop %v3621
  %v3623 = vmul.f32 %v3594, 1.442695
  %v3624 = vpow.pop %v3623
  %v3625 = vmul.f32 %v3595, 1.442695
  %v3626 = vpow.pop %v3625
  %v3627 = vmul.f32 %v3596, 1.442695
  %v3628 = vpow.pop %v3627
  %v3629 = vsel %vm559, %v3598, 0.0
  %3630 = vadd.xlane.f32.xlu0 %v3629
  %v3631 = vpop.xlane.xlu0 %3630
  %v3632 = vsel %vm559, %v3600, 0.0
  %3633 = vadd.xlane.f32.xlu0 %v3632
  %v3634 = vpop.xlane.xlu0 %3633
  %v3635 = vsel %vm559, %v3602, 0.0
  %3636 = vadd.xlane.f32.xlu0 %v3635
  %v3637 = vpop.xlane.xlu0 %3636
  %v3638 = vsel %vm559, %v3604, 0.0
  %3639 = vadd.xlane.f32.xlu0 %v3638
  %v3640 = vpop.xlane.xlu0 %3639
  %v3641 = vsel %vm559, %v3606, 0.0
  %3642 = vadd.xlane.f32.xlu0 %v3641
  %v3643 = vpop.xlane.xlu0 %3642
  %v3644 = vsel %vm559, %v3608, 0.0
  %3645 = vadd.xlane.f32.xlu0 %v3644
  %v3646 = vpop.xlane.xlu0 %3645
  %v3647 = vsel %vm559, %v3610, 0.0
  %3648 = vadd.xlane.f32.xlu0 %v3647
  %v3649 = vpop.xlane.xlu0 %3648
  %v3650 = vsel %vm559, %v3612, 0.0
  %3651 = vadd.xlane.f32.xlu0 %v3650
  %v3652 = vpop.xlane.xlu0 %3651
  %v3653 = vsel %vm559, %v3614, 0.0
  %3654 = vadd.xlane.f32.xlu0 %v3653
  %v3655 = vpop.xlane.xlu0 %3654
  %v3656 = vsel %vm559, %v3616, 0.0
  %3657 = vadd.xlane.f32.xlu0 %v3656
  %v3658 = vpop.xlane.xlu0 %3657
  %v3659 = vsel %vm559, %v3618, 0.0
  %3660 = vadd.xlane.f32.xlu0 %v3659
  %v3661 = vpop.xlane.xlu0 %3660
  %v3662 = vsel %vm559, %v3620, 0.0
  %3663 = vadd.xlane.f32.xlu0 %v3662
  %v3664 = vpop.xlane.xlu0 %3663
  %v3665 = vsel %vm559, %v3622, 0.0
  %3666 = vadd.xlane.f32.xlu0 %v3665
  %v3667 = vpop.xlane.xlu0 %3666
  %v3668 = vsel %vm559, %v3624, 0.0
  %3669 = vadd.xlane.f32.xlu0 %v3668
  %v3670 = vpop.xlane.xlu0 %3669
  %v3671 = vsel %vm559, %v3626, 0.0
  %3672 = vadd.xlane.f32.xlu0 %v3671
  %v3673 = vpop.xlane.xlu0 %3672
  %v3674 = vsel %vm559, %v3628, 0.0
  %3675 = vadd.xlane.f32.xlu0 %v3674
  %v3676 = vpop.xlane.xlu0 %3675
  %v3677 = vrcp.pop %v3631
  %v3678 = vmul.f32 %v3631, %v3677
  %v3679 = vsub.f32 1.0, %v3678
  %v3680 = vmul.f32 %v3677, %v3679
  %v3681 = vadd.f32 %v3677, %v3680
  %vm3682 = vweird.f32 %v3631
  %vm3683 = vweird.f32 %v3677
  %vm3684 = vmor %vm3682, %vm3683
  %v3685 = vsel %vm3684, %v3677, %v3681
  %v3686 = vand.u32 2147483647, %v3631
  %vm3687 = vcmp.eq.f32.partialorder %v3686, 8.507059e+37
  %v3688 = vand.u32 %v3631, 2147483648
  %v3689 = vor.u32 1.1754944e-38, %v3688
  %v3690 = vsel %vm3687, %v3689, %v3685
  %v3691 = vmul.f32 %v3598, %v3690
  %v3692 = vrcp.pop %v3634
  %v3693 = vmul.f32 %v3634, %v3692
  %v3694 = vsub.f32 1.0, %v3693
  %v3695 = vmul.f32 %v3692, %v3694
  %v3696 = vadd.f32 %v3692, %v3695
  %vm3697 = vweird.f32 %v3634
  %vm3698 = vweird.f32 %v3692
  %vm3699 = vmor %vm3697, %vm3698
  %v3700 = vsel %vm3699, %v3692, %v3696
  %v3701 = vand.u32 2147483647, %v3634
  %vm3702 = vcmp.eq.f32.partialorder %v3701, 8.507059e+37
  %v3703 = vand.u32 %v3634, 2147483648
  %v3704 = vor.u32 1.1754944e-38, %v3703
  %v3705 = vsel %vm3702, %v3704, %v3700
  %v3706 = vmul.f32 %v3600, %v3705
  %v3707 = vrcp.pop %v3637
  %v3708 = vmul.f32 %v3637, %v3707
  %v3709 = vsub.f32 1.0, %v3708
  %v3710 = vmul.f32 %v3707, %v3709
  %v3711 = vadd.f32 %v3707, %v3710
  %vm3712 = vweird.f32 %v3637
  %vm3713 = vweird.f32 %v3707
  %vm3714 = vmor %vm3712, %vm3713
  %v3715 = vsel %vm3714, %v3707, %v3711
  %v3716 = vand.u32 2147483647, %v3637
  %vm3717 = vcmp.eq.f32.partialorder %v3716, 8.507059e+37
  %v3718 = vand.u32 %v3637, 2147483648
  %v3719 = vor.u32 1.1754944e-38, %v3718
  %v3720 = vsel %vm3717, %v3719, %v3715
  %v3721 = vmul.f32 %v3602, %v3720
  %v3722 = vrcp.pop %v3640
  %v3723 = vmul.f32 %v3640, %v3722
  %v3724 = vsub.f32 1.0, %v3723
  %v3725 = vmul.f32 %v3722, %v3724
  %v3726 = vadd.f32 %v3722, %v3725
  %vm3727 = vweird.f32 %v3640
  %vm3728 = vweird.f32 %v3722
  %vm3729 = vmor %vm3727, %vm3728
  %v3730 = vsel %vm3729, %v3722, %v3726
  %v3731 = vand.u32 2147483647, %v3640
  %vm3732 = vcmp.eq.f32.partialorder %v3731, 8.507059e+37
  %v3733 = vand.u32 %v3640, 2147483648
  %v3734 = vor.u32 1.1754944e-38, %v3733
  %v3735 = vsel %vm3732, %v3734, %v3730
  %v3736 = vmul.f32 %v3604, %v3735
  %v3737 = vrcp.pop %v3643
  %v3738 = vmul.f32 %v3643, %v3737
  %v3739 = vsub.f32 1.0, %v3738
  %v3740 = vmul.f32 %v3737, %v3739
  %v3741 = vadd.f32 %v3737, %v3740
  %vm3742 = vweird.f32 %v3643
  %vm3743 = vweird.f32 %v3737
  %vm3744 = vmor %vm3742, %vm3743
  %v3745 = vsel %vm3744, %v3737, %v3741
  %v3746 = vand.u32 2147483647, %v3643
  %vm3747 = vcmp.eq.f32.partialorder %v3746, 8.507059e+37
  %v3748 = vand.u32 %v3643, 2147483648
  %v3749 = vor.u32 1.1754944e-38, %v3748
  %v3750 = vsel %vm3747, %v3749, %v3745
  %v3751 = vmul.f32 %v3606, %v3750
  %v3752 = vrcp.pop %v3646
  %v3753 = vmul.f32 %v3646, %v3752
  %v3754 = vsub.f32 1.0, %v3753
  %v3755 = vmul.f32 %v3752, %v3754
  %v3756 = vadd.f32 %v3752, %v3755
  %vm3757 = vweird.f32 %v3646
  %vm3758 = vweird.f32 %v3752
  %vm3759 = vmor %vm3757, %vm3758
  %v3760 = vsel %vm3759, %v3752, %v3756
  %v3761 = vand.u32 2147483647, %v3646
  %vm3762 = vcmp.eq.f32.partialorder %v3761, 8.507059e+37
  %v3763 = vand.u32 %v3646, 2147483648
  %v3764 = vor.u32 1.1754944e-38, %v3763
  %v3765 = vsel %vm3762, %v3764, %v3760
  %v3766 = vmul.f32 %v3608, %v3765
  %v3767 = vrcp.pop %v3649
  %v3768 = vmul.f32 %v3649, %v3767
  %v3769 = vsub.f32 1.0, %v3768
  %v3770 = vmul.f32 %v3767, %v3769
  %v3771 = vadd.f32 %v3767, %v3770
  %vm3772 = vweird.f32 %v3649
  %vm3773 = vweird.f32 %v3767
  %vm3774 = vmor %vm3772, %vm3773
  %v3775 = vsel %vm3774, %v3767, %v3771
  %v3776 = vand.u32 2147483647, %v3649
  %vm3777 = vcmp.eq.f32.partialorder %v3776, 8.507059e+37
  %v3778 = vand.u32 %v3649, 2147483648
  %v3779 = vor.u32 1.1754944e-38, %v3778
  %v3780 = vsel %vm3777, %v3779, %v3775
  %v3781 = vmul.f32 %v3610, %v3780
  %v3782 = vrcp.pop %v3652
  %v3783 = vmul.f32 %v3652, %v3782
  %v3784 = vsub.f32 1.0, %v3783
  %v3785 = vmul.f32 %v3782, %v3784
  %v3786 = vadd.f32 %v3782, %v3785
  %vm3787 = vweird.f32 %v3652
  %vm3788 = vweird.f32 %v3782
  %vm3789 = vmor %vm3787, %vm3788
  %v3790 = vsel %vm3789, %v3782, %v3786
  %v3791 = vand.u32 2147483647, %v3652
  %vm3792 = vcmp.eq.f32.partialorder %v3791, 8.507059e+37
  %v3793 = vand.u32 %v3652, 2147483648
  %v3794 = vor.u32 1.1754944e-38, %v3793
  %v3795 = vsel %vm3792, %v3794, %v3790
  %v3796 = vmul.f32 %v3612, %v3795
  %v3797 = vrcp.pop %v3655
  %v3798 = vmul.f32 %v3655, %v3797
  %v3799 = vsub.f32 1.0, %v3798
  %v3800 = vmul.f32 %v3797, %v3799
  %v3801 = vadd.f32 %v3797, %v3800
  %vm3802 = vweird.f32 %v3655
  %vm3803 = vweird.f32 %v3797
  %vm3804 = vmor %vm3802, %vm3803
  %v3805 = vsel %vm3804, %v3797, %v3801
  %v3806 = vand.u32 2147483647, %v3655
  %vm3807 = vcmp.eq.f32.partialorder %v3806, 8.507059e+37
  %v3808 = vand.u32 %v3655, 2147483648
  %v3809 = vor.u32 1.1754944e-38, %v3808
  %v3810 = vsel %vm3807, %v3809, %v3805
  %v3811 = vmul.f32 %v3614, %v3810
  %v3812 = vrcp.pop %v3658
  %v3813 = vmul.f32 %v3658, %v3812
  %v3814 = vsub.f32 1.0, %v3813
  %v3815 = vmul.f32 %v3812, %v3814
  %v3816 = vadd.f32 %v3812, %v3815
  %vm3817 = vweird.f32 %v3658
  %vm3818 = vweird.f32 %v3812
  %vm3819 = vmor %vm3817, %vm3818
  %v3820 = vsel %vm3819, %v3812, %v3816
  %v3821 = vand.u32 2147483647, %v3658
  %vm3822 = vcmp.eq.f32.partialorder %v3821, 8.507059e+37
  %v3823 = vand.u32 %v3658, 2147483648
  %v3824 = vor.u32 1.1754944e-38, %v3823
  %v3825 = vsel %vm3822, %v3824, %v3820
  %v3826 = vmul.f32 %v3616, %v3825
  %v3827 = vrcp.pop %v3661
  %v3828 = vmul.f32 %v3661, %v3827
  %v3829 = vsub.f32 1.0, %v3828
  %v3830 = vmul.f32 %v3827, %v3829
  %v3831 = vadd.f32 %v3827, %v3830
  %vm3832 = vweird.f32 %v3661
  %vm3833 = vweird.f32 %v3827
  %vm3834 = vmor %vm3832, %vm3833
  %v3835 = vsel %vm3834, %v3827, %v3831
  %v3836 = vand.u32 2147483647, %v3661
  %vm3837 = vcmp.eq.f32.partialorder %v3836, 8.507059e+37
  %v3838 = vand.u32 %v3661, 2147483648
  %v3839 = vor.u32 1.1754944e-38, %v3838
  %v3840 = vsel %vm3837, %v3839, %v3835
  %v3841 = vmul.f32 %v3618, %v3840
  %v3842 = vrcp.pop %v3664
  %v3843 = vmul.f32 %v3664, %v3842
  %v3844 = vsub.f32 1.0, %v3843
  %v3845 = vmul.f32 %v3842, %v3844
  %v3846 = vadd.f32 %v3842, %v3845
  %vm3847 = vweird.f32 %v3664
  %vm3848 = vweird.f32 %v3842
  %vm3849 = vmor %vm3847, %vm3848
  %v3850 = vsel %vm3849, %v3842, %v3846
  %v3851 = vand.u32 2147483647, %v3664
  %vm3852 = vcmp.eq.f32.partialorder %v3851, 8.507059e+37
  %v3853 = vand.u32 %v3664, 2147483648
  %v3854 = vor.u32 1.1754944e-38, %v3853
  %v3855 = vsel %vm3852, %v3854, %v3850
  %v3856 = vmul.f32 %v3620, %v3855
  %v3857 = vrcp.pop %v3667
  %v3858 = vmul.f32 %v3667, %v3857
  %v3859 = vsub.f32 1.0, %v3858
  %v3860 = vmul.f32 %v3857, %v3859
  %v3861 = vadd.f32 %v3857, %v3860
  %vm3862 = vweird.f32 %v3667
  %vm3863 = vweird.f32 %v3857
  %vm3864 = vmor %vm3862, %vm3863
  %v3865 = vsel %vm3864, %v3857, %v3861
  %v3866 = vand.u32 2147483647, %v3667
  %vm3867 = vcmp.eq.f32.partialorder %v3866, 8.507059e+37
  %v3868 = vand.u32 %v3667, 2147483648
  %v3869 = vor.u32 1.1754944e-38, %v3868
  %v3870 = vsel %vm3867, %v3869, %v3865
  %v3871 = vmul.f32 %v3622, %v3870
  %v3872 = vrcp.pop %v3670
  %v3873 = vmul.f32 %v3670, %v3872
  %v3874 = vsub.f32 1.0, %v3873
  %v3875 = vmul.f32 %v3872, %v3874
  %v3876 = vadd.f32 %v3872, %v3875
  %vm3877 = vweird.f32 %v3670
  %vm3878 = vweird.f32 %v3872
  %vm3879 = vmor %vm3877, %vm3878
  %v3880 = vsel %vm3879, %v3872, %v3876
  %v3881 = vand.u32 2147483647, %v3670
  %vm3882 = vcmp.eq.f32.partialorder %v3881, 8.507059e+37
  %v3883 = vand.u32 %v3670, 2147483648
  %v3884 = vor.u32 1.1754944e-38, %v3883
  %v3885 = vsel %vm3882, %v3884, %v3880
  %v3886 = vmul.f32 %v3624, %v3885
  %v3887 = vrcp.pop %v3673
  %v3888 = vmul.f32 %v3673, %v3887
  %v3889 = vsub.f32 1.0, %v3888
  %v3890 = vmul.f32 %v3887, %v3889
  %v3891 = vadd.f32 %v3887, %v3890
  %vm3892 = vweird.f32 %v3673
  %vm3893 = vweird.f32 %v3887
  %vm3894 = vmor %vm3892, %vm3893
  %v3895 = vsel %vm3894, %v3887, %v3891
  %v3896 = vand.u32 2147483647, %v3673
  %vm3897 = vcmp.eq.f32.partialorder %v3896, 8.507059e+37
  %v3898 = vand.u32 %v3673, 2147483648
  %v3899 = vor.u32 1.1754944e-38, %v3898
  %v3900 = vsel %vm3897, %v3899, %v3895
  %v3901 = vmul.f32 %v3626, %v3900
  %v3902 = vrcp.pop %v3676
  %v3903 = vmul.f32 %v3676, %v3902
  %v3904 = vsub.f32 1.0, %v3903
  %v3905 = vmul.f32 %v3902, %v3904
  %v3906 = vadd.f32 %v3902, %v3905
  %vm3907 = vweird.f32 %v3676
  %vm3908 = vweird.f32 %v3902
  %vm3909 = vmor %vm3907, %vm3908
  %v3910 = vsel %vm3909, %v3902, %v3906
  %v3911 = vand.u32 2147483647, %v3676
  %vm3912 = vcmp.eq.f32.partialorder %v3911, 8.507059e+37
  %v3913 = vand.u32 %v3676, 2147483648
  %v3914 = vor.u32 1.1754944e-38, %v3913
  %v3915 = vsel %vm3912, %v3914, %v3910
  %v3916 = vmul.f32 %v3628, %v3915
  %3917 = vrot.lane.b32.xlu0 %v509, 48
  %v3918 = vpop.permute.xlu0 %3917
  %v3921 = vsel %vm559, %v3691, 0
  %3923 = vmatpush.msra.mxu0 0.0
  %3924 = vmatpush.msra.mxu0 0.0
  %3925 = vmatpush.msra.mxu0 0.0
  %3926 = vmatpush.msra.mxu0 0.0
  %3927 = vmatpush.msra.mxu0 0.0
  %3928 = vmatpush.msra.mxu0 0.0
  %3929 = vmatpush.msra.mxu0 0.0
  %3930 = vmatpush.msra.mxu0 0.0
  %3931 = vmatpush.msra.mxu0 0.0
  %3932 = vmatpush.msra.mxu0 0.0
  %3933 = vmatpush.msra.mxu0 0.0
  %3934 = vmatpush.msra.mxu0 0.0
  %3935 = vmatpush.msra.mxu0 0.0
  %3936 = vmatpush.msra.mxu0 0.0
  %3937 = vmatpush.msra.mxu0 0.0
  %3938 = vmatpush.msra.mxu0 %v3918
  %3939 = vmatmul.f32.gmra.mxu0 %v3921
  %v3940 = vpop.f32.mrf.mxu0
  %v3941 = vadd.f32 0.0, %v3940
  %3942 = vdwg.mxu0
  %3943 = vrot.lane.b32.xlu0 %v512, 48
  %v3944 = vpop.permute.xlu0 %3943
  %v3947 = vsel %vm559, %v3706, 0
  %3949 = vmatpush.msra.mxu0 0.0
  %3950 = vmatpush.msra.mxu0 0.0
  %3951 = vmatpush.msra.mxu0 0.0
  %3952 = vmatpush.msra.mxu0 0.0
  %3953 = vmatpush.msra.mxu0 0.0
  %3954 = vmatpush.msra.mxu0 0.0
  %3955 = vmatpush.msra.mxu0 0.0
  %3956 = vmatpush.msra.mxu0 0.0
  %3957 = vmatpush.msra.mxu0 0.0
  %3958 = vmatpush.msra.mxu0 0.0
  %3959 = vmatpush.msra.mxu0 0.0
  %3960 = vmatpush.msra.mxu0 0.0
  %3961 = vmatpush.msra.mxu0 0.0
  %3962 = vmatpush.msra.mxu0 0.0
  %3963 = vmatpush.msra.mxu0 0.0
  %3964 = vmatpush.msra.mxu0 %v3944
  %3965 = vmatmul.f32.gmra.mxu0 %v3947
  %v3966 = vpop.f32.mrf.mxu0
  %v3967 = vadd.f32 0.0, %v3966
  %3968 = vdwg.mxu0
  %3969 = vrot.lane.b32.xlu0 %v515, 48
  %v3970 = vpop.permute.xlu0 %3969
  %v3973 = vsel %vm559, %v3721, 0
  %3975 = vmatpush.msra.mxu0 0.0
  %3976 = vmatpush.msra.mxu0 0.0
  %3977 = vmatpush.msra.mxu0 0.0
  %3978 = vmatpush.msra.mxu0 0.0
  %3979 = vmatpush.msra.mxu0 0.0
  %3980 = vmatpush.msra.mxu0 0.0
  %3981 = vmatpush.msra.mxu0 0.0
  %3982 = vmatpush.msra.mxu0 0.0
  %3983 = vmatpush.msra.mxu0 0.0
  %3984 = vmatpush.msra.mxu0 0.0
  %3985 = vmatpush.msra.mxu0 0.0
  %3986 = vmatpush.msra.mxu0 0.0
  %3987 = vmatpush.msra.mxu0 0.0
  %3988 = vmatpush.msra.mxu0 0.0
  %3989 = vmatpush.msra.mxu0 0.0
  %3990 = vmatpush.msra.mxu0 %v3970
  %3991 = vmatmul.f32.gmra.mxu0 %v3973
  %v3992 = vpop.f32.mrf.mxu0
  %v3993 = vadd.f32 0.0, %v3992
  %3994 = vdwg.mxu0
  %3995 = vrot.lane.b32.xlu0 %v518, 48
  %v3996 = vpop.permute.xlu0 %3995
  %v3999 = vsel %vm559, %v3736, 0
  %4001 = vmatpush.msra.mxu0 0.0
  %4002 = vmatpush.msra.mxu0 0.0
  %4003 = vmatpush.msra.mxu0 0.0
  %4004 = vmatpush.msra.mxu0 0.0
  %4005 = vmatpush.msra.mxu0 0.0
  %4006 = vmatpush.msra.mxu0 0.0
  %4007 = vmatpush.msra.mxu0 0.0
  %4008 = vmatpush.msra.mxu0 0.0
  %4009 = vmatpush.msra.mxu0 0.0
  %4010 = vmatpush.msra.mxu0 0.0
  %4011 = vmatpush.msra.mxu0 0.0
  %4012 = vmatpush.msra.mxu0 0.0
  %4013 = vmatpush.msra.mxu0 0.0
  %4014 = vmatpush.msra.mxu0 0.0
  %4015 = vmatpush.msra.mxu0 0.0
  %4016 = vmatpush.msra.mxu0 %v3996
  %4017 = vmatmul.f32.gmra.mxu0 %v3999
  %v4018 = vpop.f32.mrf.mxu0
  %v4019 = vadd.f32 0.0, %v4018
  %4020 = vdwg.mxu0
  %4021 = vrot.lane.b32.xlu0 %v521, 48
  %v4022 = vpop.permute.xlu0 %4021
  %v4025 = vsel %vm559, %v3751, 0
  %4027 = vmatpush.msra.mxu0 0.0
  %4028 = vmatpush.msra.mxu0 0.0
  %4029 = vmatpush.msra.mxu0 0.0
  %4030 = vmatpush.msra.mxu0 0.0
  %4031 = vmatpush.msra.mxu0 0.0
  %4032 = vmatpush.msra.mxu0 0.0
  %4033 = vmatpush.msra.mxu0 0.0
  %4034 = vmatpush.msra.mxu0 0.0
  %4035 = vmatpush.msra.mxu0 0.0
  %4036 = vmatpush.msra.mxu0 0.0
  %4037 = vmatpush.msra.mxu0 0.0
  %4038 = vmatpush.msra.mxu0 0.0
  %4039 = vmatpush.msra.mxu0 0.0
  %4040 = vmatpush.msra.mxu0 0.0
  %4041 = vmatpush.msra.mxu0 0.0
  %4042 = vmatpush.msra.mxu0 %v4022
  %4043 = vmatmul.f32.gmra.mxu0 %v4025
  %v4044 = vpop.f32.mrf.mxu0
  %v4045 = vadd.f32 0.0, %v4044
  %4046 = vdwg.mxu0
  %4047 = vrot.lane.b32.xlu0 %v524, 48
  %v4048 = vpop.permute.xlu0 %4047
  %v4051 = vsel %vm559, %v3766, 0
  %4053 = vmatpush.msra.mxu0 0.0
  %4054 = vmatpush.msra.mxu0 0.0
  %4055 = vmatpush.msra.mxu0 0.0
  %4056 = vmatpush.msra.mxu0 0.0
  %4057 = vmatpush.msra.mxu0 0.0
  %4058 = vmatpush.msra.mxu0 0.0
  %4059 = vmatpush.msra.mxu0 0.0
  %4060 = vmatpush.msra.mxu0 0.0
  %4061 = vmatpush.msra.mxu0 0.0
  %4062 = vmatpush.msra.mxu0 0.0
  %4063 = vmatpush.msra.mxu0 0.0
  %4064 = vmatpush.msra.mxu0 0.0
  %4065 = vmatpush.msra.mxu0 0.0
  %4066 = vmatpush.msra.mxu0 0.0
  %4067 = vmatpush.msra.mxu0 0.0
  %4068 = vmatpush.msra.mxu0 %v4048
  %4069 = vmatmul.f32.gmra.mxu0 %v4051
  %v4070 = vpop.f32.mrf.mxu0
  %v4071 = vadd.f32 0.0, %v4070
  %4072 = vdwg.mxu0
  %4073 = vrot.lane.b32.xlu0 %v527, 48
  %v4074 = vpop.permute.xlu0 %4073
  %v4077 = vsel %vm559, %v3781, 0
  %4079 = vmatpush.msra.mxu0 0.0
  %4080 = vmatpush.msra.mxu0 0.0
  %4081 = vmatpush.msra.mxu0 0.0
  %4082 = vmatpush.msra.mxu0 0.0
  %4083 = vmatpush.msra.mxu0 0.0
  %4084 = vmatpush.msra.mxu0 0.0
  %4085 = vmatpush.msra.mxu0 0.0
  %4086 = vmatpush.msra.mxu0 0.0
  %4087 = vmatpush.msra.mxu0 0.0
  %4088 = vmatpush.msra.mxu0 0.0
  %4089 = vmatpush.msra.mxu0 0.0
  %4090 = vmatpush.msra.mxu0 0.0
  %4091 = vmatpush.msra.mxu0 0.0
  %4092 = vmatpush.msra.mxu0 0.0
  %4093 = vmatpush.msra.mxu0 0.0
  %4094 = vmatpush.msra.mxu0 %v4074
  %4095 = vmatmul.f32.gmra.mxu0 %v4077
  %v4096 = vpop.f32.mrf.mxu0
  %v4097 = vadd.f32 0.0, %v4096
  %4098 = vdwg.mxu0
  %4099 = vrot.lane.b32.xlu0 %v530, 48
  %v4100 = vpop.permute.xlu0 %4099
  %v4103 = vsel %vm559, %v3796, 0
  %4105 = vmatpush.msra.mxu0 0.0
  %4106 = vmatpush.msra.mxu0 0.0
  %4107 = vmatpush.msra.mxu0 0.0
  %4108 = vmatpush.msra.mxu0 0.0
  %4109 = vmatpush.msra.mxu0 0.0
  %4110 = vmatpush.msra.mxu0 0.0
  %4111 = vmatpush.msra.mxu0 0.0
  %4112 = vmatpush.msra.mxu0 0.0
  %4113 = vmatpush.msra.mxu0 0.0
  %4114 = vmatpush.msra.mxu0 0.0
  %4115 = vmatpush.msra.mxu0 0.0
  %4116 = vmatpush.msra.mxu0 0.0
  %4117 = vmatpush.msra.mxu0 0.0
  %4118 = vmatpush.msra.mxu0 0.0
  %4119 = vmatpush.msra.mxu0 0.0
  %4120 = vmatpush.msra.mxu0 %v4100
  %4121 = vmatmul.f32.gmra.mxu0 %v4103
  %v4122 = vpop.f32.mrf.mxu0
  %v4123 = vadd.f32 0.0, %v4122
  %4124 = vdwg.mxu0
  %4125 = vrot.lane.b32.xlu0 %v533, 48
  %v4126 = vpop.permute.xlu0 %4125
  %v4129 = vsel %vm559, %v3811, 0
  %4131 = vmatpush.msra.mxu0 0.0
  %4132 = vmatpush.msra.mxu0 0.0
  %4133 = vmatpush.msra.mxu0 0.0
  %4134 = vmatpush.msra.mxu0 0.0
  %4135 = vmatpush.msra.mxu0 0.0
  %4136 = vmatpush.msra.mxu0 0.0
  %4137 = vmatpush.msra.mxu0 0.0
  %4138 = vmatpush.msra.mxu0 0.0
  %4139 = vmatpush.msra.mxu0 0.0
  %4140 = vmatpush.msra.mxu0 0.0
  %4141 = vmatpush.msra.mxu0 0.0
  %4142 = vmatpush.msra.mxu0 0.0
  %4143 = vmatpush.msra.mxu0 0.0
  %4144 = vmatpush.msra.mxu0 0.0
  %4145 = vmatpush.msra.mxu0 0.0
  %4146 = vmatpush.msra.mxu0 %v4126
  %4147 = vmatmul.f32.gmra.mxu0 %v4129
  %v4148 = vpop.f32.mrf.mxu0
  %v4149 = vadd.f32 0.0, %v4148
  %4150 = vdwg.mxu0
  %4151 = vrot.lane.b32.xlu0 %v536, 48
  %v4152 = vpop.permute.xlu0 %4151
  %v4155 = vsel %vm559, %v3826, 0
  %4157 = vmatpush.msra.mxu0 0.0
  %4158 = vmatpush.msra.mxu0 0.0
  %4159 = vmatpush.msra.mxu0 0.0
  %4160 = vmatpush.msra.mxu0 0.0
  %4161 = vmatpush.msra.mxu0 0.0
  %4162 = vmatpush.msra.mxu0 0.0
  %4163 = vmatpush.msra.mxu0 0.0
  %4164 = vmatpush.msra.mxu0 0.0
  %4165 = vmatpush.msra.mxu0 0.0
  %4166 = vmatpush.msra.mxu0 0.0
  %4167 = vmatpush.msra.mxu0 0.0
  %4168 = vmatpush.msra.mxu0 0.0
  %4169 = vmatpush.msra.mxu0 0.0
  %4170 = vmatpush.msra.mxu0 0.0
  %4171 = vmatpush.msra.mxu0 0.0
  %4172 = vmatpush.msra.mxu0 %v4152
  %4173 = vmatmul.f32.gmra.mxu0 %v4155
  %v4174 = vpop.f32.mrf.mxu0
  %v4175 = vadd.f32 0.0, %v4174
  %4176 = vdwg.mxu0
  %4177 = vrot.lane.b32.xlu0 %v539, 48
  %v4178 = vpop.permute.xlu0 %4177
  %v4181 = vsel %vm559, %v3841, 0
  %4183 = vmatpush.msra.mxu0 0.0
  %4184 = vmatpush.msra.mxu0 0.0
  %4185 = vmatpush.msra.mxu0 0.0
  %4186 = vmatpush.msra.mxu0 0.0
  %4187 = vmatpush.msra.mxu0 0.0
  %4188 = vmatpush.msra.mxu0 0.0
  %4189 = vmatpush.msra.mxu0 0.0
  %4190 = vmatpush.msra.mxu0 0.0
  %4191 = vmatpush.msra.mxu0 0.0
  %4192 = vmatpush.msra.mxu0 0.0
  %4193 = vmatpush.msra.mxu0 0.0
  %4194 = vmatpush.msra.mxu0 0.0
  %4195 = vmatpush.msra.mxu0 0.0
  %4196 = vmatpush.msra.mxu0 0.0
  %4197 = vmatpush.msra.mxu0 0.0
  %4198 = vmatpush.msra.mxu0 %v4178
  %4199 = vmatmul.f32.gmra.mxu0 %v4181
  %v4200 = vpop.f32.mrf.mxu0
  %v4201 = vadd.f32 0.0, %v4200
  %4202 = vdwg.mxu0
  %4203 = vrot.lane.b32.xlu0 %v542, 48
  %v4204 = vpop.permute.xlu0 %4203
  %v4207 = vsel %vm559, %v3856, 0
  %4209 = vmatpush.msra.mxu0 0.0
  %4210 = vmatpush.msra.mxu0 0.0
  %4211 = vmatpush.msra.mxu0 0.0
  %4212 = vmatpush.msra.mxu0 0.0
  %4213 = vmatpush.msra.mxu0 0.0
  %4214 = vmatpush.msra.mxu0 0.0
  %4215 = vmatpush.msra.mxu0 0.0
  %4216 = vmatpush.msra.mxu0 0.0
  %4217 = vmatpush.msra.mxu0 0.0
  %4218 = vmatpush.msra.mxu0 0.0
  %4219 = vmatpush.msra.mxu0 0.0
  %4220 = vmatpush.msra.mxu0 0.0
  %4221 = vmatpush.msra.mxu0 0.0
  %4222 = vmatpush.msra.mxu0 0.0
  %4223 = vmatpush.msra.mxu0 0.0
  %4224 = vmatpush.msra.mxu0 %v4204
  %4225 = vmatmul.f32.gmra.mxu0 %v4207
  %v4226 = vpop.f32.mrf.mxu0
  %v4227 = vadd.f32 0.0, %v4226
  %4228 = vdwg.mxu0
  %4229 = vrot.lane.b32.xlu0 %v545, 48
  %v4230 = vpop.permute.xlu0 %4229
  %v4233 = vsel %vm559, %v3871, 0
  %4235 = vmatpush.msra.mxu0 0.0
  %4236 = vmatpush.msra.mxu0 0.0
  %4237 = vmatpush.msra.mxu0 0.0
  %4238 = vmatpush.msra.mxu0 0.0
  %4239 = vmatpush.msra.mxu0 0.0
  %4240 = vmatpush.msra.mxu0 0.0
  %4241 = vmatpush.msra.mxu0 0.0
  %4242 = vmatpush.msra.mxu0 0.0
  %4243 = vmatpush.msra.mxu0 0.0
  %4244 = vmatpush.msra.mxu0 0.0
  %4245 = vmatpush.msra.mxu0 0.0
  %4246 = vmatpush.msra.mxu0 0.0
  %4247 = vmatpush.msra.mxu0 0.0
  %4248 = vmatpush.msra.mxu0 0.0
  %4249 = vmatpush.msra.mxu0 0.0
  %4250 = vmatpush.msra.mxu0 %v4230
  %4251 = vmatmul.f32.gmra.mxu0 %v4233
  %v4252 = vpop.f32.mrf.mxu0
  %v4253 = vadd.f32 0.0, %v4252
  %4254 = vdwg.mxu0
  %4255 = vrot.lane.b32.xlu0 %v548, 48
  %v4256 = vpop.permute.xlu0 %4255
  %v4259 = vsel %vm559, %v3886, 0
  %4261 = vmatpush.msra.mxu0 0.0
  %4262 = vmatpush.msra.mxu0 0.0
  %4263 = vmatpush.msra.mxu0 0.0
  %4264 = vmatpush.msra.mxu0 0.0
  %4265 = vmatpush.msra.mxu0 0.0
  %4266 = vmatpush.msra.mxu0 0.0
  %4267 = vmatpush.msra.mxu0 0.0
  %4268 = vmatpush.msra.mxu0 0.0
  %4269 = vmatpush.msra.mxu0 0.0
  %4270 = vmatpush.msra.mxu0 0.0
  %4271 = vmatpush.msra.mxu0 0.0
  %4272 = vmatpush.msra.mxu0 0.0
  %4273 = vmatpush.msra.mxu0 0.0
  %4274 = vmatpush.msra.mxu0 0.0
  %4275 = vmatpush.msra.mxu0 0.0
  %4276 = vmatpush.msra.mxu0 %v4256
  %4277 = vmatmul.f32.gmra.mxu0 %v4259
  %v4278 = vpop.f32.mrf.mxu0
  %v4279 = vadd.f32 0.0, %v4278
  %4280 = vdwg.mxu0
  %4281 = vrot.lane.b32.xlu0 %v551, 48
  %v4282 = vpop.permute.xlu0 %4281
  %v4285 = vsel %vm559, %v3901, 0
  %4287 = vmatpush.msra.mxu0 0.0
  %4288 = vmatpush.msra.mxu0 0.0
  %4289 = vmatpush.msra.mxu0 0.0
  %4290 = vmatpush.msra.mxu0 0.0
  %4291 = vmatpush.msra.mxu0 0.0
  %4292 = vmatpush.msra.mxu0 0.0
  %4293 = vmatpush.msra.mxu0 0.0
  %4294 = vmatpush.msra.mxu0 0.0
  %4295 = vmatpush.msra.mxu0 0.0
  %4296 = vmatpush.msra.mxu0 0.0
  %4297 = vmatpush.msra.mxu0 0.0
  %4298 = vmatpush.msra.mxu0 0.0
  %4299 = vmatpush.msra.mxu0 0.0
  %4300 = vmatpush.msra.mxu0 0.0
  %4301 = vmatpush.msra.mxu0 0.0
  %4302 = vmatpush.msra.mxu0 %v4282
  %4303 = vmatmul.f32.gmra.mxu0 %v4285
  %v4304 = vpop.f32.mrf.mxu0
  %v4305 = vadd.f32 0.0, %v4304
  %4306 = vdwg.mxu0
  %4307 = vrot.lane.b32.xlu0 %v554, 48
  %v4308 = vpop.permute.xlu0 %4307
  %v4311 = vsel %vm559, %v3916, 0
  %4313 = vmatpush.msra.mxu0 0.0
  %4314 = vmatpush.msra.mxu0 0.0
  %4315 = vmatpush.msra.mxu0 0.0
  %4316 = vmatpush.msra.mxu0 0.0
  %4317 = vmatpush.msra.mxu0 0.0
  %4318 = vmatpush.msra.mxu0 0.0
  %4319 = vmatpush.msra.mxu0 0.0
  %4320 = vmatpush.msra.mxu0 0.0
  %4321 = vmatpush.msra.mxu0 0.0
  %4322 = vmatpush.msra.mxu0 0.0
  %4323 = vmatpush.msra.mxu0 0.0
  %4324 = vmatpush.msra.mxu0 0.0
  %4325 = vmatpush.msra.mxu0 0.0
  %4326 = vmatpush.msra.mxu0 0.0
  %4327 = vmatpush.msra.mxu0 0.0
  %4328 = vmatpush.msra.mxu0 %v4308
  %4329 = vmatmul.f32.gmra.mxu0 %v4311
  %v4330 = vpop.f32.mrf.mxu0
  %v4331 = vadd.f32 0.0, %v4330
  %4332 = vdwg.mxu0
  %4333 = vrot.lane.b32.xlu0 %v509, 104
  %v4334 = vpop.permute.xlu0 %4333
  %4335 = vrot.lane.b32.xlu0 %v509, 72
  %v4336 = vpop.permute.xlu0 %4335
  %v4337 = vsel %vm559, %v4334, 0
  %v4339 = vsel %vm559, %v4336, 0
  %4341 = vmatpush.xpose.msra.mxu0 0.0
  %4342 = vmatpush.xpose.msra.mxu0 0.0
  %4343 = vmatpush.xpose.msra.mxu0 0.0
  %4344 = vmatpush.xpose.msra.mxu0 0.0
  %4345 = vmatpush.xpose.msra.mxu0 0.0
  %4346 = vmatpush.xpose.msra.mxu0 0.0
  %4347 = vmatpush.xpose.msra.mxu0 0.0
  %4348 = vmatpush.xpose.msra.mxu0 0.0
  %4349 = vmatpush.xpose.msra.mxu0 0.0
  %4350 = vmatpush.xpose.msra.mxu0 0.0
  %4351 = vmatpush.xpose.msra.mxu0 0.0
  %4352 = vmatpush.xpose.msra.mxu0 0.0
  %4353 = vmatpush.xpose.msra.mxu0 0.0
  %4354 = vmatpush.xpose.msra.mxu0 0.0
  %4355 = vmatpush.xpose.msra.mxu0 0.0
  %4356 = vmatpush.xpose.msra.mxu0 %v4339
  %4357 = vmatmul.f32.gmra.mxu0 %v4337
  %v4358 = vpop.f32.mrf.mxu0
  %v4359 = vadd.f32 0.0, %v4358
  %4360 = vdwg.mxu0
  %4361 = vrot.lane.b32.xlu0 %v512, 104
  %v4362 = vpop.permute.xlu0 %4361
  %4363 = vrot.lane.b32.xlu0 %v512, 72
  %v4364 = vpop.permute.xlu0 %4363
  %v4365 = vsel %vm559, %v4362, 0
  %v4367 = vsel %vm559, %v4364, 0
  %4369 = vmatpush.xpose.msra.mxu0 0.0
  %4370 = vmatpush.xpose.msra.mxu0 0.0
  %4371 = vmatpush.xpose.msra.mxu0 0.0
  %4372 = vmatpush.xpose.msra.mxu0 0.0
  %4373 = vmatpush.xpose.msra.mxu0 0.0
  %4374 = vmatpush.xpose.msra.mxu0 0.0
  %4375 = vmatpush.xpose.msra.mxu0 0.0
  %4376 = vmatpush.xpose.msra.mxu0 0.0
  %4377 = vmatpush.xpose.msra.mxu0 0.0
  %4378 = vmatpush.xpose.msra.mxu0 0.0
  %4379 = vmatpush.xpose.msra.mxu0 0.0
  %4380 = vmatpush.xpose.msra.mxu0 0.0
  %4381 = vmatpush.xpose.msra.mxu0 0.0
  %4382 = vmatpush.xpose.msra.mxu0 0.0
  %4383 = vmatpush.xpose.msra.mxu0 0.0
  %4384 = vmatpush.xpose.msra.mxu0 %v4367
  %4385 = vmatmul.f32.gmra.mxu0 %v4365
  %v4386 = vpop.f32.mrf.mxu0
  %v4387 = vadd.f32 0.0, %v4386
  %4388 = vdwg.mxu0
  %4389 = vrot.lane.b32.xlu0 %v515, 104
  %v4390 = vpop.permute.xlu0 %4389
  %4391 = vrot.lane.b32.xlu0 %v515, 72
  %v4392 = vpop.permute.xlu0 %4391
  %v4393 = vsel %vm559, %v4390, 0
  %v4395 = vsel %vm559, %v4392, 0
  %4397 = vmatpush.xpose.msra.mxu0 0.0
  %4398 = vmatpush.xpose.msra.mxu0 0.0
  %4399 = vmatpush.xpose.msra.mxu0 0.0
  %4400 = vmatpush.xpose.msra.mxu0 0.0
  %4401 = vmatpush.xpose.msra.mxu0 0.0
  %4402 = vmatpush.xpose.msra.mxu0 0.0
  %4403 = vmatpush.xpose.msra.mxu0 0.0
  %4404 = vmatpush.xpose.msra.mxu0 0.0
  %4405 = vmatpush.xpose.msra.mxu0 0.0
  %4406 = vmatpush.xpose.msra.mxu0 0.0
  %4407 = vmatpush.xpose.msra.mxu0 0.0
  %4408 = vmatpush.xpose.msra.mxu0 0.0
  %4409 = vmatpush.xpose.msra.mxu0 0.0
  %4410 = vmatpush.xpose.msra.mxu0 0.0
  %4411 = vmatpush.xpose.msra.mxu0 0.0
  %4412 = vmatpush.xpose.msra.mxu0 %v4395
  %4413 = vmatmul.f32.gmra.mxu0 %v4393
  %v4414 = vpop.f32.mrf.mxu0
  %v4415 = vadd.f32 0.0, %v4414
  %4416 = vdwg.mxu0
  %4417 = vrot.lane.b32.xlu0 %v518, 104
  %v4418 = vpop.permute.xlu0 %4417
  %4419 = vrot.lane.b32.xlu0 %v518, 72
  %v4420 = vpop.permute.xlu0 %4419
  %v4421 = vsel %vm559, %v4418, 0
  %v4423 = vsel %vm559, %v4420, 0
  %4425 = vmatpush.xpose.msra.mxu0 0.0
  %4426 = vmatpush.xpose.msra.mxu0 0.0
  %4427 = vmatpush.xpose.msra.mxu0 0.0
  %4428 = vmatpush.xpose.msra.mxu0 0.0
  %4429 = vmatpush.xpose.msra.mxu0 0.0
  %4430 = vmatpush.xpose.msra.mxu0 0.0
  %4431 = vmatpush.xpose.msra.mxu0 0.0
  %4432 = vmatpush.xpose.msra.mxu0 0.0
  %4433 = vmatpush.xpose.msra.mxu0 0.0
  %4434 = vmatpush.xpose.msra.mxu0 0.0
  %4435 = vmatpush.xpose.msra.mxu0 0.0
  %4436 = vmatpush.xpose.msra.mxu0 0.0
  %4437 = vmatpush.xpose.msra.mxu0 0.0
  %4438 = vmatpush.xpose.msra.mxu0 0.0
  %4439 = vmatpush.xpose.msra.mxu0 0.0
  %4440 = vmatpush.xpose.msra.mxu0 %v4423
  %4441 = vmatmul.f32.gmra.mxu0 %v4421
  %v4442 = vpop.f32.mrf.mxu0
  %v4443 = vadd.f32 0.0, %v4442
  %4444 = vdwg.mxu0
  %4445 = vrot.lane.b32.xlu0 %v521, 104
  %v4446 = vpop.permute.xlu0 %4445
  %4447 = vrot.lane.b32.xlu0 %v521, 72
  %v4448 = vpop.permute.xlu0 %4447
  %v4449 = vsel %vm559, %v4446, 0
  %v4451 = vsel %vm559, %v4448, 0
  %4453 = vmatpush.xpose.msra.mxu0 0.0
  %4454 = vmatpush.xpose.msra.mxu0 0.0
  %4455 = vmatpush.xpose.msra.mxu0 0.0
  %4456 = vmatpush.xpose.msra.mxu0 0.0
  %4457 = vmatpush.xpose.msra.mxu0 0.0
  %4458 = vmatpush.xpose.msra.mxu0 0.0
  %4459 = vmatpush.xpose.msra.mxu0 0.0
  %4460 = vmatpush.xpose.msra.mxu0 0.0
  %4461 = vmatpush.xpose.msra.mxu0 0.0
  %4462 = vmatpush.xpose.msra.mxu0 0.0
  %4463 = vmatpush.xpose.msra.mxu0 0.0
  %4464 = vmatpush.xpose.msra.mxu0 0.0
  %4465 = vmatpush.xpose.msra.mxu0 0.0
  %4466 = vmatpush.xpose.msra.mxu0 0.0
  %4467 = vmatpush.xpose.msra.mxu0 0.0
  %4468 = vmatpush.xpose.msra.mxu0 %v4451
  %4469 = vmatmul.f32.gmra.mxu0 %v4449
  %v4470 = vpop.f32.mrf.mxu0
  %v4471 = vadd.f32 0.0, %v4470
  %4472 = vdwg.mxu0
  %4473 = vrot.lane.b32.xlu0 %v524, 104
  %v4474 = vpop.permute.xlu0 %4473
  %4475 = vrot.lane.b32.xlu0 %v524, 72
  %v4476 = vpop.permute.xlu0 %4475
  %v4477 = vsel %vm559, %v4474, 0
  %v4479 = vsel %vm559, %v4476, 0
  %4481 = vmatpush.xpose.msra.mxu0 0.0
  %4482 = vmatpush.xpose.msra.mxu0 0.0
  %4483 = vmatpush.xpose.msra.mxu0 0.0
  %4484 = vmatpush.xpose.msra.mxu0 0.0
  %4485 = vmatpush.xpose.msra.mxu0 0.0
  %4486 = vmatpush.xpose.msra.mxu0 0.0
  %4487 = vmatpush.xpose.msra.mxu0 0.0
  %4488 = vmatpush.xpose.msra.mxu0 0.0
  %4489 = vmatpush.xpose.msra.mxu0 0.0
  %4490 = vmatpush.xpose.msra.mxu0 0.0
  %4491 = vmatpush.xpose.msra.mxu0 0.0
  %4492 = vmatpush.xpose.msra.mxu0 0.0
  %4493 = vmatpush.xpose.msra.mxu0 0.0
  %4494 = vmatpush.xpose.msra.mxu0 0.0
  %4495 = vmatpush.xpose.msra.mxu0 0.0
  %4496 = vmatpush.xpose.msra.mxu0 %v4479
  %4497 = vmatmul.f32.gmra.mxu0 %v4477
  %v4498 = vpop.f32.mrf.mxu0
  %v4499 = vadd.f32 0.0, %v4498
  %4500 = vdwg.mxu0
  %4501 = vrot.lane.b32.xlu0 %v527, 104
  %v4502 = vpop.permute.xlu0 %4501
  %4503 = vrot.lane.b32.xlu0 %v527, 72
  %v4504 = vpop.permute.xlu0 %4503
  %v4505 = vsel %vm559, %v4502, 0
  %v4507 = vsel %vm559, %v4504, 0
  %4509 = vmatpush.xpose.msra.mxu0 0.0
  %4510 = vmatpush.xpose.msra.mxu0 0.0
  %4511 = vmatpush.xpose.msra.mxu0 0.0
  %4512 = vmatpush.xpose.msra.mxu0 0.0
  %4513 = vmatpush.xpose.msra.mxu0 0.0
  %4514 = vmatpush.xpose.msra.mxu0 0.0
  %4515 = vmatpush.xpose.msra.mxu0 0.0
  %4516 = vmatpush.xpose.msra.mxu0 0.0
  %4517 = vmatpush.xpose.msra.mxu0 0.0
  %4518 = vmatpush.xpose.msra.mxu0 0.0
  %4519 = vmatpush.xpose.msra.mxu0 0.0
  %4520 = vmatpush.xpose.msra.mxu0 0.0
  %4521 = vmatpush.xpose.msra.mxu0 0.0
  %4522 = vmatpush.xpose.msra.mxu0 0.0
  %4523 = vmatpush.xpose.msra.mxu0 0.0
  %4524 = vmatpush.xpose.msra.mxu0 %v4507
  %4525 = vmatmul.f32.gmra.mxu0 %v4505
  %v4526 = vpop.f32.mrf.mxu0
  %v4527 = vadd.f32 0.0, %v4526
  %4528 = vdwg.mxu0
  %4529 = vrot.lane.b32.xlu0 %v530, 104
  %v4530 = vpop.permute.xlu0 %4529
  %4531 = vrot.lane.b32.xlu0 %v530, 72
  %v4532 = vpop.permute.xlu0 %4531
  %v4533 = vsel %vm559, %v4530, 0
  %v4535 = vsel %vm559, %v4532, 0
  %4537 = vmatpush.xpose.msra.mxu0 0.0
  %4538 = vmatpush.xpose.msra.mxu0 0.0
  %4539 = vmatpush.xpose.msra.mxu0 0.0
  %4540 = vmatpush.xpose.msra.mxu0 0.0
  %4541 = vmatpush.xpose.msra.mxu0 0.0
  %4542 = vmatpush.xpose.msra.mxu0 0.0
  %4543 = vmatpush.xpose.msra.mxu0 0.0
  %4544 = vmatpush.xpose.msra.mxu0 0.0
  %4545 = vmatpush.xpose.msra.mxu0 0.0
  %4546 = vmatpush.xpose.msra.mxu0 0.0
  %4547 = vmatpush.xpose.msra.mxu0 0.0
  %4548 = vmatpush.xpose.msra.mxu0 0.0
  %4549 = vmatpush.xpose.msra.mxu0 0.0
  %4550 = vmatpush.xpose.msra.mxu0 0.0
  %4551 = vmatpush.xpose.msra.mxu0 0.0
  %4552 = vmatpush.xpose.msra.mxu0 %v4535
  %4553 = vmatmul.f32.gmra.mxu0 %v4533
  %v4554 = vpop.f32.mrf.mxu0
  %v4555 = vadd.f32 0.0, %v4554
  %4556 = vdwg.mxu0
  %4557 = vrot.lane.b32.xlu0 %v533, 104
  %v4558 = vpop.permute.xlu0 %4557
  %4559 = vrot.lane.b32.xlu0 %v533, 72
  %v4560 = vpop.permute.xlu0 %4559
  %v4561 = vsel %vm559, %v4558, 0
  %v4563 = vsel %vm559, %v4560, 0
  %4565 = vmatpush.xpose.msra.mxu0 0.0
  %4566 = vmatpush.xpose.msra.mxu0 0.0
  %4567 = vmatpush.xpose.msra.mxu0 0.0
  %4568 = vmatpush.xpose.msra.mxu0 0.0
  %4569 = vmatpush.xpose.msra.mxu0 0.0
  %4570 = vmatpush.xpose.msra.mxu0 0.0
  %4571 = vmatpush.xpose.msra.mxu0 0.0
  %4572 = vmatpush.xpose.msra.mxu0 0.0
  %4573 = vmatpush.xpose.msra.mxu0 0.0
  %4574 = vmatpush.xpose.msra.mxu0 0.0
  %4575 = vmatpush.xpose.msra.mxu0 0.0
  %4576 = vmatpush.xpose.msra.mxu0 0.0
  %4577 = vmatpush.xpose.msra.mxu0 0.0
  %4578 = vmatpush.xpose.msra.mxu0 0.0
  %4579 = vmatpush.xpose.msra.mxu0 0.0
  %4580 = vmatpush.xpose.msra.mxu0 %v4563
  %4581 = vmatmul.f32.gmra.mxu0 %v4561
  %v4582 = vpop.f32.mrf.mxu0
  %v4583 = vadd.f32 0.0, %v4582
  %4584 = vdwg.mxu0
  %4585 = vrot.lane.b32.xlu0 %v536, 104
  %v4586 = vpop.permute.xlu0 %4585
  %4587 = vrot.lane.b32.xlu0 %v536, 72
  %v4588 = vpop.permute.xlu0 %4587
  %v4589 = vsel %vm559, %v4586, 0
  %v4591 = vsel %vm559, %v4588, 0
  %4593 = vmatpush.xpose.msra.mxu0 0.0
  %4594 = vmatpush.xpose.msra.mxu0 0.0
  %4595 = vmatpush.xpose.msra.mxu0 0.0
  %4596 = vmatpush.xpose.msra.mxu0 0.0
  %4597 = vmatpush.xpose.msra.mxu0 0.0
  %4598 = vmatpush.xpose.msra.mxu0 0.0
  %4599 = vmatpush.xpose.msra.mxu0 0.0
  %4600 = vmatpush.xpose.msra.mxu0 0.0
  %4601 = vmatpush.xpose.msra.mxu0 0.0
  %4602 = vmatpush.xpose.msra.mxu0 0.0
  %4603 = vmatpush.xpose.msra.mxu0 0.0
  %4604 = vmatpush.xpose.msra.mxu0 0.0
  %4605 = vmatpush.xpose.msra.mxu0 0.0
  %4606 = vmatpush.xpose.msra.mxu0 0.0
  %4607 = vmatpush.xpose.msra.mxu0 0.0
  %4608 = vmatpush.xpose.msra.mxu0 %v4591
  %4609 = vmatmul.f32.gmra.mxu0 %v4589
  %v4610 = vpop.f32.mrf.mxu0
  %v4611 = vadd.f32 0.0, %v4610
  %4612 = vdwg.mxu0
  %4613 = vrot.lane.b32.xlu0 %v539, 104
  %v4614 = vpop.permute.xlu0 %4613
  %4615 = vrot.lane.b32.xlu0 %v539, 72
  %v4616 = vpop.permute.xlu0 %4615
  %v4617 = vsel %vm559, %v4614, 0
  %v4619 = vsel %vm559, %v4616, 0
  %4621 = vmatpush.xpose.msra.mxu0 0.0
  %4622 = vmatpush.xpose.msra.mxu0 0.0
  %4623 = vmatpush.xpose.msra.mxu0 0.0
  %4624 = vmatpush.xpose.msra.mxu0 0.0
  %4625 = vmatpush.xpose.msra.mxu0 0.0
  %4626 = vmatpush.xpose.msra.mxu0 0.0
  %4627 = vmatpush.xpose.msra.mxu0 0.0
  %4628 = vmatpush.xpose.msra.mxu0 0.0
  %4629 = vmatpush.xpose.msra.mxu0 0.0
  %4630 = vmatpush.xpose.msra.mxu0 0.0
  %4631 = vmatpush.xpose.msra.mxu0 0.0
  %4632 = vmatpush.xpose.msra.mxu0 0.0
  %4633 = vmatpush.xpose.msra.mxu0 0.0
  %4634 = vmatpush.xpose.msra.mxu0 0.0
  %4635 = vmatpush.xpose.msra.mxu0 0.0
  %4636 = vmatpush.xpose.msra.mxu0 %v4619
  %4637 = vmatmul.f32.gmra.mxu0 %v4617
  %v4638 = vpop.f32.mrf.mxu0
  %v4639 = vadd.f32 0.0, %v4638
  %4640 = vdwg.mxu0
  %4641 = vrot.lane.b32.xlu0 %v542, 104
  %v4642 = vpop.permute.xlu0 %4641
  %4643 = vrot.lane.b32.xlu0 %v542, 72
  %v4644 = vpop.permute.xlu0 %4643
  %v4645 = vsel %vm559, %v4642, 0
  %v4647 = vsel %vm559, %v4644, 0
  %4649 = vmatpush.xpose.msra.mxu0 0.0
  %4650 = vmatpush.xpose.msra.mxu0 0.0
  %4651 = vmatpush.xpose.msra.mxu0 0.0
  %4652 = vmatpush.xpose.msra.mxu0 0.0
  %4653 = vmatpush.xpose.msra.mxu0 0.0
  %4654 = vmatpush.xpose.msra.mxu0 0.0
  %4655 = vmatpush.xpose.msra.mxu0 0.0
  %4656 = vmatpush.xpose.msra.mxu0 0.0
  %4657 = vmatpush.xpose.msra.mxu0 0.0
  %4658 = vmatpush.xpose.msra.mxu0 0.0
  %4659 = vmatpush.xpose.msra.mxu0 0.0
  %4660 = vmatpush.xpose.msra.mxu0 0.0
  %4661 = vmatpush.xpose.msra.mxu0 0.0
  %4662 = vmatpush.xpose.msra.mxu0 0.0
  %4663 = vmatpush.xpose.msra.mxu0 0.0
  %4664 = vmatpush.xpose.msra.mxu0 %v4647
  %4665 = vmatmul.f32.gmra.mxu0 %v4645
  %v4666 = vpop.f32.mrf.mxu0
  %v4667 = vadd.f32 0.0, %v4666
  %4668 = vdwg.mxu0
  %4669 = vrot.lane.b32.xlu0 %v545, 104
  %v4670 = vpop.permute.xlu0 %4669
  %4671 = vrot.lane.b32.xlu0 %v545, 72
  %v4672 = vpop.permute.xlu0 %4671
  %v4673 = vsel %vm559, %v4670, 0
  %v4675 = vsel %vm559, %v4672, 0
  %4677 = vmatpush.xpose.msra.mxu0 0.0
  %4678 = vmatpush.xpose.msra.mxu0 0.0
  %4679 = vmatpush.xpose.msra.mxu0 0.0
  %4680 = vmatpush.xpose.msra.mxu0 0.0
  %4681 = vmatpush.xpose.msra.mxu0 0.0
  %4682 = vmatpush.xpose.msra.mxu0 0.0
  %4683 = vmatpush.xpose.msra.mxu0 0.0
  %4684 = vmatpush.xpose.msra.mxu0 0.0
  %4685 = vmatpush.xpose.msra.mxu0 0.0
  %4686 = vmatpush.xpose.msra.mxu0 0.0
  %4687 = vmatpush.xpose.msra.mxu0 0.0
  %4688 = vmatpush.xpose.msra.mxu0 0.0
  %4689 = vmatpush.xpose.msra.mxu0 0.0
  %4690 = vmatpush.xpose.msra.mxu0 0.0
  %4691 = vmatpush.xpose.msra.mxu0 0.0
  %4692 = vmatpush.xpose.msra.mxu0 %v4675
  %4693 = vmatmul.f32.gmra.mxu0 %v4673
  %v4694 = vpop.f32.mrf.mxu0
  %v4695 = vadd.f32 0.0, %v4694
  %4696 = vdwg.mxu0
  %4697 = vrot.lane.b32.xlu0 %v548, 104
  %v4698 = vpop.permute.xlu0 %4697
  %4699 = vrot.lane.b32.xlu0 %v548, 72
  %v4700 = vpop.permute.xlu0 %4699
  %v4701 = vsel %vm559, %v4698, 0
  %v4703 = vsel %vm559, %v4700, 0
  %4705 = vmatpush.xpose.msra.mxu0 0.0
  %4706 = vmatpush.xpose.msra.mxu0 0.0
  %4707 = vmatpush.xpose.msra.mxu0 0.0
  %4708 = vmatpush.xpose.msra.mxu0 0.0
  %4709 = vmatpush.xpose.msra.mxu0 0.0
  %4710 = vmatpush.xpose.msra.mxu0 0.0
  %4711 = vmatpush.xpose.msra.mxu0 0.0
  %4712 = vmatpush.xpose.msra.mxu0 0.0
  %4713 = vmatpush.xpose.msra.mxu0 0.0
  %4714 = vmatpush.xpose.msra.mxu0 0.0
  %4715 = vmatpush.xpose.msra.mxu0 0.0
  %4716 = vmatpush.xpose.msra.mxu0 0.0
  %4717 = vmatpush.xpose.msra.mxu0 0.0
  %4718 = vmatpush.xpose.msra.mxu0 0.0
  %4719 = vmatpush.xpose.msra.mxu0 0.0
  %4720 = vmatpush.xpose.msra.mxu0 %v4703
  %4721 = vmatmul.f32.gmra.mxu0 %v4701
  %v4722 = vpop.f32.mrf.mxu0
  %v4723 = vadd.f32 0.0, %v4722
  %4724 = vdwg.mxu0
  %4725 = vrot.lane.b32.xlu0 %v551, 104
  %v4726 = vpop.permute.xlu0 %4725
  %4727 = vrot.lane.b32.xlu0 %v551, 72
  %v4728 = vpop.permute.xlu0 %4727
  %v4729 = vsel %vm559, %v4726, 0
  %v4731 = vsel %vm559, %v4728, 0
  %4733 = vmatpush.xpose.msra.mxu0 0.0
  %4734 = vmatpush.xpose.msra.mxu0 0.0
  %4735 = vmatpush.xpose.msra.mxu0 0.0
  %4736 = vmatpush.xpose.msra.mxu0 0.0
  %4737 = vmatpush.xpose.msra.mxu0 0.0
  %4738 = vmatpush.xpose.msra.mxu0 0.0
  %4739 = vmatpush.xpose.msra.mxu0 0.0
  %4740 = vmatpush.xpose.msra.mxu0 0.0
  %4741 = vmatpush.xpose.msra.mxu0 0.0
  %4742 = vmatpush.xpose.msra.mxu0 0.0
  %4743 = vmatpush.xpose.msra.mxu0 0.0
  %4744 = vmatpush.xpose.msra.mxu0 0.0
  %4745 = vmatpush.xpose.msra.mxu0 0.0
  %4746 = vmatpush.xpose.msra.mxu0 0.0
  %4747 = vmatpush.xpose.msra.mxu0 0.0
  %4748 = vmatpush.xpose.msra.mxu0 %v4731
  %4749 = vmatmul.f32.gmra.mxu0 %v4729
  %v4750 = vpop.f32.mrf.mxu0
  %v4751 = vadd.f32 0.0, %v4750
  %4752 = vdwg.mxu0
  %4753 = vrot.lane.b32.xlu0 %v554, 104
  %v4754 = vpop.permute.xlu0 %4753
  %4755 = vrot.lane.b32.xlu0 %v554, 72
  %v4756 = vpop.permute.xlu0 %4755
  %v4757 = vsel %vm559, %v4754, 0
  %v4759 = vsel %vm559, %v4756, 0
  %4761 = vmatpush.xpose.msra.mxu0 0.0
  %4762 = vmatpush.xpose.msra.mxu0 0.0
  %4763 = vmatpush.xpose.msra.mxu0 0.0
  %4764 = vmatpush.xpose.msra.mxu0 0.0
  %4765 = vmatpush.xpose.msra.mxu0 0.0
  %4766 = vmatpush.xpose.msra.mxu0 0.0
  %4767 = vmatpush.xpose.msra.mxu0 0.0
  %4768 = vmatpush.xpose.msra.mxu0 0.0
  %4769 = vmatpush.xpose.msra.mxu0 0.0
  %4770 = vmatpush.xpose.msra.mxu0 0.0
  %4771 = vmatpush.xpose.msra.mxu0 0.0
  %4772 = vmatpush.xpose.msra.mxu0 0.0
  %4773 = vmatpush.xpose.msra.mxu0 0.0
  %4774 = vmatpush.xpose.msra.mxu0 0.0
  %4775 = vmatpush.xpose.msra.mxu0 0.0
  %4776 = vmatpush.xpose.msra.mxu0 %v4759
  %4777 = vmatmul.f32.gmra.mxu0 %v4757
  %v4778 = vpop.f32.mrf.mxu0
  %v4779 = vadd.f32 0.0, %v4778
  %4780 = vdwg.mxu0
  %v4781 = vmul.f32 %v4359, 0.35355338
  %v4782 = vmul.f32 %v4387, 0.35355338
  %v4783 = vmul.f32 %v4415, 0.35355338
  %v4784 = vmul.f32 %v4443, 0.35355338
  %v4785 = vmul.f32 %v4471, 0.35355338
  %v4786 = vmul.f32 %v4499, 0.35355338
  %v4787 = vmul.f32 %v4527, 0.35355338
  %v4788 = vmul.f32 %v4555, 0.35355338
  %v4789 = vmul.f32 %v4583, 0.35355338
  %v4790 = vmul.f32 %v4611, 0.35355338
  %v4791 = vmul.f32 %v4639, 0.35355338
  %v4792 = vmul.f32 %v4667, 0.35355338
  %v4793 = vmul.f32 %v4695, 0.35355338
  %v4794 = vmul.f32 %v4723, 0.35355338
  %v4795 = vmul.f32 %v4751, 0.35355338
  %v4796 = vmul.f32 %v4779, 0.35355338
  %v4797 = vsel %vm559, %v4781, -inf
  %4798 = vmax.xlane.f32.xlu0 %v4797
  %v4799 = vpop.xlane.xlu0 %4798
  %v4800 = vsel %vm559, %v4782, -inf
  %4801 = vmax.xlane.f32.xlu0 %v4800
  %v4802 = vpop.xlane.xlu0 %4801
  %v4803 = vsel %vm559, %v4783, -inf
  %4804 = vmax.xlane.f32.xlu0 %v4803
  %v4805 = vpop.xlane.xlu0 %4804
  %v4806 = vsel %vm559, %v4784, -inf
  %4807 = vmax.xlane.f32.xlu0 %v4806
  %v4808 = vpop.xlane.xlu0 %4807
  %v4809 = vsel %vm559, %v4785, -inf
  %4810 = vmax.xlane.f32.xlu0 %v4809
  %v4811 = vpop.xlane.xlu0 %4810
  %v4812 = vsel %vm559, %v4786, -inf
  %4813 = vmax.xlane.f32.xlu0 %v4812
  %v4814 = vpop.xlane.xlu0 %4813
  %v4815 = vsel %vm559, %v4787, -inf
  %4816 = vmax.xlane.f32.xlu0 %v4815
  %v4817 = vpop.xlane.xlu0 %4816
  %v4818 = vsel %vm559, %v4788, -inf
  %4819 = vmax.xlane.f32.xlu0 %v4818
  %v4820 = vpop.xlane.xlu0 %4819
  %v4821 = vsel %vm559, %v4789, -inf
  %4822 = vmax.xlane.f32.xlu0 %v4821
  %v4823 = vpop.xlane.xlu0 %4822
  %v4824 = vsel %vm559, %v4790, -inf
  %4825 = vmax.xlane.f32.xlu0 %v4824
  %v4826 = vpop.xlane.xlu0 %4825
  %v4827 = vsel %vm559, %v4791, -inf
  %4828 = vmax.xlane.f32.xlu0 %v4827
  %v4829 = vpop.xlane.xlu0 %4828
  %v4830 = vsel %vm559, %v4792, -inf
  %4831 = vmax.xlane.f32.xlu0 %v4830
  %v4832 = vpop.xlane.xlu0 %4831
  %v4833 = vsel %vm559, %v4793, -inf
  %4834 = vmax.xlane.f32.xlu0 %v4833
  %v4835 = vpop.xlane.xlu0 %4834
  %v4836 = vsel %vm559, %v4794, -inf
  %4837 = vmax.xlane.f32.xlu0 %v4836
  %v4838 = vpop.xlane.xlu0 %4837
  %v4839 = vsel %vm559, %v4795, -inf
  %4840 = vmax.xlane.f32.xlu0 %v4839
  %v4841 = vpop.xlane.xlu0 %4840
  %v4842 = vsel %vm559, %v4796, -inf
  %4843 = vmax.xlane.f32.xlu0 %v4842
  %v4844 = vpop.xlane.xlu0 %4843
  %v4845 = vsub.f32 %v4781, %v4799
  %v4846 = vsub.f32 %v4782, %v4802
  %v4847 = vsub.f32 %v4783, %v4805
  %v4848 = vsub.f32 %v4784, %v4808
  %v4849 = vsub.f32 %v4785, %v4811
  %v4850 = vsub.f32 %v4786, %v4814
  %v4851 = vsub.f32 %v4787, %v4817
  %v4852 = vsub.f32 %v4788, %v4820
  %v4853 = vsub.f32 %v4789, %v4823
  %v4854 = vsub.f32 %v4790, %v4826
  %v4855 = vsub.f32 %v4791, %v4829
  %v4856 = vsub.f32 %v4792, %v4832
  %v4857 = vsub.f32 %v4793, %v4835
  %v4858 = vsub.f32 %v4794, %v4838
  %v4859 = vsub.f32 %v4795, %v4841
  %v4860 = vsub.f32 %v4796, %v4844
  %v4861 = vmul.f32 %v4845, 1.442695
  %v4862 = vpow.pop %v4861
  %v4863 = vmul.f32 %v4846, 1.442695
  %v4864 = vpow.pop %v4863
  %v4865 = vmul.f32 %v4847, 1.442695
  %v4866 = vpow.pop %v4865
  %v4867 = vmul.f32 %v4848, 1.442695
  %v4868 = vpow.pop %v4867
  %v4869 = vmul.f32 %v4849, 1.442695
  %v4870 = vpow.pop %v4869
  %v4871 = vmul.f32 %v4850, 1.442695
  %v4872 = vpow.pop %v4871
  %v4873 = vmul.f32 %v4851, 1.442695
  %v4874 = vpow.pop %v4873
  %v4875 = vmul.f32 %v4852, 1.442695
  %v4876 = vpow.pop %v4875
  %v4877 = vmul.f32 %v4853, 1.442695
  %v4878 = vpow.pop %v4877
  %v4879 = vmul.f32 %v4854, 1.442695
  %v4880 = vpow.pop %v4879
  %v4881 = vmul.f32 %v4855, 1.442695
  %v4882 = vpow.pop %v4881
  %v4883 = vmul.f32 %v4856, 1.442695
  %v4884 = vpow.pop %v4883
  %v4885 = vmul.f32 %v4857, 1.442695
  %v4886 = vpow.pop %v4885
  %v4887 = vmul.f32 %v4858, 1.442695
  %v4888 = vpow.pop %v4887
  %v4889 = vmul.f32 %v4859, 1.442695
  %v4890 = vpow.pop %v4889
  %v4891 = vmul.f32 %v4860, 1.442695
  %v4892 = vpow.pop %v4891
  %v4893 = vsel %vm559, %v4862, 0.0
  %4894 = vadd.xlane.f32.xlu0 %v4893
  %v4895 = vpop.xlane.xlu0 %4894
  %v4896 = vsel %vm559, %v4864, 0.0
  %4897 = vadd.xlane.f32.xlu0 %v4896
  %v4898 = vpop.xlane.xlu0 %4897
  %v4899 = vsel %vm559, %v4866, 0.0
  %4900 = vadd.xlane.f32.xlu0 %v4899
  %v4901 = vpop.xlane.xlu0 %4900
  %v4902 = vsel %vm559, %v4868, 0.0
  %4903 = vadd.xlane.f32.xlu0 %v4902
  %v4904 = vpop.xlane.xlu0 %4903
  %v4905 = vsel %vm559, %v4870, 0.0
  %4906 = vadd.xlane.f32.xlu0 %v4905
  %v4907 = vpop.xlane.xlu0 %4906
  %v4908 = vsel %vm559, %v4872, 0.0
  %4909 = vadd.xlane.f32.xlu0 %v4908
  %v4910 = vpop.xlane.xlu0 %4909
  %v4911 = vsel %vm559, %v4874, 0.0
  %4912 = vadd.xlane.f32.xlu0 %v4911
  %v4913 = vpop.xlane.xlu0 %4912
  %v4914 = vsel %vm559, %v4876, 0.0
  %4915 = vadd.xlane.f32.xlu0 %v4914
  %v4916 = vpop.xlane.xlu0 %4915
  %v4917 = vsel %vm559, %v4878, 0.0
  %4918 = vadd.xlane.f32.xlu0 %v4917
  %v4919 = vpop.xlane.xlu0 %4918
  %v4920 = vsel %vm559, %v4880, 0.0
  %4921 = vadd.xlane.f32.xlu0 %v4920
  %v4922 = vpop.xlane.xlu0 %4921
  %v4923 = vsel %vm559, %v4882, 0.0
  %4924 = vadd.xlane.f32.xlu0 %v4923
  %v4925 = vpop.xlane.xlu0 %4924
  %v4926 = vsel %vm559, %v4884, 0.0
  %4927 = vadd.xlane.f32.xlu0 %v4926
  %v4928 = vpop.xlane.xlu0 %4927
  %v4929 = vsel %vm559, %v4886, 0.0
  %4930 = vadd.xlane.f32.xlu0 %v4929
  %v4931 = vpop.xlane.xlu0 %4930
  %v4932 = vsel %vm559, %v4888, 0.0
  %4933 = vadd.xlane.f32.xlu0 %v4932
  %v4934 = vpop.xlane.xlu0 %4933
  %v4935 = vsel %vm559, %v4890, 0.0
  %4936 = vadd.xlane.f32.xlu0 %v4935
  %v4937 = vpop.xlane.xlu0 %4936
  %v4938 = vsel %vm559, %v4892, 0.0
  %4939 = vadd.xlane.f32.xlu0 %v4938
  %v4940 = vpop.xlane.xlu0 %4939
  %v4941 = vrcp.pop %v4895
  %v4942 = vmul.f32 %v4895, %v4941
  %v4943 = vsub.f32 1.0, %v4942
  %v4944 = vmul.f32 %v4941, %v4943
  %v4945 = vadd.f32 %v4941, %v4944
  %vm4946 = vweird.f32 %v4895
  %vm4947 = vweird.f32 %v4941
  %vm4948 = vmor %vm4946, %vm4947
  %v4949 = vsel %vm4948, %v4941, %v4945
  %v4950 = vand.u32 2147483647, %v4895
  %vm4951 = vcmp.eq.f32.partialorder %v4950, 8.507059e+37
  %v4952 = vand.u32 %v4895, 2147483648
  %v4953 = vor.u32 1.1754944e-38, %v4952
  %v4954 = vsel %vm4951, %v4953, %v4949
  %v4955 = vmul.f32 %v4862, %v4954
  %v4956 = vrcp.pop %v4898
  %v4957 = vmul.f32 %v4898, %v4956
  %v4958 = vsub.f32 1.0, %v4957
  %v4959 = vmul.f32 %v4956, %v4958
  %v4960 = vadd.f32 %v4956, %v4959
  %vm4961 = vweird.f32 %v4898
  %vm4962 = vweird.f32 %v4956
  %vm4963 = vmor %vm4961, %vm4962
  %v4964 = vsel %vm4963, %v4956, %v4960
  %v4965 = vand.u32 2147483647, %v4898
  %vm4966 = vcmp.eq.f32.partialorder %v4965, 8.507059e+37
  %v4967 = vand.u32 %v4898, 2147483648
  %v4968 = vor.u32 1.1754944e-38, %v4967
  %v4969 = vsel %vm4966, %v4968, %v4964
  %v4970 = vmul.f32 %v4864, %v4969
  %v4971 = vrcp.pop %v4901
  %v4972 = vmul.f32 %v4901, %v4971
  %v4973 = vsub.f32 1.0, %v4972
  %v4974 = vmul.f32 %v4971, %v4973
  %v4975 = vadd.f32 %v4971, %v4974
  %vm4976 = vweird.f32 %v4901
  %vm4977 = vweird.f32 %v4971
  %vm4978 = vmor %vm4976, %vm4977
  %v4979 = vsel %vm4978, %v4971, %v4975
  %v4980 = vand.u32 2147483647, %v4901
  %vm4981 = vcmp.eq.f32.partialorder %v4980, 8.507059e+37
  %v4982 = vand.u32 %v4901, 2147483648
  %v4983 = vor.u32 1.1754944e-38, %v4982
  %v4984 = vsel %vm4981, %v4983, %v4979
  %v4985 = vmul.f32 %v4866, %v4984
  %v4986 = vrcp.pop %v4904
  %v4987 = vmul.f32 %v4904, %v4986
  %v4988 = vsub.f32 1.0, %v4987
  %v4989 = vmul.f32 %v4986, %v4988
  %v4990 = vadd.f32 %v4986, %v4989
  %vm4991 = vweird.f32 %v4904
  %vm4992 = vweird.f32 %v4986
  %vm4993 = vmor %vm4991, %vm4992
  %v4994 = vsel %vm4993, %v4986, %v4990
  %v4995 = vand.u32 2147483647, %v4904
  %vm4996 = vcmp.eq.f32.partialorder %v4995, 8.507059e+37
  %v4997 = vand.u32 %v4904, 2147483648
  %v4998 = vor.u32 1.1754944e-38, %v4997
  %v4999 = vsel %vm4996, %v4998, %v4994
  %v5000 = vmul.f32 %v4868, %v4999
  %v5001 = vrcp.pop %v4907
  %v5002 = vmul.f32 %v4907, %v5001
  %v5003 = vsub.f32 1.0, %v5002
  %v5004 = vmul.f32 %v5001, %v5003
  %v5005 = vadd.f32 %v5001, %v5004
  %vm5006 = vweird.f32 %v4907
  %vm5007 = vweird.f32 %v5001
  %vm5008 = vmor %vm5006, %vm5007
  %v5009 = vsel %vm5008, %v5001, %v5005
  %v5010 = vand.u32 2147483647, %v4907
  %vm5011 = vcmp.eq.f32.partialorder %v5010, 8.507059e+37
  %v5012 = vand.u32 %v4907, 2147483648
  %v5013 = vor.u32 1.1754944e-38, %v5012
  %v5014 = vsel %vm5011, %v5013, %v5009
  %v5015 = vmul.f32 %v4870, %v5014
  %v5016 = vrcp.pop %v4910
  %v5017 = vmul.f32 %v4910, %v5016
  %v5018 = vsub.f32 1.0, %v5017
  %v5019 = vmul.f32 %v5016, %v5018
  %v5020 = vadd.f32 %v5016, %v5019
  %vm5021 = vweird.f32 %v4910
  %vm5022 = vweird.f32 %v5016
  %vm5023 = vmor %vm5021, %vm5022
  %v5024 = vsel %vm5023, %v5016, %v5020
  %v5025 = vand.u32 2147483647, %v4910
  %vm5026 = vcmp.eq.f32.partialorder %v5025, 8.507059e+37
  %v5027 = vand.u32 %v4910, 2147483648
  %v5028 = vor.u32 1.1754944e-38, %v5027
  %v5029 = vsel %vm5026, %v5028, %v5024
  %v5030 = vmul.f32 %v4872, %v5029
  %v5031 = vrcp.pop %v4913
  %v5032 = vmul.f32 %v4913, %v5031
  %v5033 = vsub.f32 1.0, %v5032
  %v5034 = vmul.f32 %v5031, %v5033
  %v5035 = vadd.f32 %v5031, %v5034
  %vm5036 = vweird.f32 %v4913
  %vm5037 = vweird.f32 %v5031
  %vm5038 = vmor %vm5036, %vm5037
  %v5039 = vsel %vm5038, %v5031, %v5035
  %v5040 = vand.u32 2147483647, %v4913
  %vm5041 = vcmp.eq.f32.partialorder %v5040, 8.507059e+37
  %v5042 = vand.u32 %v4913, 2147483648
  %v5043 = vor.u32 1.1754944e-38, %v5042
  %v5044 = vsel %vm5041, %v5043, %v5039
  %v5045 = vmul.f32 %v4874, %v5044
  %v5046 = vrcp.pop %v4916
  %v5047 = vmul.f32 %v4916, %v5046
  %v5048 = vsub.f32 1.0, %v5047
  %v5049 = vmul.f32 %v5046, %v5048
  %v5050 = vadd.f32 %v5046, %v5049
  %vm5051 = vweird.f32 %v4916
  %vm5052 = vweird.f32 %v5046
  %vm5053 = vmor %vm5051, %vm5052
  %v5054 = vsel %vm5053, %v5046, %v5050
  %v5055 = vand.u32 2147483647, %v4916
  %vm5056 = vcmp.eq.f32.partialorder %v5055, 8.507059e+37
  %v5057 = vand.u32 %v4916, 2147483648
  %v5058 = vor.u32 1.1754944e-38, %v5057
  %v5059 = vsel %vm5056, %v5058, %v5054
  %v5060 = vmul.f32 %v4876, %v5059
  %v5061 = vrcp.pop %v4919
  %v5062 = vmul.f32 %v4919, %v5061
  %v5063 = vsub.f32 1.0, %v5062
  %v5064 = vmul.f32 %v5061, %v5063
  %v5065 = vadd.f32 %v5061, %v5064
  %vm5066 = vweird.f32 %v4919
  %vm5067 = vweird.f32 %v5061
  %vm5068 = vmor %vm5066, %vm5067
  %v5069 = vsel %vm5068, %v5061, %v5065
  %v5070 = vand.u32 2147483647, %v4919
  %vm5071 = vcmp.eq.f32.partialorder %v5070, 8.507059e+37
  %v5072 = vand.u32 %v4919, 2147483648
  %v5073 = vor.u32 1.1754944e-38, %v5072
  %v5074 = vsel %vm5071, %v5073, %v5069
  %v5075 = vmul.f32 %v4878, %v5074
  %v5076 = vrcp.pop %v4922
  %v5077 = vmul.f32 %v4922, %v5076
  %v5078 = vsub.f32 1.0, %v5077
  %v5079 = vmul.f32 %v5076, %v5078
  %v5080 = vadd.f32 %v5076, %v5079
  %vm5081 = vweird.f32 %v4922
  %vm5082 = vweird.f32 %v5076
  %vm5083 = vmor %vm5081, %vm5082
  %v5084 = vsel %vm5083, %v5076, %v5080
  %v5085 = vand.u32 2147483647, %v4922
  %vm5086 = vcmp.eq.f32.partialorder %v5085, 8.507059e+37
  %v5087 = vand.u32 %v4922, 2147483648
  %v5088 = vor.u32 1.1754944e-38, %v5087
  %v5089 = vsel %vm5086, %v5088, %v5084
  %v5090 = vmul.f32 %v4880, %v5089
  %v5091 = vrcp.pop %v4925
  %v5092 = vmul.f32 %v4925, %v5091
  %v5093 = vsub.f32 1.0, %v5092
  %v5094 = vmul.f32 %v5091, %v5093
  %v5095 = vadd.f32 %v5091, %v5094
  %vm5096 = vweird.f32 %v4925
  %vm5097 = vweird.f32 %v5091
  %vm5098 = vmor %vm5096, %vm5097
  %v5099 = vsel %vm5098, %v5091, %v5095
  %v5100 = vand.u32 2147483647, %v4925
  %vm5101 = vcmp.eq.f32.partialorder %v5100, 8.507059e+37
  %v5102 = vand.u32 %v4925, 2147483648
  %v5103 = vor.u32 1.1754944e-38, %v5102
  %v5104 = vsel %vm5101, %v5103, %v5099
  %v5105 = vmul.f32 %v4882, %v5104
  %v5106 = vrcp.pop %v4928
  %v5107 = vmul.f32 %v4928, %v5106
  %v5108 = vsub.f32 1.0, %v5107
  %v5109 = vmul.f32 %v5106, %v5108
  %v5110 = vadd.f32 %v5106, %v5109
  %vm5111 = vweird.f32 %v4928
  %vm5112 = vweird.f32 %v5106
  %vm5113 = vmor %vm5111, %vm5112
  %v5114 = vsel %vm5113, %v5106, %v5110
  %v5115 = vand.u32 2147483647, %v4928
  %vm5116 = vcmp.eq.f32.partialorder %v5115, 8.507059e+37
  %v5117 = vand.u32 %v4928, 2147483648
  %v5118 = vor.u32 1.1754944e-38, %v5117
  %v5119 = vsel %vm5116, %v5118, %v5114
  %v5120 = vmul.f32 %v4884, %v5119
  %v5121 = vrcp.pop %v4931
  %v5122 = vmul.f32 %v4931, %v5121
  %v5123 = vsub.f32 1.0, %v5122
  %v5124 = vmul.f32 %v5121, %v5123
  %v5125 = vadd.f32 %v5121, %v5124
  %vm5126 = vweird.f32 %v4931
  %vm5127 = vweird.f32 %v5121
  %vm5128 = vmor %vm5126, %vm5127
  %v5129 = vsel %vm5128, %v5121, %v5125
  %v5130 = vand.u32 2147483647, %v4931
  %vm5131 = vcmp.eq.f32.partialorder %v5130, 8.507059e+37
  %v5132 = vand.u32 %v4931, 2147483648
  %v5133 = vor.u32 1.1754944e-38, %v5132
  %v5134 = vsel %vm5131, %v5133, %v5129
  %v5135 = vmul.f32 %v4886, %v5134
  %v5136 = vrcp.pop %v4934
  %v5137 = vmul.f32 %v4934, %v5136
  %v5138 = vsub.f32 1.0, %v5137
  %v5139 = vmul.f32 %v5136, %v5138
  %v5140 = vadd.f32 %v5136, %v5139
  %vm5141 = vweird.f32 %v4934
  %vm5142 = vweird.f32 %v5136
  %vm5143 = vmor %vm5141, %vm5142
  %v5144 = vsel %vm5143, %v5136, %v5140
  %v5145 = vand.u32 2147483647, %v4934
  %vm5146 = vcmp.eq.f32.partialorder %v5145, 8.507059e+37
  %v5147 = vand.u32 %v4934, 2147483648
  %v5148 = vor.u32 1.1754944e-38, %v5147
  %v5149 = vsel %vm5146, %v5148, %v5144
  %v5150 = vmul.f32 %v4888, %v5149
  %v5151 = vrcp.pop %v4937
  %v5152 = vmul.f32 %v4937, %v5151
  %v5153 = vsub.f32 1.0, %v5152
  %v5154 = vmul.f32 %v5151, %v5153
  %v5155 = vadd.f32 %v5151, %v5154
  %vm5156 = vweird.f32 %v4937
  %vm5157 = vweird.f32 %v5151
  %vm5158 = vmor %vm5156, %vm5157
  %v5159 = vsel %vm5158, %v5151, %v5155
  %v5160 = vand.u32 2147483647, %v4937
  %vm5161 = vcmp.eq.f32.partialorder %v5160, 8.507059e+37
  %v5162 = vand.u32 %v4937, 2147483648
  %v5163 = vor.u32 1.1754944e-38, %v5162
  %v5164 = vsel %vm5161, %v5163, %v5159
  %v5165 = vmul.f32 %v4890, %v5164
  %v5166 = vrcp.pop %v4940
  %v5167 = vmul.f32 %v4940, %v5166
  %v5168 = vsub.f32 1.0, %v5167
  %v5169 = vmul.f32 %v5166, %v5168
  %v5170 = vadd.f32 %v5166, %v5169
  %vm5171 = vweird.f32 %v4940
  %vm5172 = vweird.f32 %v5166
  %vm5173 = vmor %vm5171, %vm5172
  %v5174 = vsel %vm5173, %v5166, %v5170
  %v5175 = vand.u32 2147483647, %v4940
  %vm5176 = vcmp.eq.f32.partialorder %v5175, 8.507059e+37
  %v5177 = vand.u32 %v4940, 2147483648
  %v5178 = vor.u32 1.1754944e-38, %v5177
  %v5179 = vsel %vm5176, %v5178, %v5174
  %v5180 = vmul.f32 %v4892, %v5179
  %5181 = vrot.lane.b32.xlu0 %v509, 40
  %v5182 = vpop.permute.xlu0 %5181
  %v5185 = vsel %vm559, %v4955, 0
  %5187 = vmatpush.msra.mxu0 0.0
  %5188 = vmatpush.msra.mxu0 0.0
  %5189 = vmatpush.msra.mxu0 0.0
  %5190 = vmatpush.msra.mxu0 0.0
  %5191 = vmatpush.msra.mxu0 0.0
  %5192 = vmatpush.msra.mxu0 0.0
  %5193 = vmatpush.msra.mxu0 0.0
  %5194 = vmatpush.msra.mxu0 0.0
  %5195 = vmatpush.msra.mxu0 0.0
  %5196 = vmatpush.msra.mxu0 0.0
  %5197 = vmatpush.msra.mxu0 0.0
  %5198 = vmatpush.msra.mxu0 0.0
  %5199 = vmatpush.msra.mxu0 0.0
  %5200 = vmatpush.msra.mxu0 0.0
  %5201 = vmatpush.msra.mxu0 0.0
  %5202 = vmatpush.msra.mxu0 %v5182
  %5203 = vmatmul.f32.gmra.mxu0 %v5185
  %v5204 = vpop.f32.mrf.mxu0
  %v5205 = vadd.f32 0.0, %v5204
  %5206 = vdwg.mxu0
  %5207 = vrot.lane.b32.xlu0 %v512, 40
  %v5208 = vpop.permute.xlu0 %5207
  %v5211 = vsel %vm559, %v4970, 0
  %5213 = vmatpush.msra.mxu0 0.0
  %5214 = vmatpush.msra.mxu0 0.0
  %5215 = vmatpush.msra.mxu0 0.0
  %5216 = vmatpush.msra.mxu0 0.0
  %5217 = vmatpush.msra.mxu0 0.0
  %5218 = vmatpush.msra.mxu0 0.0
  %5219 = vmatpush.msra.mxu0 0.0
  %5220 = vmatpush.msra.mxu0 0.0
  %5221 = vmatpush.msra.mxu0 0.0
  %5222 = vmatpush.msra.mxu0 0.0
  %5223 = vmatpush.msra.mxu0 0.0
  %5224 = vmatpush.msra.mxu0 0.0
  %5225 = vmatpush.msra.mxu0 0.0
  %5226 = vmatpush.msra.mxu0 0.0
  %5227 = vmatpush.msra.mxu0 0.0
  %5228 = vmatpush.msra.mxu0 %v5208
  %5229 = vmatmul.f32.gmra.mxu0 %v5211
  %v5230 = vpop.f32.mrf.mxu0
  %v5231 = vadd.f32 0.0, %v5230
  %5232 = vdwg.mxu0
  %5233 = vrot.lane.b32.xlu0 %v515, 40
  %v5234 = vpop.permute.xlu0 %5233
  %v5237 = vsel %vm559, %v4985, 0
  %5239 = vmatpush.msra.mxu0 0.0
  %5240 = vmatpush.msra.mxu0 0.0
  %5241 = vmatpush.msra.mxu0 0.0
  %5242 = vmatpush.msra.mxu0 0.0
  %5243 = vmatpush.msra.mxu0 0.0
  %5244 = vmatpush.msra.mxu0 0.0
  %5245 = vmatpush.msra.mxu0 0.0
  %5246 = vmatpush.msra.mxu0 0.0
  %5247 = vmatpush.msra.mxu0 0.0
  %5248 = vmatpush.msra.mxu0 0.0
  %5249 = vmatpush.msra.mxu0 0.0
  %5250 = vmatpush.msra.mxu0 0.0
  %5251 = vmatpush.msra.mxu0 0.0
  %5252 = vmatpush.msra.mxu0 0.0
  %5253 = vmatpush.msra.mxu0 0.0
  %5254 = vmatpush.msra.mxu0 %v5234
  %5255 = vmatmul.f32.gmra.mxu0 %v5237
  %v5256 = vpop.f32.mrf.mxu0
  %v5257 = vadd.f32 0.0, %v5256
  %5258 = vdwg.mxu0
  %5259 = vrot.lane.b32.xlu0 %v518, 40
  %v5260 = vpop.permute.xlu0 %5259
  %v5263 = vsel %vm559, %v5000, 0
  %5265 = vmatpush.msra.mxu0 0.0
  %5266 = vmatpush.msra.mxu0 0.0
  %5267 = vmatpush.msra.mxu0 0.0
  %5268 = vmatpush.msra.mxu0 0.0
  %5269 = vmatpush.msra.mxu0 0.0
  %5270 = vmatpush.msra.mxu0 0.0
  %5271 = vmatpush.msra.mxu0 0.0
  %5272 = vmatpush.msra.mxu0 0.0
  %5273 = vmatpush.msra.mxu0 0.0
  %5274 = vmatpush.msra.mxu0 0.0
  %5275 = vmatpush.msra.mxu0 0.0
  %5276 = vmatpush.msra.mxu0 0.0
  %5277 = vmatpush.msra.mxu0 0.0
  %5278 = vmatpush.msra.mxu0 0.0
  %5279 = vmatpush.msra.mxu0 0.0
  %5280 = vmatpush.msra.mxu0 %v5260
  %5281 = vmatmul.f32.gmra.mxu0 %v5263
  %v5282 = vpop.f32.mrf.mxu0
  %v5283 = vadd.f32 0.0, %v5282
  %5284 = vdwg.mxu0
  %5285 = vrot.lane.b32.xlu0 %v521, 40
  %v5286 = vpop.permute.xlu0 %5285
  %v5289 = vsel %vm559, %v5015, 0
  %5291 = vmatpush.msra.mxu0 0.0
  %5292 = vmatpush.msra.mxu0 0.0
  %5293 = vmatpush.msra.mxu0 0.0
  %5294 = vmatpush.msra.mxu0 0.0
  %5295 = vmatpush.msra.mxu0 0.0
  %5296 = vmatpush.msra.mxu0 0.0
  %5297 = vmatpush.msra.mxu0 0.0
  %5298 = vmatpush.msra.mxu0 0.0
  %5299 = vmatpush.msra.mxu0 0.0
  %5300 = vmatpush.msra.mxu0 0.0
  %5301 = vmatpush.msra.mxu0 0.0
  %5302 = vmatpush.msra.mxu0 0.0
  %5303 = vmatpush.msra.mxu0 0.0
  %5304 = vmatpush.msra.mxu0 0.0
  %5305 = vmatpush.msra.mxu0 0.0
  %5306 = vmatpush.msra.mxu0 %v5286
  %5307 = vmatmul.f32.gmra.mxu0 %v5289
  %v5308 = vpop.f32.mrf.mxu0
  %v5309 = vadd.f32 0.0, %v5308
  %5310 = vdwg.mxu0
  %5311 = vrot.lane.b32.xlu0 %v524, 40
  %v5312 = vpop.permute.xlu0 %5311
  %v5315 = vsel %vm559, %v5030, 0
  %5317 = vmatpush.msra.mxu0 0.0
  %5318 = vmatpush.msra.mxu0 0.0
  %5319 = vmatpush.msra.mxu0 0.0
  %5320 = vmatpush.msra.mxu0 0.0
  %5321 = vmatpush.msra.mxu0 0.0
  %5322 = vmatpush.msra.mxu0 0.0
  %5323 = vmatpush.msra.mxu0 0.0
  %5324 = vmatpush.msra.mxu0 0.0
  %5325 = vmatpush.msra.mxu0 0.0
  %5326 = vmatpush.msra.mxu0 0.0
  %5327 = vmatpush.msra.mxu0 0.0
  %5328 = vmatpush.msra.mxu0 0.0
  %5329 = vmatpush.msra.mxu0 0.0
  %5330 = vmatpush.msra.mxu0 0.0
  %5331 = vmatpush.msra.mxu0 0.0
  %5332 = vmatpush.msra.mxu0 %v5312
  %5333 = vmatmul.f32.gmra.mxu0 %v5315
  %v5334 = vpop.f32.mrf.mxu0
  %v5335 = vadd.f32 0.0, %v5334
  %5336 = vdwg.mxu0
  %5337 = vrot.lane.b32.xlu0 %v527, 40
  %v5338 = vpop.permute.xlu0 %5337
  %v5341 = vsel %vm559, %v5045, 0
  %5343 = vmatpush.msra.mxu0 0.0
  %5344 = vmatpush.msra.mxu0 0.0
  %5345 = vmatpush.msra.mxu0 0.0
  %5346 = vmatpush.msra.mxu0 0.0
  %5347 = vmatpush.msra.mxu0 0.0
  %5348 = vmatpush.msra.mxu0 0.0
  %5349 = vmatpush.msra.mxu0 0.0
  %5350 = vmatpush.msra.mxu0 0.0
  %5351 = vmatpush.msra.mxu0 0.0
  %5352 = vmatpush.msra.mxu0 0.0
  %5353 = vmatpush.msra.mxu0 0.0
  %5354 = vmatpush.msra.mxu0 0.0
  %5355 = vmatpush.msra.mxu0 0.0
  %5356 = vmatpush.msra.mxu0 0.0
  %5357 = vmatpush.msra.mxu0 0.0
  %5358 = vmatpush.msra.mxu0 %v5338
  %5359 = vmatmul.f32.gmra.mxu0 %v5341
  %v5360 = vpop.f32.mrf.mxu0
  %v5361 = vadd.f32 0.0, %v5360
  %5362 = vdwg.mxu0
  %5363 = vrot.lane.b32.xlu0 %v530, 40
  %v5364 = vpop.permute.xlu0 %5363
  %v5367 = vsel %vm559, %v5060, 0
  %5369 = vmatpush.msra.mxu0 0.0
  %5370 = vmatpush.msra.mxu0 0.0
  %5371 = vmatpush.msra.mxu0 0.0
  %5372 = vmatpush.msra.mxu0 0.0
  %5373 = vmatpush.msra.mxu0 0.0
  %5374 = vmatpush.msra.mxu0 0.0
  %5375 = vmatpush.msra.mxu0 0.0
  %5376 = vmatpush.msra.mxu0 0.0
  %5377 = vmatpush.msra.mxu0 0.0
  %5378 = vmatpush.msra.mxu0 0.0
  %5379 = vmatpush.msra.mxu0 0.0
  %5380 = vmatpush.msra.mxu0 0.0
  %5381 = vmatpush.msra.mxu0 0.0
  %5382 = vmatpush.msra.mxu0 0.0
  %5383 = vmatpush.msra.mxu0 0.0
  %5384 = vmatpush.msra.mxu0 %v5364
  %5385 = vmatmul.f32.gmra.mxu0 %v5367
  %v5386 = vpop.f32.mrf.mxu0
  %v5387 = vadd.f32 0.0, %v5386
  %5388 = vdwg.mxu0
  %5389 = vrot.lane.b32.xlu0 %v533, 40
  %v5390 = vpop.permute.xlu0 %5389
  %v5393 = vsel %vm559, %v5075, 0
  %5395 = vmatpush.msra.mxu0 0.0
  %5396 = vmatpush.msra.mxu0 0.0
  %5397 = vmatpush.msra.mxu0 0.0
  %5398 = vmatpush.msra.mxu0 0.0
  %5399 = vmatpush.msra.mxu0 0.0
  %5400 = vmatpush.msra.mxu0 0.0
  %5401 = vmatpush.msra.mxu0 0.0
  %5402 = vmatpush.msra.mxu0 0.0
  %5403 = vmatpush.msra.mxu0 0.0
  %5404 = vmatpush.msra.mxu0 0.0
  %5405 = vmatpush.msra.mxu0 0.0
  %5406 = vmatpush.msra.mxu0 0.0
  %5407 = vmatpush.msra.mxu0 0.0
  %5408 = vmatpush.msra.mxu0 0.0
  %5409 = vmatpush.msra.mxu0 0.0
  %5410 = vmatpush.msra.mxu0 %v5390
  %5411 = vmatmul.f32.gmra.mxu0 %v5393
  %v5412 = vpop.f32.mrf.mxu0
  %v5413 = vadd.f32 0.0, %v5412
  %5414 = vdwg.mxu0
  %5415 = vrot.lane.b32.xlu0 %v536, 40
  %v5416 = vpop.permute.xlu0 %5415
  %v5419 = vsel %vm559, %v5090, 0
  %5421 = vmatpush.msra.mxu0 0.0
  %5422 = vmatpush.msra.mxu0 0.0
  %5423 = vmatpush.msra.mxu0 0.0
  %5424 = vmatpush.msra.mxu0 0.0
  %5425 = vmatpush.msra.mxu0 0.0
  %5426 = vmatpush.msra.mxu0 0.0
  %5427 = vmatpush.msra.mxu0 0.0
  %5428 = vmatpush.msra.mxu0 0.0
  %5429 = vmatpush.msra.mxu0 0.0
  %5430 = vmatpush.msra.mxu0 0.0
  %5431 = vmatpush.msra.mxu0 0.0
  %5432 = vmatpush.msra.mxu0 0.0
  %5433 = vmatpush.msra.mxu0 0.0
  %5434 = vmatpush.msra.mxu0 0.0
  %5435 = vmatpush.msra.mxu0 0.0
  %5436 = vmatpush.msra.mxu0 %v5416
  %5437 = vmatmul.f32.gmra.mxu0 %v5419
  %v5438 = vpop.f32.mrf.mxu0
  %v5439 = vadd.f32 0.0, %v5438
  %5440 = vdwg.mxu0
  %5441 = vrot.lane.b32.xlu0 %v539, 40
  %v5442 = vpop.permute.xlu0 %5441
  %v5445 = vsel %vm559, %v5105, 0
  %5447 = vmatpush.msra.mxu0 0.0
  %5448 = vmatpush.msra.mxu0 0.0
  %5449 = vmatpush.msra.mxu0 0.0
  %5450 = vmatpush.msra.mxu0 0.0
  %5451 = vmatpush.msra.mxu0 0.0
  %5452 = vmatpush.msra.mxu0 0.0
  %5453 = vmatpush.msra.mxu0 0.0
  %5454 = vmatpush.msra.mxu0 0.0
  %5455 = vmatpush.msra.mxu0 0.0
  %5456 = vmatpush.msra.mxu0 0.0
  %5457 = vmatpush.msra.mxu0 0.0
  %5458 = vmatpush.msra.mxu0 0.0
  %5459 = vmatpush.msra.mxu0 0.0
  %5460 = vmatpush.msra.mxu0 0.0
  %5461 = vmatpush.msra.mxu0 0.0
  %5462 = vmatpush.msra.mxu0 %v5442
  %5463 = vmatmul.f32.gmra.mxu0 %v5445
  %v5464 = vpop.f32.mrf.mxu0
  %v5465 = vadd.f32 0.0, %v5464
  %5466 = vdwg.mxu0
  %5467 = vrot.lane.b32.xlu0 %v542, 40
  %v5468 = vpop.permute.xlu0 %5467
  %v5471 = vsel %vm559, %v5120, 0
  %5473 = vmatpush.msra.mxu0 0.0
  %5474 = vmatpush.msra.mxu0 0.0
  %5475 = vmatpush.msra.mxu0 0.0
  %5476 = vmatpush.msra.mxu0 0.0
  %5477 = vmatpush.msra.mxu0 0.0
  %5478 = vmatpush.msra.mxu0 0.0
  %5479 = vmatpush.msra.mxu0 0.0
  %5480 = vmatpush.msra.mxu0 0.0
  %5481 = vmatpush.msra.mxu0 0.0
  %5482 = vmatpush.msra.mxu0 0.0
  %5483 = vmatpush.msra.mxu0 0.0
  %5484 = vmatpush.msra.mxu0 0.0
  %5485 = vmatpush.msra.mxu0 0.0
  %5486 = vmatpush.msra.mxu0 0.0
  %5487 = vmatpush.msra.mxu0 0.0
  %5488 = vmatpush.msra.mxu0 %v5468
  %5489 = vmatmul.f32.gmra.mxu0 %v5471
  %v5490 = vpop.f32.mrf.mxu0
  %v5491 = vadd.f32 0.0, %v5490
  %5492 = vdwg.mxu0
  %5493 = vrot.lane.b32.xlu0 %v545, 40
  %v5494 = vpop.permute.xlu0 %5493
  %v5497 = vsel %vm559, %v5135, 0
  %5499 = vmatpush.msra.mxu0 0.0
  %5500 = vmatpush.msra.mxu0 0.0
  %5501 = vmatpush.msra.mxu0 0.0
  %5502 = vmatpush.msra.mxu0 0.0
  %5503 = vmatpush.msra.mxu0 0.0
  %5504 = vmatpush.msra.mxu0 0.0
  %5505 = vmatpush.msra.mxu0 0.0
  %5506 = vmatpush.msra.mxu0 0.0
  %5507 = vmatpush.msra.mxu0 0.0
  %5508 = vmatpush.msra.mxu0 0.0
  %5509 = vmatpush.msra.mxu0 0.0
  %5510 = vmatpush.msra.mxu0 0.0
  %5511 = vmatpush.msra.mxu0 0.0
  %5512 = vmatpush.msra.mxu0 0.0
  %5513 = vmatpush.msra.mxu0 0.0
  %5514 = vmatpush.msra.mxu0 %v5494
  %5515 = vmatmul.f32.gmra.mxu0 %v5497
  %v5516 = vpop.f32.mrf.mxu0
  %v5517 = vadd.f32 0.0, %v5516
  %5518 = vdwg.mxu0
  %5519 = vrot.lane.b32.xlu0 %v548, 40
  %v5520 = vpop.permute.xlu0 %5519
  %v5523 = vsel %vm559, %v5150, 0
  %5525 = vmatpush.msra.mxu0 0.0
  %5526 = vmatpush.msra.mxu0 0.0
  %5527 = vmatpush.msra.mxu0 0.0
  %5528 = vmatpush.msra.mxu0 0.0
  %5529 = vmatpush.msra.mxu0 0.0
  %5530 = vmatpush.msra.mxu0 0.0
  %5531 = vmatpush.msra.mxu0 0.0
  %5532 = vmatpush.msra.mxu0 0.0
  %5533 = vmatpush.msra.mxu0 0.0
  %5534 = vmatpush.msra.mxu0 0.0
  %5535 = vmatpush.msra.mxu0 0.0
  %5536 = vmatpush.msra.mxu0 0.0
  %5537 = vmatpush.msra.mxu0 0.0
  %5538 = vmatpush.msra.mxu0 0.0
  %5539 = vmatpush.msra.mxu0 0.0
  %5540 = vmatpush.msra.mxu0 %v5520
  %5541 = vmatmul.f32.gmra.mxu0 %v5523
  %v5542 = vpop.f32.mrf.mxu0
  %v5543 = vadd.f32 0.0, %v5542
  %5544 = vdwg.mxu0
  %5545 = vrot.lane.b32.xlu0 %v551, 40
  %v5546 = vpop.permute.xlu0 %5545
  %v5549 = vsel %vm559, %v5165, 0
  %5551 = vmatpush.msra.mxu0 0.0
  %5552 = vmatpush.msra.mxu0 0.0
  %5553 = vmatpush.msra.mxu0 0.0
  %5554 = vmatpush.msra.mxu0 0.0
  %5555 = vmatpush.msra.mxu0 0.0
  %5556 = vmatpush.msra.mxu0 0.0
  %5557 = vmatpush.msra.mxu0 0.0
  %5558 = vmatpush.msra.mxu0 0.0
  %5559 = vmatpush.msra.mxu0 0.0
  %5560 = vmatpush.msra.mxu0 0.0
  %5561 = vmatpush.msra.mxu0 0.0
  %5562 = vmatpush.msra.mxu0 0.0
  %5563 = vmatpush.msra.mxu0 0.0
  %5564 = vmatpush.msra.mxu0 0.0
  %5565 = vmatpush.msra.mxu0 0.0
  %5566 = vmatpush.msra.mxu0 %v5546
  %5567 = vmatmul.f32.gmra.mxu0 %v5549
  %v5568 = vpop.f32.mrf.mxu0
  %v5569 = vadd.f32 0.0, %v5568
  %5570 = vdwg.mxu0
  %5571 = vrot.lane.b32.xlu0 %v554, 40
  %v5572 = vpop.permute.xlu0 %5571
  %v5575 = vsel %vm559, %v5180, 0
  %5577 = vmatpush.msra.mxu0 0.0
  %5578 = vmatpush.msra.mxu0 0.0
  %5579 = vmatpush.msra.mxu0 0.0
  %5580 = vmatpush.msra.mxu0 0.0
  %5581 = vmatpush.msra.mxu0 0.0
  %5582 = vmatpush.msra.mxu0 0.0
  %5583 = vmatpush.msra.mxu0 0.0
  %5584 = vmatpush.msra.mxu0 0.0
  %5585 = vmatpush.msra.mxu0 0.0
  %5586 = vmatpush.msra.mxu0 0.0
  %5587 = vmatpush.msra.mxu0 0.0
  %5588 = vmatpush.msra.mxu0 0.0
  %5589 = vmatpush.msra.mxu0 0.0
  %5590 = vmatpush.msra.mxu0 0.0
  %5591 = vmatpush.msra.mxu0 0.0
  %5592 = vmatpush.msra.mxu0 %v5572
  %5593 = vmatmul.f32.gmra.mxu0 %v5575
  %v5594 = vpop.f32.mrf.mxu0
  %v5595 = vadd.f32 0.0, %v5594
  %5596 = vdwg.mxu0
  %5613 = vrot.lane.b32.xlu0 %v2677, 8
  %v5614 = vpop.permute.xlu0 %5613
  %5615 = vrot.lane.b32.xlu0 %v2703, 8
  %v5616 = vpop.permute.xlu0 %5615
  %5617 = vrot.lane.b32.xlu0 %v2729, 8
  %v5618 = vpop.permute.xlu0 %5617
  %5619 = vrot.lane.b32.xlu0 %v2755, 8
  %v5620 = vpop.permute.xlu0 %5619
  %5621 = vrot.lane.b32.xlu0 %v2781, 8
  %v5622 = vpop.permute.xlu0 %5621
  %5623 = vrot.lane.b32.xlu0 %v2807, 8
  %v5624 = vpop.permute.xlu0 %5623
  %5625 = vrot.lane.b32.xlu0 %v2833, 8
  %v5626 = vpop.permute.xlu0 %5625
  %5627 = vrot.lane.b32.xlu0 %v2859, 8
  %v5628 = vpop.permute.xlu0 %5627
  %5629 = vrot.lane.b32.xlu0 %v2885, 8
  %v5630 = vpop.permute.xlu0 %5629
  %5631 = vrot.lane.b32.xlu0 %v2911, 8
  %v5632 = vpop.permute.xlu0 %5631
  %5633 = vrot.lane.b32.xlu0 %v2937, 8
  %v5634 = vpop.permute.xlu0 %5633
  %5635 = vrot.lane.b32.xlu0 %v2963, 8
  %v5636 = vpop.permute.xlu0 %5635
  %5637 = vrot.lane.b32.xlu0 %v2989, 8
  %v5638 = vpop.permute.xlu0 %5637
  %5639 = vrot.lane.b32.xlu0 %v3015, 8
  %v5640 = vpop.permute.xlu0 %5639
  %5641 = vrot.lane.b32.xlu0 %v3041, 8
  %v5642 = vpop.permute.xlu0 %5641
  %5643 = vrot.lane.b32.xlu0 %v3067, 8
  %v5644 = vpop.permute.xlu0 %5643
  %5677 = vrot.lane.b32.xlu0 %v3941, 16
  %v5678 = vpop.permute.xlu0 %5677
  %5679 = vrot.lane.b32.xlu0 %v3967, 16
  %v5680 = vpop.permute.xlu0 %5679
  %5681 = vrot.lane.b32.xlu0 %v3993, 16
  %v5682 = vpop.permute.xlu0 %5681
  %5683 = vrot.lane.b32.xlu0 %v4019, 16
  %v5684 = vpop.permute.xlu0 %5683
  %5685 = vrot.lane.b32.xlu0 %v4045, 16
  %v5686 = vpop.permute.xlu0 %5685
  %5687 = vrot.lane.b32.xlu0 %v4071, 16
  %v5688 = vpop.permute.xlu0 %5687
  %5689 = vrot.lane.b32.xlu0 %v4097, 16
  %v5690 = vpop.permute.xlu0 %5689
  %5691 = vrot.lane.b32.xlu0 %v4123, 16
  %v5692 = vpop.permute.xlu0 %5691
  %5693 = vrot.lane.b32.xlu0 %v4149, 16
  %v5694 = vpop.permute.xlu0 %5693
  %5695 = vrot.lane.b32.xlu0 %v4175, 16
  %v5696 = vpop.permute.xlu0 %5695
  %5697 = vrot.lane.b32.xlu0 %v4201, 16
  %v5698 = vpop.permute.xlu0 %5697
  %5699 = vrot.lane.b32.xlu0 %v4227, 16
  %v5700 = vpop.permute.xlu0 %5699
  %5701 = vrot.lane.b32.xlu0 %v4253, 16
  %v5702 = vpop.permute.xlu0 %5701
  %5703 = vrot.lane.b32.xlu0 %v4279, 16
  %v5704 = vpop.permute.xlu0 %5703
  %5705 = vrot.lane.b32.xlu0 %v4305, 16
  %v5706 = vpop.permute.xlu0 %5705
  %5707 = vrot.lane.b32.xlu0 %v4331, 16
  %v5708 = vpop.permute.xlu0 %5707
  %5741 = vrot.lane.b32.xlu0 %v5205, 24
  %v5742 = vpop.permute.xlu0 %5741
  %5743 = vrot.lane.b32.xlu0 %v5231, 24
  %v5744 = vpop.permute.xlu0 %5743
  %5745 = vrot.lane.b32.xlu0 %v5257, 24
  %v5746 = vpop.permute.xlu0 %5745
  %5747 = vrot.lane.b32.xlu0 %v5283, 24
  %v5748 = vpop.permute.xlu0 %5747
  %5749 = vrot.lane.b32.xlu0 %v5309, 24
  %v5750 = vpop.permute.xlu0 %5749
  %5751 = vrot.lane.b32.xlu0 %v5335, 24
  %v5752 = vpop.permute.xlu0 %5751
  %5753 = vrot.lane.b32.xlu0 %v5361, 24
  %v5754 = vpop.permute.xlu0 %5753
  %5755 = vrot.lane.b32.xlu0 %v5387, 24
  %v5756 = vpop.permute.xlu0 %5755
  %5757 = vrot.lane.b32.xlu0 %v5413, 24
  %v5758 = vpop.permute.xlu0 %5757
  %5759 = vrot.lane.b32.xlu0 %v5439, 24
  %v5760 = vpop.permute.xlu0 %5759
  %5761 = vrot.lane.b32.xlu0 %v5465, 24
  %v5762 = vpop.permute.xlu0 %5761
  %5763 = vrot.lane.b32.xlu0 %v5491, 24
  %v5764 = vpop.permute.xlu0 %5763
  %5765 = vrot.lane.b32.xlu0 %v5517, 24
  %v5766 = vpop.permute.xlu0 %5765
  %5767 = vrot.lane.b32.xlu0 %v5543, 24
  %v5768 = vpop.permute.xlu0 %5767
  %5769 = vrot.lane.b32.xlu0 %v5569, 24
  %v5770 = vpop.permute.xlu0 %5769
  %5771 = vrot.lane.b32.xlu0 %v5595, 24
  %v5772 = vpop.permute.xlu0 %5771
  %v5789 = vsel %vm559, %v1413, %v5614
  %v5790 = vsel %vm559, %v1439, %v5616
  %v5791 = vsel %vm559, %v1465, %v5618
  %v5792 = vsel %vm559, %v1491, %v5620
  %v5793 = vsel %vm559, %v1517, %v5622
  %v5794 = vsel %vm559, %v1543, %v5624
  %v5795 = vsel %vm559, %v1569, %v5626
  %v5796 = vsel %vm559, %v1595, %v5628
  %v5797 = vsel %vm559, %v1621, %v5630
  %v5798 = vsel %vm559, %v1647, %v5632
  %v5799 = vsel %vm559, %v1673, %v5634
  %v5800 = vsel %vm559, %v1699, %v5636
  %v5801 = vsel %vm559, %v1725, %v5638
  %v5802 = vsel %vm559, %v1751, %v5640
  %v5803 = vsel %vm559, %v1777, %v5642
  %v5804 = vsel %vm559, %v1803, %v5644
  %vm5805 = vcmask 130048
  %v5806 = vsel %vm5805, %v5789, %v5678
  %v5807 = vsel %vm5805, %v5790, %v5680
  %v5808 = vsel %vm5805, %v5791, %v5682
  %v5809 = vsel %vm5805, %v5792, %v5684
  %v5810 = vsel %vm5805, %v5793, %v5686
  %v5811 = vsel %vm5805, %v5794, %v5688
  %v5812 = vsel %vm5805, %v5795, %v5690
  %v5813 = vsel %vm5805, %v5796, %v5692
  %v5814 = vsel %vm5805, %v5797, %v5694
  %v5815 = vsel %vm5805, %v5798, %v5696
  %v5816 = vsel %vm5805, %v5799, %v5698
  %v5817 = vsel %vm5805, %v5800, %v5700
  %v5818 = vsel %vm5805, %v5801, %v5702
  %v5819 = vsel %vm5805, %v5802, %v5704
  %v5820 = vsel %vm5805, %v5803, %v5706
  %v5821 = vsel %vm5805, %v5804, %v5708
  %vm5822 = vcmask 195584
  %v5823 = vsel %vm5822, %v5806, %v5742
  %v5824 = vsel %vm5822, %v5807, %v5744
  %v5825 = vsel %vm5822, %v5808, %v5746
  %v5826 = vsel %vm5822, %v5809, %v5748
  %v5827 = vsel %vm5822, %v5810, %v5750
  %v5828 = vsel %vm5822, %v5811, %v5752
  %v5829 = vsel %vm5822, %v5812, %v5754
  %v5830 = vsel %vm5822, %v5813, %v5756
  %v5831 = vsel %vm5822, %v5814, %v5758
  %v5832 = vsel %vm5822, %v5815, %v5760
  %v5833 = vsel %vm5822, %v5816, %v5762
  %v5834 = vsel %vm5822, %v5817, %v5764
  %v5835 = vsel %vm5822, %v5818, %v5766
  %v5836 = vsel %vm5822, %v5819, %v5768
  %v5837 = vsel %vm5822, %v5820, %v5770
  %v5838 = vsel %vm5822, %v5821, %v5772
  %v5839 = vld [vmem:[%s4] sm:$0xff]
  %v5840 = vld [vmem:[%s4 + $0x8] sm:$0xff]
  %v5841 = vld [vmem:[%s4 + $0x10] sm:$0xff]
  %v5842 = vld [vmem:[%s4 + $0x18] sm:$0xff]
  %v5843 = vld [vmem:[%s5] sm:$0x1]
  %v5845 = vperm.slane %v5843, 0
  %v5848 = vsel %vm41, %v5823, 0
  %v5851 = vsel %vm41, %v5824, 0
  %v5854 = vsel %vm41, %v5825, 0
  %v5857 = vsel %vm41, %v5826, 0
  %v5860 = vsel %vm41, %v5827, 0
  %v5863 = vsel %vm41, %v5828, 0
  %v5866 = vsel %vm41, %v5829, 0
  %v5869 = vsel %vm41, %v5830, 0
  %v5872 = vsel %vm41, %v5831, 0
  %v5875 = vsel %vm41, %v5832, 0
  %v5878 = vsel %vm41, %v5833, 0
  %v5881 = vsel %vm41, %v5834, 0
  %v5884 = vsel %vm41, %v5835, 0
  %v5887 = vsel %vm41, %v5836, 0
  %v5890 = vsel %vm41, %v5837, 0
  %v5893 = vsel %vm41, %v5838, 0
  %5895 = vmatpush.msra.mxu0 0.0
  %5896 = vmatpush.msra.mxu0 0.0
  %5897 = vmatpush.msra.mxu0 0.0
  %5898 = vmatpush.msra.mxu0 0.0
  %5899 = vmatpush.msra.mxu0 0.0
  %5900 = vmatpush.msra.mxu0 0.0
  %5901 = vmatpush.msra.mxu0 0.0
  %5902 = vmatpush.msra.mxu0 0.0
  %5903 = vmatpush.msra.mxu0 0.0
  %5904 = vmatpush.msra.mxu0 0.0
  %5905 = vmatpush.msra.mxu0 0.0
  %5906 = vmatpush.msra.mxu0 0.0
  %5907 = vmatpush.msra.mxu0 %v5842
  %5908 = vmatpush.msra.mxu0 %v5841
  %5909 = vmatpush.msra.mxu0 %v5840
  %5910 = vmatpush.msra.mxu0 %v5839
  %5911 = vmatmul.f32.gmra.mxu0 %v5848
  %v5912 = vpop.f32.mrf.mxu0
  %v5913 = vadd.f32 %v5845, %v5912
  %5914 = vmatmul.f32.gmra.mxu0 %v5851
  %v5915 = vpop.f32.mrf.mxu0
  %v5916 = vadd.f32 %v5845, %v5915
  %5917 = vmatmul.f32.gmra.mxu0 %v5854
  %v5918 = vpop.f32.mrf.mxu0
  %v5919 = vadd.f32 %v5845, %v5918
  %5920 = vmatmul.f32.gmra.mxu0 %v5857
  %v5921 = vpop.f32.mrf.mxu0
  %v5922 = vadd.f32 %v5845, %v5921
  %5923 = vmatmul.f32.gmra.mxu0 %v5860
  %v5924 = vpop.f32.mrf.mxu0
  %v5925 = vadd.f32 %v5845, %v5924
  %5926 = vmatmul.f32.gmra.mxu0 %v5863
  %v5927 = vpop.f32.mrf.mxu0
  %v5928 = vadd.f32 %v5845, %v5927
  %5929 = vmatmul.f32.gmra.mxu0 %v5866
  %v5930 = vpop.f32.mrf.mxu0
  %v5931 = vadd.f32 %v5845, %v5930
  %5932 = vmatmul.f32.gmra.mxu0 %v5869
  %v5933 = vpop.f32.mrf.mxu0
  %v5934 = vadd.f32 %v5845, %v5933
  %5935 = vmatmul.f32.gmra.mxu0 %v5872
  %v5936 = vpop.f32.mrf.mxu0
  %v5937 = vadd.f32 %v5845, %v5936
  %5938 = vmatmul.f32.gmra.mxu0 %v5875
  %v5939 = vpop.f32.mrf.mxu0
  %v5940 = vadd.f32 %v5845, %v5939
  %5941 = vmatmul.f32.gmra.mxu0 %v5878
  %v5942 = vpop.f32.mrf.mxu0
  %v5943 = vadd.f32 %v5845, %v5942
  %5944 = vmatmul.f32.gmra.mxu0 %v5881
  %v5945 = vpop.f32.mrf.mxu0
  %v5946 = vadd.f32 %v5845, %v5945
  %5947 = vmatmul.f32.gmra.mxu0 %v5884
  %v5948 = vpop.f32.mrf.mxu0
  %v5949 = vadd.f32 %v5845, %v5948
  %5950 = vmatmul.f32.gmra.mxu0 %v5887
  %v5951 = vpop.f32.mrf.mxu0
  %v5952 = vadd.f32 %v5845, %v5951
  %5953 = vmatmul.f32.gmra.mxu0 %v5890
  %v5954 = vpop.f32.mrf.mxu0
  %v5955 = vadd.f32 %v5845, %v5954
  %5956 = vmatmul.f32.gmra.mxu0 %v5893
  %v5957 = vpop.f32.mrf.mxu0
  %v5958 = vadd.f32 %v5845, %v5957
  %5959 = vdwg.mxu0
  %v5960 = vadd.f32 %v23, %v5913
  %v5961 = vadd.f32 %v24, %v5916
  %v5962 = vadd.f32 %v25, %v5919
  %v5963 = vadd.f32 %v26, %v5922
  %v5964 = vadd.f32 %v27, %v5925
  %v5965 = vadd.f32 %v28, %v5928
  %v5966 = vadd.f32 %v29, %v5931
  %v5967 = vadd.f32 %v30, %v5934
  %v5968 = vadd.f32 %v31, %v5937
  %v5969 = vadd.f32 %v32, %v5940
  %v5970 = vadd.f32 %v33, %v5943
  %v5971 = vadd.f32 %v34, %v5946
  %v5972 = vadd.f32 %v35, %v5949
  %v5973 = vadd.f32 %v36, %v5952
  %v5974 = vadd.f32 %v37, %v5955
  %v5975 = vadd.f32 %v38, %v5958
  %5976 = vst.msk [vmem:[%s6] sm:$0xff] %vm41, %v5960
  %5977 = vst.msk [vmem:[%s6 + $0x8] sm:$0xff] %vm41, %v5961
  %5978 = vst.msk [vmem:[%s6 + $0x10] sm:$0xff] %vm41, %v5962
  %5979 = vst.msk [vmem:[%s6 + $0x18] sm:$0xff] %vm41, %v5963
  %5980 = vst.msk [vmem:[%s6 + $0x20] sm:$0xff] %vm41, %v5964
  %5981 = vst.msk [vmem:[%s6 + $0x28] sm:$0xff] %vm41, %v5965
  %5982 = vst.msk [vmem:[%s6 + $0x30] sm:$0xff] %vm41, %v5966
  %5983 = vst.msk [vmem:[%s6 + $0x38] sm:$0xff] %vm41, %v5967
  %5984 = vst.msk [vmem:[%s6 + $0x40] sm:$0xff] %vm41, %v5968
  %5985 = vst.msk [vmem:[%s6 + $0x48] sm:$0xff] %vm41, %v5969
  %5986 = vst.msk [vmem:[%s6 + $0x50] sm:$0xff] %vm41, %v5970
  %5987 = vst.msk [vmem:[%s6 + $0x58] sm:$0xff] %vm41, %v5971
  %5988 = vst.msk [vmem:[%s6 + $0x60] sm:$0xff] %vm41, %v5972
  %5989 = vst.msk [vmem:[%s6 + $0x68] sm:$0xff] %vm41, %v5973
  %5990 = vst.msk [vmem:[%s6 + $0x70] sm:$0xff] %vm41, %v5974
  %5991 = vst.msk [vmem:[%s6 + $0x78] sm:$0xff] %vm41, %v5975
  // Predicated region
  $region26: #{tpu_custom_call.1} parent=0 // pred_check
    _
  $region27: #{tpu_custom_call.1} parent=0 // pred_check_branch
    %5993 = sbr.rel (0) target = $region29
  $region28: #{tpu_custom_call.1} parent=0 // pred_region
    _
  $region29: #{tpu_custom_call.1} parent=0 // pred_fallthru
    _
  // Predicated region
  $region30: #{tpu_custom_call.1} parent=0 // pred_check
    _
  $region31: #{tpu_custom_call.1} parent=0 // pred_check_branch
    %5995 = sbr.rel (0) target = $region33
  $region32: #{tpu_custom_call.1} parent=0 // pred_region
    _
  $region33: #{tpu_custom_call.1} parent=0 // pred_fallthru
    _

</llo_original>
